<compile_context>
chip_gen: v7x
topology: tpu7x:2x2x1
jax: 0.10.0
libtpu: 0.0.40
codegen_flags: <defaults>
</compile_context>

<pallas_src>
import math

import jax
import jax.numpy as jnp
from jax import lax
from jax.experimental import pallas as pl
from jax.experimental.pallas import tpu as pltpu

# ---------------- small config (consistent with the module's __init__) ----------------
N_COMMANDS = 6          # config.n_commands
EOS_IDX = 3             # DeepCAD EOS command index
N_ARGS = 4              # config.n_args
ARGS_DIM = 32           # config.args_dim  (arg_embed has ARGS_DIM+1 rows, padding_idx=0)
ARG_EMB_DIM = 64        # fixed 64 in CADEmbedding
A_FLAT = ARG_EMB_DIM * N_ARGS
D_MODEL = 32            # config.d_model
N_HEADS = 4             # config.n_enc_heads
HEAD_DIM = D_MODEL // N_HEADS
DIM_FF = 64             # config.dim_feedforward
N_LAYERS = 2            # config.n_enc_layers
SEQ_LEN = 8             # config.max_total_len
MAX_NUM_GROUPS = 4      # config.max_num_groups  (use_group_emb = True)
BATCH = 2
BS = BATCH * SEQ_LEN
LN_EPS = 1e-5
NEG_BIAS = -1e9         # finite "masked" bias (avoids -inf -> NaN on fully-masked rows)

# ---------------- packed-weight layout (rows within one layer, width = 3*D_MODEL) -----
PACK_COLS = 3 * D_MODEL          # 96
ROW_WQKV = 0                     # rows   0:32 , cols 0:96   -> W_qkv
ROW_WO = 32                      # rows  32:64 , cols 0:32   -> W_out
ROW_W1 = 64                      # rows  64:96 , cols 0:64   -> W1
ROW_W2 = 96                      # rows  96:160, cols 0:32   -> W2
ROW_BQKV = 160                   # single rows below, cols from 0
ROW_BO = 161
ROW_B1 = 162
ROW_B2 = 163
ROW_LN1W = 164
ROW_LN1B = 165
ROW_LN2W = 166
ROW_LN2B = 167
PACK_ROWS = 168


def _layernorm(x, w, b):
    mu = jnp.mean(x, axis=-1, keepdims=True)
    var = jnp.mean((x - mu) ** 2, axis=-1, keepdims=True)
    return (x - mu) * lax.rsqrt(var + LN_EPS) * w + b


# ---------------- Pallas kernel: the whole encoder in one grid step -------------------
def encoder_kernel(base_ref, bias_ref, pool_ref, w_ref, z_ref):
    f32 = jnp.float32
    x = base_ref[...]                       # (BS, D) = cmd+group+pos+arg embeds (+bias)
    bias = bias_ref[...]                    # (BS, BS) block-diagonal key-padding bias
    scale = 1.0 / math.sqrt(HEAD_DIM)

    for l in range(N_LAYERS):               # unrolled; all slices below are static
        w_qkv = w_ref[l, ROW_WQKV:ROW_WQKV + D_MODEL, :]          # (D, 3D)
        w_out = w_ref[l, ROW_WO:ROW_WO + D_MODEL, :D_MODEL]       # (D, D)
        w1 = w_ref[l, ROW_W1:ROW_W1 + D_MODEL, :DIM_FF]           # (D, FF)
        w2 = w_ref[l, ROW_W2:ROW_W2 + DIM_FF, :D_MODEL]           # (FF, D)
        b_qkv = w_ref[l, ROW_BQKV:ROW_BQKV + 1, :]                # (1, 3D)
        b_out = w_ref[l, ROW_BO:ROW_BO + 1, :D_MODEL]
        b1 = w_ref[l, ROW_B1:ROW_B1 + 1, :DIM_FF]
        b2 = w_ref[l, ROW_B2:ROW_B2 + 1, :D_MODEL]
        ln1w = w_ref[l, ROW_LN1W:ROW_LN1W + 1, :D_MODEL]
        ln1b = w_ref[l, ROW_LN1B:ROW_LN1B + 1, :D_MODEL]
        ln2w = w_ref[l, ROW_LN2W:ROW_LN2W + 1, :D_MODEL]
        ln2b = w_ref[l, ROW_LN2B:ROW_LN2B + 1, :D_MODEL]

        # ---- fused QKV projection: one matmul for all heads / all batch rows ----
        qkv = jnp.dot(x, w_qkv, preferred_element_type=f32) + b_qkv      # (BS, 3D)

        heads = []
        for h in range(N_HEADS):
            q = qkv[:, h * HEAD_DIM:(h + 1) * HEAD_DIM] * scale
            k = qkv[:, D_MODEL + h * HEAD_DIM:D_MODEL + (h + 1) * HEAD_DIM]
            v = qkv[:, 2 * D_MODEL + h * HEAD_DIM:2 * D_MODEL + (h + 1) * HEAD_DIM]
            s = lax.dot_general(q, k, (((1,), (1,)), ((), ())),
                                preferred_element_type=f32) + bias        # (BS, BS)
            m = jnp.max(s, axis=-1, keepdims=True)
            p = jnp.exp(s - m)
            # exact softmax denominator (approx reciprocal caused the >1e-3 mismatch)
            p = p / jnp.sum(p, axis=-1, keepdims=True)
            heads.append(jnp.dot(p, v, preferred_element_type=f32))       # (BS, hd)

        # ---- fused output projection on concatenated heads ----
        attn = jnp.dot(jnp.concatenate(heads, axis=-1), w_out,
                       preferred_element_type=f32) + b_out                # (BS, D)
        x = _layernorm(x + attn, ln1w, ln1b)

        # ---- feed-forward (ReLU) ----
        hid = jnp.maximum(jnp.dot(x, w1, preferred_element_type=f32) + b1, 0.0)
        ff = jnp.dot(hid, w2, preferred_element_type=f32) + b2
        x = _layernorm(x + ff, ln2w, ln2b)

    # masked mean-pool for both batch elements at once: (B, BS) @ (BS, D)
    z_ref[...] = jnp.dot(pool_ref[...], x, preferred_element_type=f32)    # (B, D)


# ---------------- wrapper-side preprocessing (gathers, masks, weight packing) ---------
def prepare_inputs(commands, args, params):
    S, N = commands.shape
    f32 = jnp.float32

    eos = (commands == EOS_IDX)
    csum = jnp.cumsum(eos.astype(jnp.int32), axis=0)
    padding_mask = (csum == 0).astype(f32)            # (S, N) 1 = valid position
    key_masked = csum > 0                             # (S, N) True = masked key
    group_id = csum                                   # (S, N)

    # embed_fcn computed exactly as in the PyTorch module (gather -> flatten -> matmul);
    # this runs in the XLA wrapper, not in the kernel.
    arg_emb = params['arg_embed'][args + 1].reshape(S, N, A_FLAT)          # padding_idx=0
    base = (params['command_embed'][commands]
            + arg_emb @ params['embed_w'] + params['embed_b']
            + params['group_embed'][group_id]
            + params['pos_embed'][:S][:, None, :]).astype(f32)             # (S, N, D)
    base_flat = jnp.transpose(base, (1, 0, 2)).reshape(N * S, D_MODEL)

    # block-diagonal key-padding bias: row (b,i) may only see valid keys of batch b
    key_flat = jnp.transpose(key_masked, (1, 0)).reshape(-1)              # (N*S,)
    batch_id = jnp.repeat(jnp.arange(N), S)
    same = batch_id[:, None] == batch_id[None, :]
    allowed = same & (~key_flat)[None, :]
    bias = jnp.where(allowed, 0.0, NEG_BIAS).astype(f32)                  # (N*S, N*S)

    # normalized pooling matrix: z_b = pool[b] @ x
    pad_n = jnp.transpose(padding_mask, (1, 0))                           # (N, S)
    denom = jnp.maximum(jnp.sum(pad_n, axis=1, keepdims=True), 1.0)
    pool_rows = pad_n / denom
    pool = (jnp.eye(N, dtype=f32)[:, :, None] * pool_rows[None, :, :]).reshape(N, N * S)

    return base_flat, bias, pool


def pack_weights(p):
    wp = jnp.zeros((N_LAYERS, PACK_ROWS, PACK_COLS), jnp.float32)
    wp = wp.at[:, ROW_WQKV:ROW_WQKV + D_MODEL, :3 * D_MODEL].set(p['w_qkv'])
    wp = wp.at[:, ROW_WO:ROW_WO + D_MODEL, :D_MODEL].set(p['w_out'])
    wp = wp.at[:, ROW_W1:ROW_W1 + D_MODEL, :DIM_FF].set(p['w1'])
    wp = wp.at[:, ROW_W2:ROW_W2 + DIM_FF, :D_MODEL].set(p['w2'])
    wp = wp.at[:, ROW_BQKV, :3 * D_MODEL].set(p['b_qkv'])
    wp = wp.at[:, ROW_BO, :D_MODEL].set(p['b_out'])
    wp = wp.at[:, ROW_B1, :DIM_FF].set(p['b1'])
    wp = wp.at[:, ROW_B2, :D_MODEL].set(p['b2'])
    wp = wp.at[:, ROW_LN1W, :D_MODEL].set(p['ln1w'])
    wp = wp.at[:, ROW_LN1B, :D_MODEL].set(p['ln1b'])
    wp = wp.at[:, ROW_LN2W, :D_MODEL].set(p['ln2w'])
    wp = wp.at[:, ROW_LN2B, :D_MODEL].set(p['ln2b'])
    return wp


@jax.jit
def encoder_pallas(commands, args, params):
    base, bias, pool = prepare_inputs(commands, args, params)
    wpack = pack_weights(params)

    z = pl.pallas_call(
        encoder_kernel,
        out_shape=jax.ShapeDtypeStruct((BATCH, D_MODEL), jnp.float32),
        grid_spec=pltpu.PrefetchScalarGridSpec(
            num_scalar_prefetch=0,
            grid=(1,),                                   # batch folded -> single step
            in_specs=[
                pl.BlockSpec((BS, D_MODEL), lambda i: (0, 0)),
                pl.BlockSpec((BS, BS), lambda i: (0, 0)),
                pl.BlockSpec((BATCH, BS), lambda i: (0, 0)),
                pl.BlockSpec((N_LAYERS, PACK_ROWS, PACK_COLS), lambda i: (0, 0, 0)),
            ],
            out_specs=pl.BlockSpec((BATCH, D_MODEL), lambda i: (0, 0)),
        ),
        compiler_params=pltpu.CompilerParams(dimension_semantics=("arbitrary",)),
    )(base, bias, pool, wpack)
    return z[None]                                       # (1, N, D) as in PyTorch


# ---------------- pure-JAX reference (unfolded, per batch element, exact softmax) -----
def encoder_reference(commands, args, params):
    S, N = commands.shape
    f32 = jnp.float32
    eos = (commands == EOS_IDX)
    csum = jnp.cumsum(eos.astype(jnp.int32), axis=0)
    padding_mask = (csum == 0).astype(f32)               # (S, N)
    key_masked = csum > 0                                # (S, N)
    group_id = csum

    arg_emb = params['arg_embed'][args + 1].reshape(S, N, A_FLAT)
    src = (params['command_embed'][commands]
           + arg_emb @ params['embed_w'] + params['embed_b']
           + params['group_embed'][group_id]
           + params['pos_embed'][:S][:, None, :]).astype(f32)
    scale = 1.0 / math.sqrt(HEAD_DIM)

    outs = []
    for n in range(N):
        x = src[:, n, :]
        bias = jnp.where(key_masked[:, n][None, :], NEG_BIAS, 0.0).astype(f32)
        for l in range(N_LAYERS):
            qkv = x @ params['w_qkv'][l] + params['b_qkv'][l]
            heads = []
            for h in range(N_HEADS):
                q = qkv[:, h * HEAD_DIM:(h + 1) * HEAD_DIM] * scale
                k = qkv[:, D_MODEL + h * HEAD_DIM:D_MODEL + (h + 1) * HEAD_DIM]
                v = qkv[:, 2 * D_MODEL + h * HEAD_DIM:2 * D_MODEL + (h + 1) * HEAD_DIM]
                s = q @ k.T + bias
                p = jax.nn.softmax(s, axis=-1)
                heads.append(p @ v)
            attn = jnp.concatenate(heads, axis=-1) @ params['w_out'][l] + params['b_out'][l]
            x = _layernorm(x + attn, params['ln1w'][l], params['ln1b'][l])
            hid = jnp.maximum(x @ params['w1'][l] + params['b1'][l], 0.0)
            x = _layernorm(x + hid @ params['w2'][l] + params['b2'][l],
                           params['ln2w'][l], params['ln2b'][l])
        pad = padding_mask[:, n]
        outs.append((pad @ x) / jnp.maximum(jnp.sum(pad), 1.0))
    return jnp.stack(outs, axis=0)[None]                 # (1, N, D)


# ---------------- deterministic parameter init -----------------------------------------
def init_params(key):
    keys = jax.random.split(key, 16)

    def nrm(k, shape, scale):
        return jax.random.normal(k, shape, dtype=jnp.float32) * scale

    p = {}
    p['command_embed'] = nrm(keys[0], (N_COMMANDS, D_MODEL), 0.1)
    arg_w = nrm(keys[1], (ARGS_DIM + 1, ARG_EMB_DIM), 0.1)
    p['arg_embed'] = arg_w.at[0].set(0.0)                                 # padding_idx=0
    p['group_embed'] = nrm(keys[2], (MAX_NUM_GROUPS + 2, D_MODEL), 0.1)
    p['pos_embed'] = nrm(keys[3], (SEQ_LEN + 2, D_MODEL), 0.1)
    p['embed_w'] = nrm(keys[4], (A_FLAT, D_MODEL), 1.0 / math.sqrt(A_FLAT))
    p['embed_b'] = nrm(keys[5], (D_MODEL,), 0.02)
    # fused attention weights (same parameterization as nn.MultiheadAttention in_proj/out_proj)
    p['w_qkv'] = nrm(keys[6], (N_LAYERS, D_MODEL, 3 * D_MODEL), 1.0 / math.sqrt(D_MODEL))
    p['b_qkv'] = nrm(keys[7], (N_LAYERS, 3 * D_MODEL), 0.02)
    p['w_out'] = nrm(keys[8], (N_LAYERS, D_MODEL, D_MODEL), 1.0 / math.sqrt(D_MODEL))
    p['b_out'] = nrm(keys[9], (N_LAYERS, D_MODEL), 0.02)
    # feed-forward
    p['w1'] = nrm(keys[10], (N_LAYERS, D_MODEL, DIM_FF), 1.0 / math.sqrt(D_MODEL))
    p['b1'] = nrm(keys[11], (N_LAYERS, DIM_FF), 0.02)
    p['w2'] = nrm(keys[12], (N_LAYERS, DIM_FF, D_MODEL), 1.0 / math.sqrt(DIM_FF))
    p['b2'] = nrm(keys[13], (N_LAYERS, D_MODEL), 0.02)
    # layernorms (PyTorch default init)
    p['ln1w'] = jnp.ones((N_LAYERS, D_MODEL), jnp.float32)
    p['ln1b'] = jnp.zeros((N_LAYERS, D_MODEL), jnp.float32)
    p['ln2w'] = jnp.ones((N_LAYERS, D_MODEL), jnp.float32)
    p['ln2b'] = jnp.zeros((N_LAYERS, D_MODEL), jnp.float32)
    return p


if __name__ == "__main__":
    key = jax.random.PRNGKey(0)
    kp, kc, ka = jax.random.split(key, 3)
    params = init_params(kp)

    # commands: seq-first (S, N); force an EOS tail so masks / group ids are exercised
    base_cmds = jax.random.randint(kc, (SEQ_LEN, BATCH), 0, 3)
    eos_start = jnp.array([4, 6])
    row = jnp.arange(SEQ_LEN)[:, None]
    commands = jnp.where(row >= eos_start[None, :], EOS_IDX, base_cmds).astype(jnp.int32)
    args_in = jax.random.randint(ka, (SEQ_LEN, BATCH, N_ARGS), -1, ARGS_DIM).astype(jnp.int32)

    z = encoder_pallas(commands, args_in, params)
    z = jax.block_until_ready(z)

    z_ref = encoder_reference(commands, args_in, params)
    assert z.shape == (1, BATCH, D_MODEL)
    assert bool(jnp.all(jnp.isfinite(z)))
    max_diff = float(jnp.max(jnp.abs(z - z_ref)))
    assert max_diff < 1e-3, f"max abs diff {max_diff:.3e}"
    print("KERNEL_OK")
</pallas_src>

<mosaic_0001>
module attributes {stable_mosaic.version = 11 : i64} {
  func.func @encoder_kernel(%arg0: i32, %arg1: memref<16x32xf32, #tpu.memory_space<vmem>>, %arg2: memref<16x16xf32, #tpu.memory_space<vmem>>, %arg3: memref<2x16xf32, #tpu.memory_space<vmem>>, %arg4: memref<2x168x96xf32, #tpu.memory_space<vmem>>, %arg5: memref<2x32xf32, #tpu.memory_space<vmem>>) attributes {dimension_semantics = [#tpu.dimension_semantics<arbitrary>], iteration_bounds = array<i64: 1>, scalar_prefetch = 0 : i64, scratch_operands = 0 : i64, tpu.core_type = #tpu.core_type<tc>, window_params = [{pipeline_mode = #tpu.pipeline_mode<synchronous>, transform_indices = @transform_0, window_bounds = array<i64: 16, 32>}, {pipeline_mode = #tpu.pipeline_mode<synchronous>, transform_indices = @transform_1, window_bounds = array<i64: 16, 16>}, {pipeline_mode = #tpu.pipeline_mode<synchronous>, transform_indices = @transform_2, window_bounds = array<i64: 2, 16>}, {pipeline_mode = #tpu.pipeline_mode<synchronous>, transform_indices = @transform_3, window_bounds = array<i64: 2, 168, 96>}, {pipeline_mode = #tpu.pipeline_mode<synchronous>, transform_indices = @transform_4, window_bounds = array<i64: 2, 32>}]} {
    %c0 = arith.constant 0 : index
    %c0_0 = arith.constant 0 : index
    %0 = vector.load %arg1[%c0, %c0_0] : memref<16x32xf32, #tpu.memory_space<vmem>>, vector<16x32xf32>
    %c0_1 = arith.constant 0 : index
    %c0_2 = arith.constant 0 : index
    %1 = vector.load %arg2[%c0_1, %c0_2] : memref<16x16xf32, #tpu.memory_space<vmem>>, vector<16x16xf32>
    %c0_3 = arith.constant 0 : index
    %c0_4 = arith.constant 0 : index
    %c0_5 = arith.constant 0 : index
    %2 = vector.load %arg4[%c0_3, %c0_4, %c0_5] : memref<2x168x96xf32, #tpu.memory_space<vmem>>, vector<1x32x96xf32>
    %3 = vector.shape_cast %2 : vector<1x32x96xf32> to vector<32x96xf32>
    %c0_6 = arith.constant 0 : index
    %c32 = arith.constant 32 : index
    %c0_7 = arith.constant 0 : index
    %4 = vector.load %arg4[%c0_6, %c32, %c0_7] : memref<2x168x96xf32, #tpu.memory_space<vmem>>, vector<1x32x32xf32>
    %5 = vector.shape_cast %4 : vector<1x32x32xf32> to vector<32x32xf32>
    %c0_8 = arith.constant 0 : index
    %c64 = arith.constant 64 : index
    %c0_9 = arith.constant 0 : index
    %6 = vector.load %arg4[%c0_8, %c64, %c0_9] : memref<2x168x96xf32, #tpu.memory_space<vmem>>, vector<1x32x64xf32>
    %7 = vector.shape_cast %6 : vector<1x32x64xf32> to vector<32x64xf32>
    %c0_10 = arith.constant 0 : index
    %c96 = arith.constant 96 : index
    %c0_11 = arith.constant 0 : index
    %8 = vector.load %arg4[%c0_10, %c96, %c0_11] : memref<2x168x96xf32, #tpu.memory_space<vmem>>, vector<1x64x32xf32>
    %9 = vector.shape_cast %8 : vector<1x64x32xf32> to vector<64x32xf32>
    %c0_12 = arith.constant 0 : index
    %c160 = arith.constant 160 : index
    %c0_13 = arith.constant 0 : index
    %10 = vector.load %arg4[%c0_12, %c160, %c0_13] : memref<2x168x96xf32, #tpu.memory_space<vmem>>, vector<1x1x96xf32>
    %11 = vector.shape_cast %10 : vector<1x1x96xf32> to vector<1x96xf32>
    %c0_14 = arith.constant 0 : index
    %c161 = arith.constant 161 : index
    %c0_15 = arith.constant 0 : index
    %12 = vector.load %arg4[%c0_14, %c161, %c0_15] : memref<2x168x96xf32, #tpu.memory_space<vmem>>, vector<1x1x32xf32>
    %13 = vector.shape_cast %12 : vector<1x1x32xf32> to vector<1x32xf32>
    %c0_16 = arith.constant 0 : index
    %c162 = arith.constant 162 : index
    %c0_17 = arith.constant 0 : index
    %14 = vector.load %arg4[%c0_16, %c162, %c0_17] : memref<2x168x96xf32, #tpu.memory_space<vmem>>, vector<1x1x64xf32>
    %15 = vector.shape_cast %14 : vector<1x1x64xf32> to vector<1x64xf32>
    %c0_18 = arith.constant 0 : index
    %c163 = arith.constant 163 : index
    %c0_19 = arith.constant 0 : index
    %16 = vector.load %arg4[%c0_18, %c163, %c0_19] : memref<2x168x96xf32, #tpu.memory_space<vmem>>, vector<1x1x32xf32>
    %17 = vector.shape_cast %16 : vector<1x1x32xf32> to vector<1x32xf32>
    %c0_20 = arith.constant 0 : index
    %c164 = arith.constant 164 : index
    %c0_21 = arith.constant 0 : index
    %18 = vector.load %arg4[%c0_20, %c164, %c0_21] : memref<2x168x96xf32, #tpu.memory_space<vmem>>, vector<1x1x32xf32>
    %19 = vector.shape_cast %18 : vector<1x1x32xf32> to vector<1x32xf32>
    %c0_22 = arith.constant 0 : index
    %c165 = arith.constant 165 : index
    %c0_23 = arith.constant 0 : index
    %20 = vector.load %arg4[%c0_22, %c165, %c0_23] : memref<2x168x96xf32, #tpu.memory_space<vmem>>, vector<1x1x32xf32>
    %21 = vector.shape_cast %20 : vector<1x1x32xf32> to vector<1x32xf32>
    %c0_24 = arith.constant 0 : index
    %c166 = arith.constant 166 : index
    %c0_25 = arith.constant 0 : index
    %22 = vector.load %arg4[%c0_24, %c166, %c0_25] : memref<2x168x96xf32, #tpu.memory_space<vmem>>, vector<1x1x32xf32>
    %23 = vector.shape_cast %22 : vector<1x1x32xf32> to vector<1x32xf32>
    %c0_26 = arith.constant 0 : index
    %c167 = arith.constant 167 : index
    %c0_27 = arith.constant 0 : index
    %24 = vector.load %arg4[%c0_26, %c167, %c0_27] : memref<2x168x96xf32, #tpu.memory_space<vmem>>, vector<1x1x32xf32>
    %25 = vector.shape_cast %24 : vector<1x1x32xf32> to vector<1x32xf32>
    %cst = arith.constant dense<0.000000e+00> : vector<16x96xf32>
    %26 = tpu.matmul %0, %3, %cst {dimension_numbers = #tpu.dot_dimension_numbers<[1], [0], [0], [1], [0, 0, 1, 1], [], []>} : vector<16x32xf32>, vector<32x96xf32>, vector<16x96xf32> -> vector<16x96xf32>
    %27 = vector.broadcast %11 : vector<1x96xf32> to vector<16x96xf32>
    %28 = arith.addf %26, %27 : vector<16x96xf32>
    %29 = vector.extract_strided_slice %28 {offsets = [0, 0], sizes = [16, 8], strides = [1, 1]} : vector<16x96xf32> to vector<16x8xf32>
    %cst_28 = arith.constant 0.353553385 : f32
    %30 = vector.broadcast %cst_28 : f32 to vector<16x8xf32>
    %31 = arith.mulf %29, %30 : vector<16x8xf32>
    %32 = vector.extract_strided_slice %28 {offsets = [0, 32], sizes = [16, 8], strides = [1, 1]} : vector<16x96xf32> to vector<16x8xf32>
    %33 = vector.extract_strided_slice %28 {offsets = [0, 64], sizes = [16, 8], strides = [1, 1]} : vector<16x96xf32> to vector<16x8xf32>
    %cst_29 = arith.constant dense<0.000000e+00> : vector<16x16xf32>
    %34 = tpu.matmul %31, %32, %cst_29 {dimension_numbers = #tpu.dot_dimension_numbers<[1], [1], [0], [0], [0, 0, 1, 0], [], []>} : vector<16x8xf32>, vector<16x8xf32>, vector<16x16xf32> -> vector<16x16xf32>
    %35 = arith.addf %34, %1 : vector<16x16xf32>
    %cst_30 = arith.constant dense<0xFF800000> : vector<16xf32>
    %36 = vector.multi_reduction <maximumf>, %35, %cst_30 [1] : vector<16x16xf32> to vector<16xf32>
    %37 = vector.shape_cast %36 : vector<16xf32> to vector<16x1xf32>
    %38 = vector.broadcast %37 : vector<16x1xf32> to vector<16x16xf32>
    %39 = arith.subf %35, %38 : vector<16x16xf32>
    %40 = math.exp %39 : vector<16x16xf32>
    %cst_31 = arith.constant dense<0.000000e+00> : vector<16xf32>
    %41 = vector.multi_reduction <add>, %40, %cst_31 [1] : vector<16x16xf32> to vector<16xf32>
    %42 = vector.shape_cast %41 : vector<16xf32> to vector<16x1xf32>
    %43 = vector.broadcast %42 : vector<16x1xf32> to vector<16x16xf32>
    %44 = arith.divf %40, %43 : vector<16x16xf32>
    %cst_32 = arith.constant dense<0.000000e+00> : vector<16x8xf32>
    %45 = tpu.matmul %44, %33, %cst_32 {dimension_numbers = #tpu.dot_dimension_numbers<[1], [0], [0], [1], [0, 0, 1, 1], [], []>} : vector<16x16xf32>, vector<16x8xf32>, vector<16x8xf32> -> vector<16x8xf32>
    %46 = vector.extract_strided_slice %28 {offsets = [0, 8], sizes = [16, 8], strides = [1, 1]} : vector<16x96xf32> to vector<16x8xf32>
    %cst_33 = arith.constant 0.353553385 : f32
    %47 = vector.broadcast %cst_33 : f32 to vector<16x8xf32>
    %48 = arith.mulf %46, %47 : vector<16x8xf32>
    %49 = vector.extract_strided_slice %28 {offsets = [0, 40], sizes = [16, 8], strides = [1, 1]} : vector<16x96xf32> to vector<16x8xf32>
    %50 = vector.extract_strided_slice %28 {offsets = [0, 72], sizes = [16, 8], strides = [1, 1]} : vector<16x96xf32> to vector<16x8xf32>
    %cst_34 = arith.constant dense<0.000000e+00> : vector<16x16xf32>
    %51 = tpu.matmul %48, %49, %cst_34 {dimension_numbers = #tpu.dot_dimension_numbers<[1], [1], [0], [0], [0, 0, 1, 0], [], []>} : vector<16x8xf32>, vector<16x8xf32>, vector<16x16xf32> -> vector<16x16xf32>
    %52 = arith.addf %51, %1 : vector<16x16xf32>
    %cst_35 = arith.constant dense<0xFF800000> : vector<16xf32>
    %53 = vector.multi_reduction <maximumf>, %52, %cst_35 [1] : vector<16x16xf32> to vector<16xf32>
    %54 = vector.shape_cast %53 : vector<16xf32> to vector<16x1xf32>
    %55 = vector.broadcast %54 : vector<16x1xf32> to vector<16x16xf32>
    %56 = arith.subf %52, %55 : vector<16x16xf32>
    %57 = math.exp %56 : vector<16x16xf32>
    %cst_36 = arith.constant dense<0.000000e+00> : vector<16xf32>
    %58 = vector.multi_reduction <add>, %57, %cst_36 [1] : vector<16x16xf32> to vector<16xf32>
    %59 = vector.shape_cast %58 : vector<16xf32> to vector<16x1xf32>
    %60 = vector.broadcast %59 : vector<16x1xf32> to vector<16x16xf32>
    %61 = arith.divf %57, %60 : vector<16x16xf32>
    %cst_37 = arith.constant dense<0.000000e+00> : vector<16x8xf32>
    %62 = tpu.matmul %61, %50, %cst_37 {dimension_numbers = #tpu.dot_dimension_numbers<[1], [0], [0], [1], [0, 0, 1, 1], [], []>} : vector<16x16xf32>, vector<16x8xf32>, vector<16x8xf32> -> vector<16x8xf32>
    %63 = vector.extract_strided_slice %28 {offsets = [0, 16], sizes = [16, 8], strides = [1, 1]} : vector<16x96xf32> to vector<16x8xf32>
    %cst_38 = arith.constant 0.353553385 : f32
    %64 = vector.broadcast %cst_38 : f32 to vector<16x8xf32>
    %65 = arith.mulf %63, %64 : vector<16x8xf32>
    %66 = vector.extract_strided_slice %28 {offsets = [0, 48], sizes = [16, 8], strides = [1, 1]} : vector<16x96xf32> to vector<16x8xf32>
    %67 = vector.extract_strided_slice %28 {offsets = [0, 80], sizes = [16, 8], strides = [1, 1]} : vector<16x96xf32> to vector<16x8xf32>
    %cst_39 = arith.constant dense<0.000000e+00> : vector<16x16xf32>
    %68 = tpu.matmul %65, %66, %cst_39 {dimension_numbers = #tpu.dot_dimension_numbers<[1], [1], [0], [0], [0, 0, 1, 0], [], []>} : vector<16x8xf32>, vector<16x8xf32>, vector<16x16xf32> -> vector<16x16xf32>
    %69 = arith.addf %68, %1 : vector<16x16xf32>
    %cst_40 = arith.constant dense<0xFF800000> : vector<16xf32>
    %70 = vector.multi_reduction <maximumf>, %69, %cst_40 [1] : vector<16x16xf32> to vector<16xf32>
    %71 = vector.shape_cast %70 : vector<16xf32> to vector<16x1xf32>
    %72 = vector.broadcast %71 : vector<16x1xf32> to vector<16x16xf32>
    %73 = arith.subf %69, %72 : vector<16x16xf32>
    %74 = math.exp %73 : vector<16x16xf32>
    %cst_41 = arith.constant dense<0.000000e+00> : vector<16xf32>
    %75 = vector.multi_reduction <add>, %74, %cst_41 [1] : vector<16x16xf32> to vector<16xf32>
    %76 = vector.shape_cast %75 : vector<16xf32> to vector<16x1xf32>
    %77 = vector.broadcast %76 : vector<16x1xf32> to vector<16x16xf32>
    %78 = arith.divf %74, %77 : vector<16x16xf32>
    %cst_42 = arith.constant dense<0.000000e+00> : vector<16x8xf32>
    %79 = tpu.matmul %78, %67, %cst_42 {dimension_numbers = #tpu.dot_dimension_numbers<[1], [0], [0], [1], [0, 0, 1, 1], [], []>} : vector<16x16xf32>, vector<16x8xf32>, vector<16x8xf32> -> vector<16x8xf32>
    %80 = vector.extract_strided_slice %28 {offsets = [0, 24], sizes = [16, 8], strides = [1, 1]} : vector<16x96xf32> to vector<16x8xf32>
    %cst_43 = arith.constant 0.353553385 : f32
    %81 = vector.broadcast %cst_43 : f32 to vector<16x8xf32>
    %82 = arith.mulf %80, %81 : vector<16x8xf32>
    %83 = vector.extract_strided_slice %28 {offsets = [0, 56], sizes = [16, 8], strides = [1, 1]} : vector<16x96xf32> to vector<16x8xf32>
    %84 = vector.extract_strided_slice %28 {offsets = [0, 88], sizes = [16, 8], strides = [1, 1]} : vector<16x96xf32> to vector<16x8xf32>
    %cst_44 = arith.constant dense<0.000000e+00> : vector<16x16xf32>
    %85 = tpu.matmul %82, %83, %cst_44 {dimension_numbers = #tpu.dot_dimension_numbers<[1], [1], [0], [0], [0, 0, 1, 0], [], []>} : vector<16x8xf32>, vector<16x8xf32>, vector<16x16xf32> -> vector<16x16xf32>
    %86 = arith.addf %85, %1 : vector<16x16xf32>
    %cst_45 = arith.constant dense<0xFF800000> : vector<16xf32>
    %87 = vector.multi_reduction <maximumf>, %86, %cst_45 [1] : vector<16x16xf32> to vector<16xf32>
    %88 = vector.shape_cast %87 : vector<16xf32> to vector<16x1xf32>
    %89 = vector.broadcast %88 : vector<16x1xf32> to vector<16x16xf32>
    %90 = arith.subf %86, %89 : vector<16x16xf32>
    %91 = math.exp %90 : vector<16x16xf32>
    %cst_46 = arith.constant dense<0.000000e+00> : vector<16xf32>
    %92 = vector.multi_reduction <add>, %91, %cst_46 [1] : vector<16x16xf32> to vector<16xf32>
    %93 = vector.shape_cast %92 : vector<16xf32> to vector<16x1xf32>
    %94 = vector.broadcast %93 : vector<16x1xf32> to vector<16x16xf32>
    %95 = arith.divf %91, %94 : vector<16x16xf32>
    %cst_47 = arith.constant dense<0.000000e+00> : vector<16x8xf32>
    %96 = tpu.matmul %95, %84, %cst_47 {dimension_numbers = #tpu.dot_dimension_numbers<[1], [0], [0], [1], [0, 0, 1, 1], [], []>} : vector<16x16xf32>, vector<16x8xf32>, vector<16x8xf32> -> vector<16x8xf32>
    %97 = tpu.concatenate %45, %62, %79, %96 in 1 : vector<16x8xf32>, vector<16x8xf32>, vector<16x8xf32>, vector<16x8xf32> -> vector<16x32xf32>
    %cst_48 = arith.constant dense<0.000000e+00> : vector<16x32xf32>
    %98 = tpu.matmul %97, %5, %cst_48 {dimension_numbers = #tpu.dot_dimension_numbers<[1], [0], [0], [1], [0, 0, 1, 1], [], []>} : vector<16x32xf32>, vector<32x32xf32>, vector<16x32xf32> -> vector<16x32xf32>
    %99 = vector.broadcast %13 : vector<1x32xf32> to vector<16x32xf32>
    %100 = arith.addf %98, %99 : vector<16x32xf32>
    %101 = arith.addf %0, %100 : vector<16x32xf32>
    %cst_49 = arith.constant dense<0.000000e+00> : vector<16xf32>
    %102 = vector.multi_reduction <add>, %101, %cst_49 [1] : vector<16x32xf32> to vector<16xf32>
    %103 = vector.shape_cast %102 : vector<16xf32> to vector<16x1xf32>
    %cst_50 = arith.constant 3.200000e+01 : f32
    %104 = vector.broadcast %cst_50 : f32 to vector<16x1xf32>
    %105 = arith.divf %103, %104 : vector<16x1xf32>
    %106 = vector.broadcast %105 : vector<16x1xf32> to vector<16x32xf32>
    %107 = arith.subf %101, %106 : vector<16x32xf32>
    %108 = arith.mulf %107, %107 : vector<16x32xf32>
    %cst_51 = arith.constant dense<0.000000e+00> : vector<16xf32>
    %109 = vector.multi_reduction <add>, %108, %cst_51 [1] : vector<16x32xf32> to vector<16xf32>
    %110 = vector.shape_cast %109 : vector<16xf32> to vector<16x1xf32>
    %cst_52 = arith.constant 3.200000e+01 : f32
    %111 = vector.broadcast %cst_52 : f32 to vector<16x1xf32>
    %112 = arith.divf %110, %111 : vector<16x1xf32>
    %113 = vector.broadcast %105 : vector<16x1xf32> to vector<16x32xf32>
    %114 = arith.subf %101, %113 : vector<16x32xf32>
    %cst_53 = arith.constant 9.99999974E-6 : f32
    %115 = vector.broadcast %cst_53 : f32 to vector<16x1xf32>
    %116 = arith.addf %112, %115 : vector<16x1xf32>
    %117 = math.rsqrt %116 : vector<16x1xf32>
    %118 = vector.broadcast %117 : vector<16x1xf32> to vector<16x32xf32>
    %119 = arith.mulf %114, %118 : vector<16x32xf32>
    %120 = vector.broadcast %19 : vector<1x32xf32> to vector<16x32xf32>
    %121 = arith.mulf %119, %120 : vector<16x32xf32>
    %122 = vector.broadcast %21 : vector<1x32xf32> to vector<16x32xf32>
    %123 = arith.addf %121, %122 : vector<16x32xf32>
    %cst_54 = arith.constant dense<0.000000e+00> : vector<16x64xf32>
    %124 = tpu.matmul %123, %7, %cst_54 {dimension_numbers = #tpu.dot_dimension_numbers<[1], [0], [0], [1], [0, 0, 1, 1], [], []>} : vector<16x32xf32>, vector<32x64xf32>, vector<16x64xf32> -> vector<16x64xf32>
    %125 = vector.broadcast %15 : vector<1x64xf32> to vector<16x64xf32>
    %126 = arith.addf %124, %125 : vector<16x64xf32>
    %cst_55 = arith.constant 0.000000e+00 : f32
    %127 = vector.broadcast %cst_55 : f32 to vector<16x64xf32>
    %128 = arith.maximumf %126, %127 : vector<16x64xf32>
    %cst_56 = arith.constant dense<0.000000e+00> : vector<16x32xf32>
    %129 = tpu.matmul %128, %9, %cst_56 {dimension_numbers = #tpu.dot_dimension_numbers<[1], [0], [0], [1], [0, 0, 1, 1], [], []>} : vector<16x64xf32>, vector<64x32xf32>, vector<16x32xf32> -> vector<16x32xf32>
    %130 = vector.broadcast %17 : vector<1x32xf32> to vector<16x32xf32>
    %131 = arith.addf %129, %130 : vector<16x32xf32>
    %132 = arith.addf %123, %131 : vector<16x32xf32>
    %cst_57 = arith.constant dense<0.000000e+00> : vector<16xf32>
    %133 = vector.multi_reduction <add>, %132, %cst_57 [1] : vector<16x32xf32> to vector<16xf32>
    %134 = vector.shape_cast %133 : vector<16xf32> to vector<16x1xf32>
    %cst_58 = arith.constant 3.200000e+01 : f32
    %135 = vector.broadcast %cst_58 : f32 to vector<16x1xf32>
    %136 = arith.divf %134, %135 : vector<16x1xf32>
    %137 = vector.broadcast %136 : vector<16x1xf32> to vector<16x32xf32>
    %138 = arith.subf %132, %137 : vector<16x32xf32>
    %139 = arith.mulf %138, %138 : vector<16x32xf32>
    %cst_59 = arith.constant dense<0.000000e+00> : vector<16xf32>
    %140 = vector.multi_reduction <add>, %139, %cst_59 [1] : vector<16x32xf32> to vector<16xf32>
    %141 = vector.shape_cast %140 : vector<16xf32> to vector<16x1xf32>
    %cst_60 = arith.constant 3.200000e+01 : f32
    %142 = vector.broadcast %cst_60 : f32 to vector<16x1xf32>
    %143 = arith.divf %141, %142 : vector<16x1xf32>
    %144 = vector.broadcast %136 : vector<16x1xf32> to vector<16x32xf32>
    %145 = arith.subf %132, %144 : vector<16x32xf32>
    %cst_61 = arith.constant 9.99999974E-6 : f32
    %146 = vector.broadcast %cst_61 : f32 to vector<16x1xf32>
    %147 = arith.addf %143, %146 : vector<16x1xf32>
    %148 = math.rsqrt %147 : vector<16x1xf32>
    %149 = vector.broadcast %148 : vector<16x1xf32> to vector<16x32xf32>
    %150 = arith.mulf %145, %149 : vector<16x32xf32>
    %151 = vector.broadcast %23 : vector<1x32xf32> to vector<16x32xf32>
    %152 = arith.mulf %150, %151 : vector<16x32xf32>
    %153 = vector.broadcast %25 : vector<1x32xf32> to vector<16x32xf32>
    %154 = arith.addf %152, %153 : vector<16x32xf32>
    %c1 = arith.constant 1 : index
    %c0_62 = arith.constant 0 : index
    %c0_63 = arith.constant 0 : index
    %155 = vector.load %arg4[%c1, %c0_62, %c0_63] : memref<2x168x96xf32, #tpu.memory_space<vmem>>, vector<1x32x96xf32>
    %156 = vector.shape_cast %155 : vector<1x32x96xf32> to vector<32x96xf32>
    %c1_64 = arith.constant 1 : index
    %c32_65 = arith.constant 32 : index
    %c0_66 = arith.constant 0 : index
    %157 = vector.load %arg4[%c1_64, %c32_65, %c0_66] : memref<2x168x96xf32, #tpu.memory_space<vmem>>, vector<1x32x32xf32>
    %158 = vector.shape_cast %157 : vector<1x32x32xf32> to vector<32x32xf32>
    %c1_67 = arith.constant 1 : index
    %c64_68 = arith.constant 64 : index
    %c0_69 = arith.constant 0 : index
    %159 = vector.load %arg4[%c1_67, %c64_68, %c0_69] : memref<2x168x96xf32, #tpu.memory_space<vmem>>, vector<1x32x64xf32>
    %160 = vector.shape_cast %159 : vector<1x32x64xf32> to vector<32x64xf32>
    %c1_70 = arith.constant 1 : index
    %c96_71 = arith.constant 96 : index
    %c0_72 = arith.constant 0 : index
    %161 = vector.load %arg4[%c1_70, %c96_71, %c0_72] : memref<2x168x96xf32, #tpu.memory_space<vmem>>, vector<1x64x32xf32>
    %162 = vector.shape_cast %161 : vector<1x64x32xf32> to vector<64x32xf32>
    %c1_73 = arith.constant 1 : index
    %c160_74 = arith.constant 160 : index
    %c0_75 = arith.constant 0 : index
    %163 = vector.load %arg4[%c1_73, %c160_74, %c0_75] : memref<2x168x96xf32, #tpu.memory_space<vmem>>, vector<1x1x96xf32>
    %164 = vector.shape_cast %163 : vector<1x1x96xf32> to vector<1x96xf32>
    %c1_76 = arith.constant 1 : index
    %c161_77 = arith.constant 161 : index
    %c0_78 = arith.constant 0 : index
    %165 = vector.load %arg4[%c1_76, %c161_77, %c0_78] : memref<2x168x96xf32, #tpu.memory_space<vmem>>, vector<1x1x32xf32>
    %166 = vector.shape_cast %165 : vector<1x1x32xf32> to vector<1x32xf32>
    %c1_79 = arith.constant 1 : index
    %c162_80 = arith.constant 162 : index
    %c0_81 = arith.constant 0 : index
    %167 = vector.load %arg4[%c1_79, %c162_80, %c0_81] : memref<2x168x96xf32, #tpu.memory_space<vmem>>, vector<1x1x64xf32>
    %168 = vector.shape_cast %167 : vector<1x1x64xf32> to vector<1x64xf32>
    %c1_82 = arith.constant 1 : index
    %c163_83 = arith.constant 163 : index
    %c0_84 = arith.constant 0 : index
    %169 = vector.load %arg4[%c1_82, %c163_83, %c0_84] : memref<2x168x96xf32, #tpu.memory_space<vmem>>, vector<1x1x32xf32>
    %170 = vector.shape_cast %169 : vector<1x1x32xf32> to vector<1x32xf32>
    %c1_85 = arith.constant 1 : index
    %c164_86 = arith.constant 164 : index
    %c0_87 = arith.constant 0 : index
    %171 = vector.load %arg4[%c1_85, %c164_86, %c0_87] : memref<2x168x96xf32, #tpu.memory_space<vmem>>, vector<1x1x32xf32>
    %172 = vector.shape_cast %171 : vector<1x1x32xf32> to vector<1x32xf32>
    %c1_88 = arith.constant 1 : index
    %c165_89 = arith.constant 165 : index
    %c0_90 = arith.constant 0 : index
    %173 = vector.load %arg4[%c1_88, %c165_89, %c0_90] : memref<2x168x96xf32, #tpu.memory_space<vmem>>, vector<1x1x32xf32>
    %174 = vector.shape_cast %173 : vector<1x1x32xf32> to vector<1x32xf32>
    %c1_91 = arith.constant 1 : index
    %c166_92 = arith.constant 166 : index
    %c0_93 = arith.constant 0 : index
    %175 = vector.load %arg4[%c1_91, %c166_92, %c0_93] : memref<2x168x96xf32, #tpu.memory_space<vmem>>, vector<1x1x32xf32>
    %176 = vector.shape_cast %175 : vector<1x1x32xf32> to vector<1x32xf32>
    %c1_94 = arith.constant 1 : index
    %c167_95 = arith.constant 167 : index
    %c0_96 = arith.constant 0 : index
    %177 = vector.load %arg4[%c1_94, %c167_95, %c0_96] : memref<2x168x96xf32, #tpu.memory_space<vmem>>, vector<1x1x32xf32>
    %178 = vector.shape_cast %177 : vector<1x1x32xf32> to vector<1x32xf32>
    %cst_97 = arith.constant dense<0.000000e+00> : vector<16x96xf32>
    %179 = tpu.matmul %154, %156, %cst_97 {dimension_numbers = #tpu.dot_dimension_numbers<[1], [0], [0], [1], [0, 0, 1, 1], [], []>} : vector<16x32xf32>, vector<32x96xf32>, vector<16x96xf32> -> vector<16x96xf32>
    %180 = vector.broadcast %164 : vector<1x96xf32> to vector<16x96xf32>
    %181 = arith.addf %179, %180 : vector<16x96xf32>
    %182 = vector.extract_strided_slice %181 {offsets = [0, 0], sizes = [16, 8], strides = [1, 1]} : vector<16x96xf32> to vector<16x8xf32>
    %cst_98 = arith.constant 0.353553385 : f32
    %183 = vector.broadcast %cst_98 : f32 to vector<16x8xf32>
    %184 = arith.mulf %182, %183 : vector<16x8xf32>
    %185 = vector.extract_strided_slice %181 {offsets = [0, 32], sizes = [16, 8], strides = [1, 1]} : vector<16x96xf32> to vector<16x8xf32>
    %186 = vector.extract_strided_slice %181 {offsets = [0, 64], sizes = [16, 8], strides = [1, 1]} : vector<16x96xf32> to vector<16x8xf32>
    %cst_99 = arith.constant dense<0.000000e+00> : vector<16x16xf32>
    %187 = tpu.matmul %184, %185, %cst_99 {dimension_numbers = #tpu.dot_dimension_numbers<[1], [1], [0], [0], [0, 0, 1, 0], [], []>} : vector<16x8xf32>, vector<16x8xf32>, vector<16x16xf32> -> vector<16x16xf32>
    %188 = arith.addf %187, %1 : vector<16x16xf32>
    %cst_100 = arith.constant dense<0xFF800000> : vector<16xf32>
    %189 = vector.multi_reduction <maximumf>, %188, %cst_100 [1] : vector<16x16xf32> to vector<16xf32>
    %190 = vector.shape_cast %189 : vector<16xf32> to vector<16x1xf32>
    %191 = vector.broadcast %190 : vector<16x1xf32> to vector<16x16xf32>
    %192 = arith.subf %188, %191 : vector<16x16xf32>
    %193 = math.exp %192 : vector<16x16xf32>
    %cst_101 = arith.constant dense<0.000000e+00> : vector<16xf32>
    %194 = vector.multi_reduction <add>, %193, %cst_101 [1] : vector<16x16xf32> to vector<16xf32>
    %195 = vector.shape_cast %194 : vector<16xf32> to vector<16x1xf32>
    %196 = vector.broadcast %195 : vector<16x1xf32> to vector<16x16xf32>
    %197 = arith.divf %193, %196 : vector<16x16xf32>
    %cst_102 = arith.constant dense<0.000000e+00> : vector<16x8xf32>
    %198 = tpu.matmul %197, %186, %cst_102 {dimension_numbers = #tpu.dot_dimension_numbers<[1], [0], [0], [1], [0, 0, 1, 1], [], []>} : vector<16x16xf32>, vector<16x8xf32>, vector<16x8xf32> -> vector<16x8xf32>
    %199 = vector.extract_strided_slice %181 {offsets = [0, 8], sizes = [16, 8], strides = [1, 1]} : vector<16x96xf32> to vector<16x8xf32>
    %cst_103 = arith.constant 0.353553385 : f32
    %200 = vector.broadcast %cst_103 : f32 to vector<16x8xf32>
    %201 = arith.mulf %199, %200 : vector<16x8xf32>
    %202 = vector.extract_strided_slice %181 {offsets = [0, 40], sizes = [16, 8], strides = [1, 1]} : vector<16x96xf32> to vector<16x8xf32>
    %203 = vector.extract_strided_slice %181 {offsets = [0, 72], sizes = [16, 8], strides = [1, 1]} : vector<16x96xf32> to vector<16x8xf32>
    %cst_104 = arith.constant dense<0.000000e+00> : vector<16x16xf32>
    %204 = tpu.matmul %201, %202, %cst_104 {dimension_numbers = #tpu.dot_dimension_numbers<[1], [1], [0], [0], [0, 0, 1, 0], [], []>} : vector<16x8xf32>, vector<16x8xf32>, vector<16x16xf32> -> vector<16x16xf32>
    %205 = arith.addf %204, %1 : vector<16x16xf32>
    %cst_105 = arith.constant dense<0xFF800000> : vector<16xf32>
    %206 = vector.multi_reduction <maximumf>, %205, %cst_105 [1] : vector<16x16xf32> to vector<16xf32>
    %207 = vector.shape_cast %206 : vector<16xf32> to vector<16x1xf32>
    %208 = vector.broadcast %207 : vector<16x1xf32> to vector<16x16xf32>
    %209 = arith.subf %205, %208 : vector<16x16xf32>
    %210 = math.exp %209 : vector<16x16xf32>
    %cst_106 = arith.constant dense<0.000000e+00> : vector<16xf32>
    %211 = vector.multi_reduction <add>, %210, %cst_106 [1] : vector<16x16xf32> to vector<16xf32>
    %212 = vector.shape_cast %211 : vector<16xf32> to vector<16x1xf32>
    %213 = vector.broadcast %212 : vector<16x1xf32> to vector<16x16xf32>
    %214 = arith.divf %210, %213 : vector<16x16xf32>
    %cst_107 = arith.constant dense<0.000000e+00> : vector<16x8xf32>
    %215 = tpu.matmul %214, %203, %cst_107 {dimension_numbers = #tpu.dot_dimension_numbers<[1], [0], [0], [1], [0, 0, 1, 1], [], []>} : vector<16x16xf32>, vector<16x8xf32>, vector<16x8xf32> -> vector<16x8xf32>
    %216 = vector.extract_strided_slice %181 {offsets = [0, 16], sizes = [16, 8], strides = [1, 1]} : vector<16x96xf32> to vector<16x8xf32>
    %cst_108 = arith.constant 0.353553385 : f32
    %217 = vector.broadcast %cst_108 : f32 to vector<16x8xf32>
    %218 = arith.mulf %216, %217 : vector<16x8xf32>
    %219 = vector.extract_strided_slice %181 {offsets = [0, 48], sizes = [16, 8], strides = [1, 1]} : vector<16x96xf32> to vector<16x8xf32>
    %220 = vector.extract_strided_slice %181 {offsets = [0, 80], sizes = [16, 8], strides = [1, 1]} : vector<16x96xf32> to vector<16x8xf32>
    %cst_109 = arith.constant dense<0.000000e+00> : vector<16x16xf32>
    %221 = tpu.matmul %218, %219, %cst_109 {dimension_numbers = #tpu.dot_dimension_numbers<[1], [1], [0], [0], [0, 0, 1, 0], [], []>} : vector<16x8xf32>, vector<16x8xf32>, vector<16x16xf32> -> vector<16x16xf32>
    %222 = arith.addf %221, %1 : vector<16x16xf32>
    %cst_110 = arith.constant dense<0xFF800000> : vector<16xf32>
    %223 = vector.multi_reduction <maximumf>, %222, %cst_110 [1] : vector<16x16xf32> to vector<16xf32>
    %224 = vector.shape_cast %223 : vector<16xf32> to vector<16x1xf32>
    %225 = vector.broadcast %224 : vector<16x1xf32> to vector<16x16xf32>
    %226 = arith.subf %222, %225 : vector<16x16xf32>
    %227 = math.exp %226 : vector<16x16xf32>
    %cst_111 = arith.constant dense<0.000000e+00> : vector<16xf32>
    %228 = vector.multi_reduction <add>, %227, %cst_111 [1] : vector<16x16xf32> to vector<16xf32>
    %229 = vector.shape_cast %228 : vector<16xf32> to vector<16x1xf32>
    %230 = vector.broadcast %229 : vector<16x1xf32> to vector<16x16xf32>
    %231 = arith.divf %227, %230 : vector<16x16xf32>
    %cst_112 = arith.constant dense<0.000000e+00> : vector<16x8xf32>
    %232 = tpu.matmul %231, %220, %cst_112 {dimension_numbers = #tpu.dot_dimension_numbers<[1], [0], [0], [1], [0, 0, 1, 1], [], []>} : vector<16x16xf32>, vector<16x8xf32>, vector<16x8xf32> -> vector<16x8xf32>
    %233 = vector.extract_strided_slice %181 {offsets = [0, 24], sizes = [16, 8], strides = [1, 1]} : vector<16x96xf32> to vector<16x8xf32>
    %cst_113 = arith.constant 0.353553385 : f32
    %234 = vector.broadcast %cst_113 : f32 to vector<16x8xf32>
    %235 = arith.mulf %233, %234 : vector<16x8xf32>
    %236 = vector.extract_strided_slice %181 {offsets = [0, 56], sizes = [16, 8], strides = [1, 1]} : vector<16x96xf32> to vector<16x8xf32>
    %237 = vector.extract_strided_slice %181 {offsets = [0, 88], sizes = [16, 8], strides = [1, 1]} : vector<16x96xf32> to vector<16x8xf32>
    %cst_114 = arith.constant dense<0.000000e+00> : vector<16x16xf32>
    %238 = tpu.matmul %235, %236, %cst_114 {dimension_numbers = #tpu.dot_dimension_numbers<[1], [1], [0], [0], [0, 0, 1, 0], [], []>} : vector<16x8xf32>, vector<16x8xf32>, vector<16x16xf32> -> vector<16x16xf32>
    %239 = arith.addf %238, %1 : vector<16x16xf32>
    %cst_115 = arith.constant dense<0xFF800000> : vector<16xf32>
    %240 = vector.multi_reduction <maximumf>, %239, %cst_115 [1] : vector<16x16xf32> to vector<16xf32>
    %241 = vector.shape_cast %240 : vector<16xf32> to vector<16x1xf32>
    %242 = vector.broadcast %241 : vector<16x1xf32> to vector<16x16xf32>
    %243 = arith.subf %239, %242 : vector<16x16xf32>
    %244 = math.exp %243 : vector<16x16xf32>
    %cst_116 = arith.constant dense<0.000000e+00> : vector<16xf32>
    %245 = vector.multi_reduction <add>, %244, %cst_116 [1] : vector<16x16xf32> to vector<16xf32>
    %246 = vector.shape_cast %245 : vector<16xf32> to vector<16x1xf32>
    %247 = vector.broadcast %246 : vector<16x1xf32> to vector<16x16xf32>
    %248 = arith.divf %244, %247 : vector<16x16xf32>
    %cst_117 = arith.constant dense<0.000000e+00> : vector<16x8xf32>
    %249 = tpu.matmul %248, %237, %cst_117 {dimension_numbers = #tpu.dot_dimension_numbers<[1], [0], [0], [1], [0, 0, 1, 1], [], []>} : vector<16x16xf32>, vector<16x8xf32>, vector<16x8xf32> -> vector<16x8xf32>
    %250 = tpu.concatenate %198, %215, %232, %249 in 1 : vector<16x8xf32>, vector<16x8xf32>, vector<16x8xf32>, vector<16x8xf32> -> vector<16x32xf32>
    %cst_118 = arith.constant dense<0.000000e+00> : vector<16x32xf32>
    %251 = tpu.matmul %250, %158, %cst_118 {dimension_numbers = #tpu.dot_dimension_numbers<[1], [0], [0], [1], [0, 0, 1, 1], [], []>} : vector<16x32xf32>, vector<32x32xf32>, vector<16x32xf32> -> vector<16x32xf32>
    %252 = vector.broadcast %166 : vector<1x32xf32> to vector<16x32xf32>
    %253 = arith.addf %251, %252 : vector<16x32xf32>
    %254 = arith.addf %154, %253 : vector<16x32xf32>
    %cst_119 = arith.constant dense<0.000000e+00> : vector<16xf32>
    %255 = vector.multi_reduction <add>, %254, %cst_119 [1] : vector<16x32xf32> to vector<16xf32>
    %256 = vector.shape_cast %255 : vector<16xf32> to vector<16x1xf32>
    %cst_120 = arith.constant 3.200000e+01 : f32
    %257 = vector.broadcast %cst_120 : f32 to vector<16x1xf32>
    %258 = arith.divf %256, %257 : vector<16x1xf32>
    %259 = vector.broadcast %258 : vector<16x1xf32> to vector<16x32xf32>
    %260 = arith.subf %254, %259 : vector<16x32xf32>
    %261 = arith.mulf %260, %260 : vector<16x32xf32>
    %cst_121 = arith.constant dense<0.000000e+00> : vector<16xf32>
    %262 = vector.multi_reduction <add>, %261, %cst_121 [1] : vector<16x32xf32> to vector<16xf32>
    %263 = vector.shape_cast %262 : vector<16xf32> to vector<16x1xf32>
    %cst_122 = arith.constant 3.200000e+01 : f32
    %264 = vector.broadcast %cst_122 : f32 to vector<16x1xf32>
    %265 = arith.divf %263, %264 : vector<16x1xf32>
    %266 = vector.broadcast %258 : vector<16x1xf32> to vector<16x32xf32>
    %267 = arith.subf %254, %266 : vector<16x32xf32>
    %cst_123 = arith.constant 9.99999974E-6 : f32
    %268 = vector.broadcast %cst_123 : f32 to vector<16x1xf32>
    %269 = arith.addf %265, %268 : vector<16x1xf32>
    %270 = math.rsqrt %269 : vector<16x1xf32>
    %271 = vector.broadcast %270 : vector<16x1xf32> to vector<16x32xf32>
    %272 = arith.mulf %267, %271 : vector<16x32xf32>
    %273 = vector.broadcast %172 : vector<1x32xf32> to vector<16x32xf32>
    %274 = arith.mulf %272, %273 : vector<16x32xf32>
    %275 = vector.broadcast %174 : vector<1x32xf32> to vector<16x32xf32>
    %276 = arith.addf %274, %275 : vector<16x32xf32>
    %cst_124 = arith.constant dense<0.000000e+00> : vector<16x64xf32>
    %277 = tpu.matmul %276, %160, %cst_124 {dimension_numbers = #tpu.dot_dimension_numbers<[1], [0], [0], [1], [0, 0, 1, 1], [], []>} : vector<16x32xf32>, vector<32x64xf32>, vector<16x64xf32> -> vector<16x64xf32>
    %278 = vector.broadcast %168 : vector<1x64xf32> to vector<16x64xf32>
    %279 = arith.addf %277, %278 : vector<16x64xf32>
    %cst_125 = arith.constant 0.000000e+00 : f32
    %280 = vector.broadcast %cst_125 : f32 to vector<16x64xf32>
    %281 = arith.maximumf %279, %280 : vector<16x64xf32>
    %cst_126 = arith.constant dense<0.000000e+00> : vector<16x32xf32>
    %282 = tpu.matmul %281, %162, %cst_126 {dimension_numbers = #tpu.dot_dimension_numbers<[1], [0], [0], [1], [0, 0, 1, 1], [], []>} : vector<16x64xf32>, vector<64x32xf32>, vector<16x32xf32> -> vector<16x32xf32>
    %283 = vector.broadcast %170 : vector<1x32xf32> to vector<16x32xf32>
    %284 = arith.addf %282, %283 : vector<16x32xf32>
    %285 = arith.addf %276, %284 : vector<16x32xf32>
    %cst_127 = arith.constant dense<0.000000e+00> : vector<16xf32>
    %286 = vector.multi_reduction <add>, %285, %cst_127 [1] : vector<16x32xf32> to vector<16xf32>
    %287 = vector.shape_cast %286 : vector<16xf32> to vector<16x1xf32>
    %cst_128 = arith.constant 3.200000e+01 : f32
    %288 = vector.broadcast %cst_128 : f32 to vector<16x1xf32>
    %289 = arith.divf %287, %288 : vector<16x1xf32>
    %290 = vector.broadcast %289 : vector<16x1xf32> to vector<16x32xf32>
    %291 = arith.subf %285, %290 : vector<16x32xf32>
    %292 = arith.mulf %291, %291 : vector<16x32xf32>
    %cst_129 = arith.constant dense<0.000000e+00> : vector<16xf32>
    %293 = vector.multi_reduction <add>, %292, %cst_129 [1] : vector<16x32xf32> to vector<16xf32>
    %294 = vector.shape_cast %293 : vector<16xf32> to vector<16x1xf32>
    %cst_130 = arith.constant 3.200000e+01 : f32
    %295 = vector.broadcast %cst_130 : f32 to vector<16x1xf32>
    %296 = arith.divf %294, %295 : vector<16x1xf32>
    %297 = vector.broadcast %289 : vector<16x1xf32> to vector<16x32xf32>
    %298 = arith.subf %285, %297 : vector<16x32xf32>
    %cst_131 = arith.constant 9.99999974E-6 : f32
    %299 = vector.broadcast %cst_131 : f32 to vector<16x1xf32>
    %300 = arith.addf %296, %299 : vector<16x1xf32>
    %301 = math.rsqrt %300 : vector<16x1xf32>
    %302 = vector.broadcast %301 : vector<16x1xf32> to vector<16x32xf32>
    %303 = arith.mulf %298, %302 : vector<16x32xf32>
    %304 = vector.broadcast %176 : vector<1x32xf32> to vector<16x32xf32>
    %305 = arith.mulf %303, %304 : vector<16x32xf32>
    %306 = vector.broadcast %178 : vector<1x32xf32> to vector<16x32xf32>
    %307 = arith.addf %305, %306 : vector<16x32xf32>
    %c0_132 = arith.constant 0 : index
    %c0_133 = arith.constant 0 : index
    %308 = vector.load %arg3[%c0_132, %c0_133] : memref<2x16xf32, #tpu.memory_space<vmem>>, vector<2x16xf32>
    %cst_134 = arith.constant dense<0.000000e+00> : vector<2x32xf32>
    %309 = tpu.matmul %308, %307, %cst_134 {dimension_numbers = #tpu.dot_dimension_numbers<[1], [0], [0], [1], [0, 0, 1, 1], [], []>} : vector<2x16xf32>, vector<16x32xf32>, vector<2x32xf32> -> vector<2x32xf32>
    %c0_135 = arith.constant 0 : index
    %c0_136 = arith.constant 0 : index
    %310 = vector.load %arg5[%c0_135, %c0_136] : memref<2x32xf32, #tpu.memory_space<vmem>>, vector<2x32xf32>
    tpu.vector_store %arg5[%c0_135, %c0_136], %309 {strides = array<i32>} : memref<2x32xf32, #tpu.memory_space<vmem>>, vector<2x32xf32>,
    return
  }
  func.func @transform_0(%arg0: i32) -> (i32, i32) {
    %c0_i32 = arith.constant 0 : i32
    %c0_i32_0 = arith.constant 0 : i32
    %c0_i32_1 = arith.constant 0 : i32
    return %c0_i32, %c0_i32_0 : i32, i32
  }
  func.func @transform_1(%arg0: i32) -> (i32, i32) {
    %c0_i32 = arith.constant 0 : i32
    %c0_i32_0 = arith.constant 0 : i32
    %c0_i32_1 = arith.constant 0 : i32
    return %c0_i32, %c0_i32_0 : i32, i32
  }
  func.func @transform_2(%arg0: i32) -> (i32, i32) {
    %c0_i32 = arith.constant 0 : i32
    %c0_i32_0 = arith.constant 0 : i32
    %c0_i32_1 = arith.constant 0 : i32
    return %c0_i32, %c0_i32_0 : i32, i32
  }
  func.func @transform_3(%arg0: i32) -> (i32, i32, i32) {
    %c0_i32 = arith.constant 0 : i32
    %c0_i32_0 = arith.constant 0 : i32
    %c0_i32_1 = arith.constant 0 : i32
    %c0_i32_2 = arith.constant 0 : i32
    return %c0_i32, %c0_i32_0, %c0_i32_1 : i32, i32, i32
  }
  func.func @transform_4(%arg0: i32) -> (i32, i32) {
    %c0_i32 = arith.constant 0 : i32
    %c0_i32_0 = arith.constant 0 : i32
    %c0_i32_1 = arith.constant 0 : i32
    return %c0_i32, %c0_i32_0 : i32, i32
  }
}

</mosaic_0001>

<llo_original>
// kernel: eq.13
$region0: #{eq.13}
  %s0 = inlined_call_operand.vmem [shape: s32[2,8], index: 0, kind: input, shape index: {}]
  %s1 = inlined_call_operand.vmem [shape: s32[16], index: 1, kind: output, shape index: {}]
  $region1: #{eq.13} parent=0
    #allocation0 [shape = 'u8[4096]{0}', space=vmem, size = 0x1000, scoped, tag = 'scoped mem for output reshape']
    #allocation1 [shape = 'u8[4096]{0}', space=vmem, size = 0x1000, scoped, tag = 'scoped mem for input reshape']
    %s3 = sshllo.u32 0, 2
    %v4 = vld [vmem:[%s0] sm:%s3]
    %5 = vst [vmem:[#allocation1] sm:%s3] %v4
    %v6 = vld [vmem:[#allocation1] sm:$0x1]
    %vm7 = vcmask 64512
    %8 = vst.msk [vmem:[#allocation0] sm:$0x1] %vm7, %v6
    %s9 = scalar_lea.vmem [#allocation1], 1
    %v10 = vld [vmem:[%s9] sm:$0x1]
    %11 = vrot.lane.b32.xlu0 %v10, 8
    %v12 = vpop.permute.xlu0 %11
    %vm13 = vcmask 130112
    %14 = vst.msk [vmem:[#allocation0] sm:$0x1] %vm13, %v12
    %s16 = sshllo.u32 0, 1
    %v18 = vld [vmem:[#allocation0] sm:%s16]
    %s19 = sshllo.u32 0, 1
    %20 = vst [vmem:[%s1] sm:%s19] %v18

// kernel: encoder_pallas.1
$region0: #{encoder_pallas.1}
  #allocation0 [shape = 'u32[]', space=smem, size = 0x4, offset = 0x4, fixed_abs, tag = 'smem constant byte address 0x4 - core index']
  #allocation1 [shape = 'u32[144,128]{1,0:T(1,128)}', space=vmem, size = 0x12000, scoped, tag = 'internal scratch']
  %s0 = inlined_call_operand.vmem [shape: f32[16,32], index: 0, kind: input, shape index: {}]
  %s1 = inlined_call_operand.vmem [shape: f32[16,16], index: 1, kind: input, shape index: {}]
  %s2 = inlined_call_operand.vmem [shape: f32[2,16], index: 2, kind: input, shape index: {}]
  %s3 = inlined_call_operand.vmem [shape: f32[2,168,96], index: 3, kind: input, shape index: {}]
  %s4 = inlined_call_operand.hbm [shape: f32[2,32], index: 4, kind: output, shape index: {}]
  %s5 = sld [smem:[#allocation0]]
  $region26: #{encoder_pallas.1} parent=0
    _
  %s7 = ssub.s32 1, %s5
  %s8 = scalar_select 0, %s7, %s5
  $region1: #{encoder_pallas.1} parent=0
    #allocation2 [shape = 'u8[1024]{0}', space=vmem, size = 0x400, scoped, tag = 'output window, operand 0, single buffered']
    #allocation3 [shape = 's32[1]{0}', space=sflag, size = 0x4, scoped, tag = 'scoped memory for encoder_pallas.1']
    %9 = vsyncpa [#allocation3], 0
    // Predicated region
    $region2: #{encoder_pallas.1} parent=1 // pred_check
      _
    $region3: #{encoder_pallas.1} parent=1 // pred_check_branch
      %11 = sbr.rel (0) target = $region5
    $region4: #{encoder_pallas.1} parent=1 // pred_region
      _
    $region5: #{encoder_pallas.1} parent=1 // pred_fallthru
      _
    // Predicated region
    $region6: #{encoder_pallas.1} parent=1 // pred_check
      _
    $region7: #{encoder_pallas.1} parent=1 // pred_check_branch
      %13 = sbr.rel (0) target = $region9
    $region8: #{encoder_pallas.1} parent=1 // pred_region
      _
    $region9: #{encoder_pallas.1} parent=1 // pred_fallthru
      _
    // Predicated region
    $region10: #{encoder_pallas.1} parent=1 // pred_check
      _
    $region11: #{encoder_pallas.1} parent=1 // pred_check_branch
      %15 = sbr.rel (0) target = $region13
    $region12: #{encoder_pallas.1} parent=1 // pred_region
      _
    $region13: #{encoder_pallas.1} parent=1 // pred_fallthru
      _
    // Predicated region
    $region14: #{encoder_pallas.1} parent=1 // pred_check
      _
    $region15: #{encoder_pallas.1} parent=1 // pred_check_branch
      %17 = sbr.rel (0) target = $region17
    $region16: #{encoder_pallas.1} parent=1 // pred_region
      _
    $region17: #{encoder_pallas.1} parent=1 // pred_fallthru
      _
    %v18 = vld [vmem:[%s0] sm:$0xff]
    %v19 = vld [vmem:[%s0 + $0x8] sm:$0xff]
    %v20 = vld [vmem:[%s1] sm:$0xff]
    %v21 = vld [vmem:[%s1 + $0x8] sm:$0xff]
    %v22 = vld [vmem:[%s3] sm:$0xff]
    %v23 = vld [vmem:[%s3 + $0x8] sm:$0xff]
    %v24 = vld [vmem:[%s3 + $0x10] sm:$0xff]
    %v25 = vld [vmem:[%s3 + $0x18] sm:$0xff]
    %v26 = vld [vmem:[%s3 + $0x20] sm:$0xff]
    %v27 = vld [vmem:[%s3 + $0x28] sm:$0xff]
    %v28 = vld [vmem:[%s3 + $0x30] sm:$0xff]
    %v29 = vld [vmem:[%s3 + $0x38] sm:$0xff]
    %v30 = vld [vmem:[%s3 + $0x40] sm:$0xff]
    %v31 = vld [vmem:[%s3 + $0x48] sm:$0xff]
    %v32 = vld [vmem:[%s3 + $0x50] sm:$0xff]
    %v33 = vld [vmem:[%s3 + $0x58] sm:$0xff]
    %v34 = vld [vmem:[%s3 + $0x60] sm:$0xff]
    %v35 = vld [vmem:[%s3 + $0x68] sm:$0xff]
    %v36 = vld [vmem:[%s3 + $0x70] sm:$0xff]
    %v37 = vld [vmem:[%s3 + $0x78] sm:$0xff]
    %v38 = vld [vmem:[%s3 + $0x80] sm:$0xff]
    %v39 = vld [vmem:[%s3 + $0x88] sm:$0xff]
    %v40 = vld [vmem:[%s3 + $0x90] sm:$0xff]
    %v41 = vld [vmem:[%s3 + $0x98] sm:$0xff]
    %v42 = vld [vmem:[%s3 + $0xa0] sm:$0x1]
    %v43 = vld [vmem:[%s3 + $0xa1] sm:$0x1]
    %v44 = vld [vmem:[%s3 + $0xa2] sm:$0x1]
    %v45 = vld [vmem:[%s3 + $0xa3] sm:$0x1]
    %v46 = vld [vmem:[%s3 + $0xa4] sm:$0x1]
    %v47 = vld [vmem:[%s3 + $0xa5] sm:$0x1]
    %v48 = vld [vmem:[%s3 + $0xa6] sm:$0x1]
    %v49 = vld [vmem:[%s3 + $0xa7] sm:$0x1]
    %v50 = vlaneseq
    %v51 = vshrl.u32 %v50, 7
    %v52 = vsub.s32 0, %v51
    %v53 = vrot.slane %v42, %v52
    %vm54 = vcmask 261120
    %v56 = vsel %vm54, %v18, 0
    %v59 = vsel %vm54, %v19, 0
    %61 = vmatprep.subr.mxu0 0.0
    %62 = vmatpush1.msra.mxu0 %v22
    %63 = vmatprep.subr.mxu0 0.0
    %64 = vmatpush1.msra.mxu0 %v23
    %65 = vmatprep.subr.mxu0 0.0
    %66 = vmatpush1.msra.mxu0 %v24
    %67 = vmatprep.subr.mxu0 0.0
    %68 = vmatpush1.msra.mxu0 %v25
    %69 = vmatprep.subr.mxu0 0.0
    %70 = vmatpush1.msra.mxu0 0.0
    %71 = vmatprep.subr.mxu0 0.0
    %72 = vmatpush1.msra.mxu0 0.0
    %73 = vmatprep.subr.mxu0 0.0
    %74 = vmatpush1.msra.mxu0 0.0
    %75 = vmatprep.subr.mxu0 0.0
    %76 = vmatpush1.msra.mxu0 0.0
    %77 = vmatprep.subr.mxu0 0.0
    %78 = vmatpush1.msra.mxu0 0.0
    %79 = vmatprep.subr.mxu0 0.0
    %80 = vmatpush1.msra.mxu0 0.0
    %81 = vmatprep.subr.mxu0 0.0
    %82 = vmatpush1.msra.mxu0 0.0
    %83 = vmatprep.subr.mxu0 0.0
    %84 = vmatpush1.msra.mxu0 0.0
    %85 = vmatprep.subr.mxu0 0.0
    %86 = vmatpush1.msra.mxu0 0.0
    %87 = vmatprep.subr.mxu0 0.0
    %88 = vmatpush1.msra.mxu0 0.0
    %89 = vmatprep.subr.mxu0 0.0
    %90 = vmatpush1.msra.mxu0 0.0
    %91 = vmatprep.subr.mxu0 0.0
    %92 = vmatpush1.msra.mxu0 0.0
    %93 = vmatprep.subr.mxu0 0.0
    %94 = vmatpush1.msra.mxu0 0.0
    %95 = vmatprep.subr.mxu0 0.0
    %96 = vmatpush1.msra.mxu0 0.0
    %97 = vmatprep.subr.mxu0 0.0
    %98 = vmatpush1.msra.mxu0 0.0
    %99 = vmatprep.subr.mxu0 0.0
    %100 = vmatpush1.msra.mxu0 0.0
    %101 = vmatprep.subr.mxu0 0.0
    %102 = vmatpush1.msra.mxu0 0.0
    %103 = vmatprep.subr.mxu0 0.0
    %104 = vmatpush1.msra.mxu0 0.0
    %105 = vmatprep.subr.mxu0 0.0
    %106 = vmatpush1.msra.mxu0 0.0
    %107 = vmatprep.subr.mxu0 0.0
    %108 = vmatpush1.msra.mxu0 0.0
    %109 = vmatprep.subr.mxu0 0.0
    %110 = vmatpush1.msra.mxu0 0.0
    %111 = vmatprep.subr.mxu0 0.0
    %112 = vmatpush1.msra.mxu0 0.0
    %113 = vmatprep.subr.mxu0 0.0
    %114 = vmatpush1.msra.mxu0 0.0
    %115 = vmatprep.subr.mxu0 0.0
    %116 = vmatpush1.msra.mxu0 0.0
    %117 = vmatprep.subr.mxu0 0.0
    %118 = vmatpush1.msra.mxu0 0.0
    %119 = vmatprep.subr.mxu0 0.0
    %120 = vmatpush1.msra.mxu0 0.0
    %121 = vmatprep.subr.mxu0 0.0
    %122 = vmatpush1.msra.mxu0 0.0
    %123 = vmatprep.subr.mxu0 0.0
    %124 = vmatpush1.msra.mxu0 0.0
    %125 = vmatprep.mubr.f32.mxu0 0.0
    %126 = vmatmul.mubr.f32.gmra.mrb[0].mxu0 %v56
    %v127 = vpop.f32.mrb[0].mxu0
    %v128 = vadd.f32 %v53, %v127
    %v129 = vpop.f32.mrb[0].mxu0
    %130 = vmatprep.mubr.f32.mxu0 0.0
    %131 = vmatmul.mubr.f32.gmra.mrb[0].mxu0 %v59
    %v132 = vpop.f32.mrb[0].mxu0
    %v133 = vadd.f32 %v53, %v132
    %v134 = vpop.f32.mrb[0].mxu0
    %135 = vdwg.mxu0
    %v136 = vmul.f32 %v128, 0.35355338
    %v137 = vmul.f32 %v133, 0.35355338
    %140 = vrot.lane.b32.xlu0 %v128, 96
    %v141 = vpop.permute.xlu0 %140
    %142 = vrot.lane.b32.xlu0 %v133, 96
    %v143 = vpop.permute.xlu0 %142
    %vm144 = vcmask 64512
    %v146 = vsel %vm144, %v136, 0
    %v149 = vsel %vm144, %v137, 0
    %v151 = vsel %vm144, %v141, 0
    %v153 = vsel %vm144, %v143, 0
    %155 = vmatprep.subr.mxu0 0.0
    %156 = vmatpush1.xpose.msra.mxu0 %v151
    %157 = vmatprep.subr.mxu0 0.0
    %158 = vmatpush1.xpose.msra.mxu0 %v153
    %159 = vmatprep.subr.mxu0 0.0
    %160 = vmatpush1.xpose.msra.mxu0 0.0
    %161 = vmatprep.subr.mxu0 0.0
    %162 = vmatpush1.xpose.msra.mxu0 0.0
    %163 = vmatprep.subr.mxu0 0.0
    %164 = vmatpush1.xpose.msra.mxu0 0.0
    %165 = vmatprep.subr.mxu0 0.0
    %166 = vmatpush1.xpose.msra.mxu0 0.0
    %167 = vmatprep.subr.mxu0 0.0
    %168 = vmatpush1.xpose.msra.mxu0 0.0
    %169 = vmatprep.subr.mxu0 0.0
    %170 = vmatpush1.xpose.msra.mxu0 0.0
    %171 = vmatprep.subr.mxu0 0.0
    %172 = vmatpush1.xpose.msra.mxu0 0.0
    %173 = vmatprep.subr.mxu0 0.0
    %174 = vmatpush1.xpose.msra.mxu0 0.0
    %175 = vmatprep.subr.mxu0 0.0
    %176 = vmatpush1.xpose.msra.mxu0 0.0
    %177 = vmatprep.subr.mxu0 0.0
    %178 = vmatpush1.xpose.msra.mxu0 0.0
    %179 = vmatprep.subr.mxu0 0.0
    %180 = vmatpush1.xpose.msra.mxu0 0.0
    %181 = vmatprep.subr.mxu0 0.0
    %182 = vmatpush1.xpose.msra.mxu0 0.0
    %183 = vmatprep.subr.mxu0 0.0
    %184 = vmatpush1.xpose.msra.mxu0 0.0
    %185 = vmatprep.subr.mxu0 0.0
    %186 = vmatpush1.xpose.msra.mxu0 0.0
    %187 = vmatprep.subr.mxu0 0.0
    %188 = vmatpush1.xpose.msra.mxu0 0.0
    %189 = vmatprep.subr.mxu0 0.0
    %190 = vmatpush1.xpose.msra.mxu0 0.0
    %191 = vmatprep.subr.mxu0 0.0
    %192 = vmatpush1.xpose.msra.mxu0 0.0
    %193 = vmatprep.subr.mxu0 0.0
    %194 = vmatpush1.xpose.msra.mxu0 0.0
    %195 = vmatprep.subr.mxu0 0.0
    %196 = vmatpush1.xpose.msra.mxu0 0.0
    %197 = vmatprep.subr.mxu0 0.0
    %198 = vmatpush1.xpose.msra.mxu0 0.0
    %199 = vmatprep.subr.mxu0 0.0
    %200 = vmatpush1.xpose.msra.mxu0 0.0
    %201 = vmatprep.subr.mxu0 0.0
    %202 = vmatpush1.xpose.msra.mxu0 0.0
    %203 = vmatprep.subr.mxu0 0.0
    %204 = vmatpush1.xpose.msra.mxu0 0.0
    %205 = vmatprep.subr.mxu0 0.0
    %206 = vmatpush1.xpose.msra.mxu0 0.0
    %207 = vmatprep.subr.mxu0 0.0
    %208 = vmatpush1.xpose.msra.mxu0 0.0
    %209 = vmatprep.subr.mxu0 0.0
    %210 = vmatpush1.xpose.msra.mxu0 0.0
    %211 = vmatprep.subr.mxu0 0.0
    %212 = vmatpush1.xpose.msra.mxu0 0.0
    %213 = vmatprep.subr.mxu0 0.0
    %214 = vmatpush1.xpose.msra.mxu0 0.0
    %215 = vmatprep.subr.mxu0 0.0
    %216 = vmatpush1.xpose.msra.mxu0 0.0
    %217 = vmatprep.subr.mxu0 0.0
    %218 = vmatpush1.xpose.msra.mxu0 0.0
    %219 = vmatprep.mubr.f32.mxu0 0.0
    %220 = vmatmul.mubr.f32.gmra.mrb[0].mxu0 %v146
    %v221 = vpop.f32.mrb[0].mxu0
    %v222 = vadd.f32 %v20, %v221
    %v223 = vpop.f32.mrb[0].mxu0
    %224 = vmatprep.mubr.f32.mxu0 0.0
    %225 = vmatmul.mubr.f32.gmra.mrb[0].mxu0 %v149
    %v226 = vpop.f32.mrb[0].mxu0
    %v227 = vadd.f32 %v21, %v226
    %v228 = vpop.f32.mrb[0].mxu0
    %229 = vdwg.mxu0
    %vm230 = vcmask 130048
    %v231 = vsel %vm230, %v222, -inf
    %232 = vmax.xlane.f32.xlu0 %v231
    %v233 = vpop.xlane.xlu0 %232
    %v234 = vsel %vm230, %v227, -inf
    %235 = vmax.xlane.f32.xlu0 %v234
    %v236 = vpop.xlane.xlu0 %235
    %v237 = vsub.f32 %v222, %v233
    %v238 = vsub.f32 %v227, %v236
    %v239 = vmul.f32 %v237, 1.442695
    %v240 = vpow.pop %v239
    %v241 = vmul.f32 %v238, 1.442695
    %v242 = vpow.pop %v241
    %v243 = vsel %vm230, %v240, 0.0
    %244 = vadd.xlane.f32.xlu0 %v243
    %v245 = vpop.xlane.xlu0 %244
    %v246 = vsel %vm230, %v242, 0.0
    %247 = vadd.xlane.f32.xlu0 %v246
    %v248 = vpop.xlane.xlu0 %247
    %v249 = vrcp.pop %v245
    %v250 = vmul.f32 %v240, %v249
    %v251 = vrcp.pop %v248
    %v252 = vmul.f32 %v242, %v251
    %253 = vrot.lane.b32.xlu0 %v128, 64
    %v254 = vpop.permute.xlu0 %253
    %255 = vrot.lane.b32.xlu0 %v133, 64
    %v256 = vpop.permute.xlu0 %255
    %v260 = vsel %vm230, %v250, 0
    %v263 = vsel %vm230, %v252, 0
    %265 = vmatprep.subr.mxu0 0.0
    %266 = vmatpush1.msra.mxu0 %v254
    %267 = vmatprep.subr.mxu0 0.0
    %268 = vmatpush1.msra.mxu0 %v256
    %269 = vmatprep.subr.mxu0 0.0
    %270 = vmatpush1.msra.mxu0 0.0
    %271 = vmatprep.subr.mxu0 0.0
    %272 = vmatpush1.msra.mxu0 0.0
    %273 = vmatprep.subr.mxu0 0.0
    %274 = vmatpush1.msra.mxu0 0.0
    %275 = vmatprep.subr.mxu0 0.0
    %276 = vmatpush1.msra.mxu0 0.0
    %277 = vmatprep.subr.mxu0 0.0
    %278 = vmatpush1.msra.mxu0 0.0
    %279 = vmatprep.subr.mxu0 0.0
    %280 = vmatpush1.msra.mxu0 0.0
    %281 = vmatprep.subr.mxu0 0.0
    %282 = vmatpush1.msra.mxu0 0.0
    %283 = vmatprep.subr.mxu0 0.0
    %284 = vmatpush1.msra.mxu0 0.0
    %285 = vmatprep.subr.mxu0 0.0
    %286 = vmatpush1.msra.mxu0 0.0
    %287 = vmatprep.subr.mxu0 0.0
    %288 = vmatpush1.msra.mxu0 0.0
    %289 = vmatprep.subr.mxu0 0.0
    %290 = vmatpush1.msra.mxu0 0.0
    %291 = vmatprep.subr.mxu0 0.0
    %292 = vmatpush1.msra.mxu0 0.0
    %293 = vmatprep.subr.mxu0 0.0
    %294 = vmatpush1.msra.mxu0 0.0
    %295 = vmatprep.subr.mxu0 0.0
    %296 = vmatpush1.msra.mxu0 0.0
    %297 = vmatprep.subr.mxu0 0.0
    %298 = vmatpush1.msra.mxu0 0.0
    %299 = vmatprep.subr.mxu0 0.0
    %300 = vmatpush1.msra.mxu0 0.0
    %301 = vmatprep.subr.mxu0 0.0
    %302 = vmatpush1.msra.mxu0 0.0
    %303 = vmatprep.subr.mxu0 0.0
    %304 = vmatpush1.msra.mxu0 0.0
    %305 = vmatprep.subr.mxu0 0.0
    %306 = vmatpush1.msra.mxu0 0.0
    %307 = vmatprep.subr.mxu0 0.0
    %308 = vmatpush1.msra.mxu0 0.0
    %309 = vmatprep.subr.mxu0 0.0
    %310 = vmatpush1.msra.mxu0 0.0
    %311 = vmatprep.subr.mxu0 0.0
    %312 = vmatpush1.msra.mxu0 0.0
    %313 = vmatprep.subr.mxu0 0.0
    %314 = vmatpush1.msra.mxu0 0.0
    %315 = vmatprep.subr.mxu0 0.0
    %316 = vmatpush1.msra.mxu0 0.0
    %317 = vmatprep.subr.mxu0 0.0
    %318 = vmatpush1.msra.mxu0 0.0
    %319 = vmatprep.subr.mxu0 0.0
    %320 = vmatpush1.msra.mxu0 0.0
    %321 = vmatprep.subr.mxu0 0.0
    %322 = vmatpush1.msra.mxu0 0.0
    %323 = vmatprep.subr.mxu0 0.0
    %324 = vmatpush1.msra.mxu0 0.0
    %325 = vmatprep.subr.mxu0 0.0
    %326 = vmatpush1.msra.mxu0 0.0
    %327 = vmatprep.subr.mxu0 0.0
    %328 = vmatpush1.msra.mxu0 0.0
    %329 = vmatprep.mubr.f32.mxu0 0.0
    %330 = vmatmul.mubr.f32.gmra.mrb[0].mxu0 %v260
    %v331 = vpop.f32.mrb[0].mxu0
    %v332 = vadd.f32 0.0, %v331
    %v333 = vpop.f32.mrb[0].mxu0
    %334 = vmatprep.mubr.f32.mxu0 0.0
    %335 = vmatmul.mubr.f32.gmra.mrb[0].mxu0 %v263
    %v336 = vpop.f32.mrb[0].mxu0
    %v337 = vadd.f32 0.0, %v336
    %v338 = vpop.f32.mrb[0].mxu0
    %339 = vdwg.mxu0
    %340 = vrot.lane.b32.xlu0 %v136, 120
    %v341 = vpop.permute.xlu0 %340
    %342 = vrot.lane.b32.xlu0 %v137, 120
    %v343 = vpop.permute.xlu0 %342
    %344 = vrot.lane.b32.xlu0 %v128, 88
    %v345 = vpop.permute.xlu0 %344
    %346 = vrot.lane.b32.xlu0 %v133, 88
    %v347 = vpop.permute.xlu0 %346
    %v348 = vsel %vm144, %v341, 0
    %v350 = vsel %vm144, %v343, 0
    %v352 = vsel %vm144, %v345, 0
    %v354 = vsel %vm144, %v347, 0
    %356 = vmatprep.subr.mxu0 0.0
    %357 = vmatpush1.xpose.msra.mxu0 %v352
    %358 = vmatprep.subr.mxu0 0.0
    %359 = vmatpush1.xpose.msra.mxu0 %v354
    %360 = vmatprep.subr.mxu0 0.0
    %361 = vmatpush1.xpose.msra.mxu0 0.0
    %362 = vmatprep.subr.mxu0 0.0
    %363 = vmatpush1.xpose.msra.mxu0 0.0
    %364 = vmatprep.subr.mxu0 0.0
    %365 = vmatpush1.xpose.msra.mxu0 0.0
    %366 = vmatprep.subr.mxu0 0.0
    %367 = vmatpush1.xpose.msra.mxu0 0.0
    %368 = vmatprep.subr.mxu0 0.0
    %369 = vmatpush1.xpose.msra.mxu0 0.0
    %370 = vmatprep.subr.mxu0 0.0
    %371 = vmatpush1.xpose.msra.mxu0 0.0
    %372 = vmatprep.subr.mxu0 0.0
    %373 = vmatpush1.xpose.msra.mxu0 0.0
    %374 = vmatprep.subr.mxu0 0.0
    %375 = vmatpush1.xpose.msra.mxu0 0.0
    %376 = vmatprep.subr.mxu0 0.0
    %377 = vmatpush1.xpose.msra.mxu0 0.0
    %378 = vmatprep.subr.mxu0 0.0
    %379 = vmatpush1.xpose.msra.mxu0 0.0
    %380 = vmatprep.subr.mxu0 0.0
    %381 = vmatpush1.xpose.msra.mxu0 0.0
    %382 = vmatprep.subr.mxu0 0.0
    %383 = vmatpush1.xpose.msra.mxu0 0.0
    %384 = vmatprep.subr.mxu0 0.0
    %385 = vmatpush1.xpose.msra.mxu0 0.0
    %386 = vmatprep.subr.mxu0 0.0
    %387 = vmatpush1.xpose.msra.mxu0 0.0
    %388 = vmatprep.subr.mxu0 0.0
    %389 = vmatpush1.xpose.msra.mxu0 0.0
    %390 = vmatprep.subr.mxu0 0.0
    %391 = vmatpush1.xpose.msra.mxu0 0.0
    %392 = vmatprep.subr.mxu0 0.0
    %393 = vmatpush1.xpose.msra.mxu0 0.0
    %394 = vmatprep.subr.mxu0 0.0
    %395 = vmatpush1.xpose.msra.mxu0 0.0
    %396 = vmatprep.subr.mxu0 0.0
    %397 = vmatpush1.xpose.msra.mxu0 0.0
    %398 = vmatprep.subr.mxu0 0.0
    %399 = vmatpush1.xpose.msra.mxu0 0.0
    %400 = vmatprep.subr.mxu0 0.0
    %401 = vmatpush1.xpose.msra.mxu0 0.0
    %402 = vmatprep.subr.mxu0 0.0
    %403 = vmatpush1.xpose.msra.mxu0 0.0
    %404 = vmatprep.subr.mxu0 0.0
    %405 = vmatpush1.xpose.msra.mxu0 0.0
    %406 = vmatprep.subr.mxu0 0.0
    %407 = vmatpush1.xpose.msra.mxu0 0.0
    %408 = vmatprep.subr.mxu0 0.0
    %409 = vmatpush1.xpose.msra.mxu0 0.0
    %410 = vmatprep.subr.mxu0 0.0
    %411 = vmatpush1.xpose.msra.mxu0 0.0
    %412 = vmatprep.subr.mxu0 0.0
    %413 = vmatpush1.xpose.msra.mxu0 0.0
    %414 = vmatprep.subr.mxu0 0.0
    %415 = vmatpush1.xpose.msra.mxu0 0.0
    %416 = vmatprep.subr.mxu0 0.0
    %417 = vmatpush1.xpose.msra.mxu0 0.0
    %418 = vmatprep.subr.mxu0 0.0
    %419 = vmatpush1.xpose.msra.mxu0 0.0
    %420 = vmatprep.mubr.f32.mxu0 0.0
    %421 = vmatmul.mubr.f32.gmra.mrb[0].mxu0 %v348
    %v422 = vpop.f32.mrb[0].mxu0
    %v423 = vadd.f32 %v20, %v422
    %v424 = vpop.f32.mrb[0].mxu0
    %425 = vmatprep.mubr.f32.mxu0 0.0
    %426 = vmatmul.mubr.f32.gmra.mrb[0].mxu0 %v350
    %v427 = vpop.f32.mrb[0].mxu0
    %v428 = vadd.f32 %v21, %v427
    %v429 = vpop.f32.mrb[0].mxu0
    %430 = vdwg.mxu0
    %v431 = vsel %vm230, %v423, -inf
    %432 = vmax.xlane.f32.xlu0 %v431
    %v433 = vpop.xlane.xlu0 %432
    %v434 = vsel %vm230, %v428, -inf
    %435 = vmax.xlane.f32.xlu0 %v434
    %v436 = vpop.xlane.xlu0 %435
    %v437 = vsub.f32 %v423, %v433
    %v438 = vsub.f32 %v428, %v436
    %v439 = vmul.f32 %v437, 1.442695
    %v440 = vpow.pop %v439
    %v441 = vmul.f32 %v438, 1.442695
    %v442 = vpow.pop %v441
    %v443 = vsel %vm230, %v440, 0.0
    %444 = vadd.xlane.f32.xlu0 %v443
    %v445 = vpop.xlane.xlu0 %444
    %v446 = vsel %vm230, %v442, 0.0
    %447 = vadd.xlane.f32.xlu0 %v446
    %v448 = vpop.xlane.xlu0 %447
    %v449 = vrcp.pop %v445
    %v450 = vmul.f32 %v440, %v449
    %v451 = vrcp.pop %v448
    %v452 = vmul.f32 %v442, %v451
    %453 = vrot.lane.b32.xlu0 %v128, 56
    %v454 = vpop.permute.xlu0 %453
    %455 = vrot.lane.b32.xlu0 %v133, 56
    %v456 = vpop.permute.xlu0 %455
    %v460 = vsel %vm230, %v450, 0
    %v463 = vsel %vm230, %v452, 0
    %465 = vmatprep.subr.mxu0 0.0
    %466 = vmatpush1.msra.mxu0 %v454
    %467 = vmatprep.subr.mxu0 0.0
    %468 = vmatpush1.msra.mxu0 %v456
    %469 = vmatprep.subr.mxu0 0.0
    %470 = vmatpush1.msra.mxu0 0.0
    %471 = vmatprep.subr.mxu0 0.0
    %472 = vmatpush1.msra.mxu0 0.0
    %473 = vmatprep.subr.mxu0 0.0
    %474 = vmatpush1.msra.mxu0 0.0
    %475 = vmatprep.subr.mxu0 0.0
    %476 = vmatpush1.msra.mxu0 0.0
    %477 = vmatprep.subr.mxu0 0.0
    %478 = vmatpush1.msra.mxu0 0.0
    %479 = vmatprep.subr.mxu0 0.0
    %480 = vmatpush1.msra.mxu0 0.0
    %481 = vmatprep.subr.mxu0 0.0
    %482 = vmatpush1.msra.mxu0 0.0
    %483 = vmatprep.subr.mxu0 0.0
    %484 = vmatpush1.msra.mxu0 0.0
    %485 = vmatprep.subr.mxu0 0.0
    %486 = vmatpush1.msra.mxu0 0.0
    %487 = vmatprep.subr.mxu0 0.0
    %488 = vmatpush1.msra.mxu0 0.0
    %489 = vmatprep.subr.mxu0 0.0
    %490 = vmatpush1.msra.mxu0 0.0
    %491 = vmatprep.subr.mxu0 0.0
    %492 = vmatpush1.msra.mxu0 0.0
    %493 = vmatprep.subr.mxu0 0.0
    %494 = vmatpush1.msra.mxu0 0.0
    %495 = vmatprep.subr.mxu0 0.0
    %496 = vmatpush1.msra.mxu0 0.0
    %497 = vmatprep.subr.mxu0 0.0
    %498 = vmatpush1.msra.mxu0 0.0
    %499 = vmatprep.subr.mxu0 0.0
    %500 = vmatpush1.msra.mxu0 0.0
    %501 = vmatprep.subr.mxu0 0.0
    %502 = vmatpush1.msra.mxu0 0.0
    %503 = vmatprep.subr.mxu0 0.0
    %504 = vmatpush1.msra.mxu0 0.0
    %505 = vmatprep.subr.mxu0 0.0
    %506 = vmatpush1.msra.mxu0 0.0
    %507 = vmatprep.subr.mxu0 0.0
    %508 = vmatpush1.msra.mxu0 0.0
    %509 = vmatprep.subr.mxu0 0.0
    %510 = vmatpush1.msra.mxu0 0.0
    %511 = vmatprep.subr.mxu0 0.0
    %512 = vmatpush1.msra.mxu0 0.0
    %513 = vmatprep.subr.mxu0 0.0
    %514 = vmatpush1.msra.mxu0 0.0
    %515 = vmatprep.subr.mxu0 0.0
    %516 = vmatpush1.msra.mxu0 0.0
    %517 = vmatprep.subr.mxu0 0.0
    %518 = vmatpush1.msra.mxu0 0.0
    %519 = vmatprep.subr.mxu0 0.0
    %520 = vmatpush1.msra.mxu0 0.0
    %521 = vmatprep.subr.mxu0 0.0
    %522 = vmatpush1.msra.mxu0 0.0
    %523 = vmatprep.subr.mxu0 0.0
    %524 = vmatpush1.msra.mxu0 0.0
    %525 = vmatprep.subr.mxu0 0.0
    %526 = vmatpush1.msra.mxu0 0.0
    %527 = vmatprep.subr.mxu0 0.0
    %528 = vmatpush1.msra.mxu0 0.0
    %529 = vmatprep.mubr.f32.mxu0 0.0
    %530 = vmatmul.mubr.f32.gmra.mrb[0].mxu0 %v460
    %v531 = vpop.f32.mrb[0].mxu0
    %v532 = vadd.f32 0.0, %v531
    %v533 = vpop.f32.mrb[0].mxu0
    %534 = vmatprep.mubr.f32.mxu0 0.0
    %535 = vmatmul.mubr.f32.gmra.mrb[0].mxu0 %v463
    %v536 = vpop.f32.mrb[0].mxu0
    %v537 = vadd.f32 0.0, %v536
    %v538 = vpop.f32.mrb[0].mxu0
    %539 = vdwg.mxu0
    %540 = vrot.lane.b32.xlu0 %v136, 112
    %v541 = vpop.permute.xlu0 %540
    %542 = vrot.lane.b32.xlu0 %v137, 112
    %v543 = vpop.permute.xlu0 %542
    %544 = vrot.lane.b32.xlu0 %v128, 80
    %v545 = vpop.permute.xlu0 %544
    %546 = vrot.lane.b32.xlu0 %v133, 80
    %v547 = vpop.permute.xlu0 %546
    %v548 = vsel %vm144, %v541, 0
    %v550 = vsel %vm144, %v543, 0
    %v552 = vsel %vm144, %v545, 0
    %v554 = vsel %vm144, %v547, 0
    %556 = vmatprep.subr.mxu0 0.0
    %557 = vmatpush1.xpose.msra.mxu0 %v552
    %558 = vmatprep.subr.mxu0 0.0
    %559 = vmatpush1.xpose.msra.mxu0 %v554
    %560 = vmatprep.subr.mxu0 0.0
    %561 = vmatpush1.xpose.msra.mxu0 0.0
    %562 = vmatprep.subr.mxu0 0.0
    %563 = vmatpush1.xpose.msra.mxu0 0.0
    %564 = vmatprep.subr.mxu0 0.0
    %565 = vmatpush1.xpose.msra.mxu0 0.0
    %566 = vmatprep.subr.mxu0 0.0
    %567 = vmatpush1.xpose.msra.mxu0 0.0
    %568 = vmatprep.subr.mxu0 0.0
    %569 = vmatpush1.xpose.msra.mxu0 0.0
    %570 = vmatprep.subr.mxu0 0.0
    %571 = vmatpush1.xpose.msra.mxu0 0.0
    %572 = vmatprep.subr.mxu0 0.0
    %573 = vmatpush1.xpose.msra.mxu0 0.0
    %574 = vmatprep.subr.mxu0 0.0
    %575 = vmatpush1.xpose.msra.mxu0 0.0
    %576 = vmatprep.subr.mxu0 0.0
    %577 = vmatpush1.xpose.msra.mxu0 0.0
    %578 = vmatprep.subr.mxu0 0.0
    %579 = vmatpush1.xpose.msra.mxu0 0.0
    %580 = vmatprep.subr.mxu0 0.0
    %581 = vmatpush1.xpose.msra.mxu0 0.0
    %582 = vmatprep.subr.mxu0 0.0
    %583 = vmatpush1.xpose.msra.mxu0 0.0
    %584 = vmatprep.subr.mxu0 0.0
    %585 = vmatpush1.xpose.msra.mxu0 0.0
    %586 = vmatprep.subr.mxu0 0.0
    %587 = vmatpush1.xpose.msra.mxu0 0.0
    %588 = vmatprep.subr.mxu0 0.0
    %589 = vmatpush1.xpose.msra.mxu0 0.0
    %590 = vmatprep.subr.mxu0 0.0
    %591 = vmatpush1.xpose.msra.mxu0 0.0
    %592 = vmatprep.subr.mxu0 0.0
    %593 = vmatpush1.xpose.msra.mxu0 0.0
    %594 = vmatprep.subr.mxu0 0.0
    %595 = vmatpush1.xpose.msra.mxu0 0.0
    %596 = vmatprep.subr.mxu0 0.0
    %597 = vmatpush1.xpose.msra.mxu0 0.0
    %598 = vmatprep.subr.mxu0 0.0
    %599 = vmatpush1.xpose.msra.mxu0 0.0
    %600 = vmatprep.subr.mxu0 0.0
    %601 = vmatpush1.xpose.msra.mxu0 0.0
    %602 = vmatprep.subr.mxu0 0.0
    %603 = vmatpush1.xpose.msra.mxu0 0.0
    %604 = vmatprep.subr.mxu0 0.0
    %605 = vmatpush1.xpose.msra.mxu0 0.0
    %606 = vmatprep.subr.mxu0 0.0
    %607 = vmatpush1.xpose.msra.mxu0 0.0
    %608 = vmatprep.subr.mxu0 0.0
    %609 = vmatpush1.xpose.msra.mxu0 0.0
    %610 = vmatprep.subr.mxu0 0.0
    %611 = vmatpush1.xpose.msra.mxu0 0.0
    %612 = vmatprep.subr.mxu0 0.0
    %613 = vmatpush1.xpose.msra.mxu0 0.0
    %614 = vmatprep.subr.mxu0 0.0
    %615 = vmatpush1.xpose.msra.mxu0 0.0
    %616 = vmatprep.subr.mxu0 0.0
    %617 = vmatpush1.xpose.msra.mxu0 0.0
    %618 = vmatprep.subr.mxu0 0.0
    %619 = vmatpush1.xpose.msra.mxu0 0.0
    %620 = vmatprep.mubr.f32.mxu0 0.0
    %621 = vmatmul.mubr.f32.gmra.mrb[0].mxu0 %v548
    %v622 = vpop.f32.mrb[0].mxu0
    %v623 = vadd.f32 %v20, %v622
    %v624 = vpop.f32.mrb[0].mxu0
    %625 = vmatprep.mubr.f32.mxu0 0.0
    %626 = vmatmul.mubr.f32.gmra.mrb[0].mxu0 %v550
    %v627 = vpop.f32.mrb[0].mxu0
    %v628 = vadd.f32 %v21, %v627
    %v629 = vpop.f32.mrb[0].mxu0
    %630 = vdwg.mxu0
    %v631 = vsel %vm230, %v623, -inf
    %632 = vmax.xlane.f32.xlu0 %v631
    %v633 = vpop.xlane.xlu0 %632
    %v634 = vsel %vm230, %v628, -inf
    %635 = vmax.xlane.f32.xlu0 %v634
    %v636 = vpop.xlane.xlu0 %635
    %v637 = vsub.f32 %v623, %v633
    %v638 = vsub.f32 %v628, %v636
    %v639 = vmul.f32 %v637, 1.442695
    %v640 = vpow.pop %v639
    %v641 = vmul.f32 %v638, 1.442695
    %v642 = vpow.pop %v641
    %v643 = vsel %vm230, %v640, 0.0
    %644 = vadd.xlane.f32.xlu0 %v643
    %v645 = vpop.xlane.xlu0 %644
    %v646 = vsel %vm230, %v642, 0.0
    %647 = vadd.xlane.f32.xlu0 %v646
    %v648 = vpop.xlane.xlu0 %647
    %v649 = vrcp.pop %v645
    %v650 = vmul.f32 %v640, %v649
    %v651 = vrcp.pop %v648
    %v652 = vmul.f32 %v642, %v651
    %653 = vrot.lane.b32.xlu0 %v128, 48
    %v654 = vpop.permute.xlu0 %653
    %655 = vrot.lane.b32.xlu0 %v133, 48
    %v656 = vpop.permute.xlu0 %655
    %v660 = vsel %vm230, %v650, 0
    %v663 = vsel %vm230, %v652, 0
    %665 = vmatprep.subr.mxu0 0.0
    %666 = vmatpush1.msra.mxu0 %v654
    %667 = vmatprep.subr.mxu0 0.0
    %668 = vmatpush1.msra.mxu0 %v656
    %669 = vmatprep.subr.mxu0 0.0
    %670 = vmatpush1.msra.mxu0 0.0
    %671 = vmatprep.subr.mxu0 0.0
    %672 = vmatpush1.msra.mxu0 0.0
    %673 = vmatprep.subr.mxu0 0.0
    %674 = vmatpush1.msra.mxu0 0.0
    %675 = vmatprep.subr.mxu0 0.0
    %676 = vmatpush1.msra.mxu0 0.0
    %677 = vmatprep.subr.mxu0 0.0
    %678 = vmatpush1.msra.mxu0 0.0
    %679 = vmatprep.subr.mxu0 0.0
    %680 = vmatpush1.msra.mxu0 0.0
    %681 = vmatprep.subr.mxu0 0.0
    %682 = vmatpush1.msra.mxu0 0.0
    %683 = vmatprep.subr.mxu0 0.0
    %684 = vmatpush1.msra.mxu0 0.0
    %685 = vmatprep.subr.mxu0 0.0
    %686 = vmatpush1.msra.mxu0 0.0
    %687 = vmatprep.subr.mxu0 0.0
    %688 = vmatpush1.msra.mxu0 0.0
    %689 = vmatprep.subr.mxu0 0.0
    %690 = vmatpush1.msra.mxu0 0.0
    %691 = vmatprep.subr.mxu0 0.0
    %692 = vmatpush1.msra.mxu0 0.0
    %693 = vmatprep.subr.mxu0 0.0
    %694 = vmatpush1.msra.mxu0 0.0
    %695 = vmatprep.subr.mxu0 0.0
    %696 = vmatpush1.msra.mxu0 0.0
    %697 = vmatprep.subr.mxu0 0.0
    %698 = vmatpush1.msra.mxu0 0.0
    %699 = vmatprep.subr.mxu0 0.0
    %700 = vmatpush1.msra.mxu0 0.0
    %701 = vmatprep.subr.mxu0 0.0
    %702 = vmatpush1.msra.mxu0 0.0
    %703 = vmatprep.subr.mxu0 0.0
    %704 = vmatpush1.msra.mxu0 0.0
    %705 = vmatprep.subr.mxu0 0.0
    %706 = vmatpush1.msra.mxu0 0.0
    %707 = vmatprep.subr.mxu0 0.0
    %708 = vmatpush1.msra.mxu0 0.0
    %709 = vmatprep.subr.mxu0 0.0
    %710 = vmatpush1.msra.mxu0 0.0
    %711 = vmatprep.subr.mxu0 0.0
    %712 = vmatpush1.msra.mxu0 0.0
    %713 = vmatprep.subr.mxu0 0.0
    %714 = vmatpush1.msra.mxu0 0.0
    %715 = vmatprep.subr.mxu0 0.0
    %716 = vmatpush1.msra.mxu0 0.0
    %717 = vmatprep.subr.mxu0 0.0
    %718 = vmatpush1.msra.mxu0 0.0
    %719 = vmatprep.subr.mxu0 0.0
    %720 = vmatpush1.msra.mxu0 0.0
    %721 = vmatprep.subr.mxu0 0.0
    %722 = vmatpush1.msra.mxu0 0.0
    %723 = vmatprep.subr.mxu0 0.0
    %724 = vmatpush1.msra.mxu0 0.0
    %725 = vmatprep.subr.mxu0 0.0
    %726 = vmatpush1.msra.mxu0 0.0
    %727 = vmatprep.subr.mxu0 0.0
    %728 = vmatpush1.msra.mxu0 0.0
    %729 = vmatprep.mubr.f32.mxu0 0.0
    %730 = vmatmul.mubr.f32.gmra.mrb[0].mxu0 %v660
    %v731 = vpop.f32.mrb[0].mxu0
    %v732 = vadd.f32 0.0, %v731
    %v733 = vpop.f32.mrb[0].mxu0
    %734 = vmatprep.mubr.f32.mxu0 0.0
    %735 = vmatmul.mubr.f32.gmra.mrb[0].mxu0 %v663
    %v736 = vpop.f32.mrb[0].mxu0
    %v737 = vadd.f32 0.0, %v736
    %v738 = vpop.f32.mrb[0].mxu0
    %739 = vdwg.mxu0
    %740 = vrot.lane.b32.xlu0 %v136, 104
    %v741 = vpop.permute.xlu0 %740
    %742 = vrot.lane.b32.xlu0 %v137, 104
    %v743 = vpop.permute.xlu0 %742
    %744 = vrot.lane.b32.xlu0 %v128, 72
    %v745 = vpop.permute.xlu0 %744
    %746 = vrot.lane.b32.xlu0 %v133, 72
    %v747 = vpop.permute.xlu0 %746
    %v748 = vsel %vm144, %v741, 0
    %v750 = vsel %vm144, %v743, 0
    %v752 = vsel %vm144, %v745, 0
    %v754 = vsel %vm144, %v747, 0
    %756 = vmatprep.subr.mxu0 0.0
    %757 = vmatpush1.xpose.msra.mxu0 %v752
    %758 = vmatprep.subr.mxu0 0.0
    %759 = vmatpush1.xpose.msra.mxu0 %v754
    %760 = vmatprep.subr.mxu0 0.0
    %761 = vmatpush1.xpose.msra.mxu0 0.0
    %762 = vmatprep.subr.mxu0 0.0
    %763 = vmatpush1.xpose.msra.mxu0 0.0
    %764 = vmatprep.subr.mxu0 0.0
    %765 = vmatpush1.xpose.msra.mxu0 0.0
    %766 = vmatprep.subr.mxu0 0.0
    %767 = vmatpush1.xpose.msra.mxu0 0.0
    %768 = vmatprep.subr.mxu0 0.0
    %769 = vmatpush1.xpose.msra.mxu0 0.0
    %770 = vmatprep.subr.mxu0 0.0
    %771 = vmatpush1.xpose.msra.mxu0 0.0
    %772 = vmatprep.subr.mxu0 0.0
    %773 = vmatpush1.xpose.msra.mxu0 0.0
    %774 = vmatprep.subr.mxu0 0.0
    %775 = vmatpush1.xpose.msra.mxu0 0.0
    %776 = vmatprep.subr.mxu0 0.0
    %777 = vmatpush1.xpose.msra.mxu0 0.0
    %778 = vmatprep.subr.mxu0 0.0
    %779 = vmatpush1.xpose.msra.mxu0 0.0
    %780 = vmatprep.subr.mxu0 0.0
    %781 = vmatpush1.xpose.msra.mxu0 0.0
    %782 = vmatprep.subr.mxu0 0.0
    %783 = vmatpush1.xpose.msra.mxu0 0.0
    %784 = vmatprep.subr.mxu0 0.0
    %785 = vmatpush1.xpose.msra.mxu0 0.0
    %786 = vmatprep.subr.mxu0 0.0
    %787 = vmatpush1.xpose.msra.mxu0 0.0
    %788 = vmatprep.subr.mxu0 0.0
    %789 = vmatpush1.xpose.msra.mxu0 0.0
    %790 = vmatprep.subr.mxu0 0.0
    %791 = vmatpush1.xpose.msra.mxu0 0.0
    %792 = vmatprep.subr.mxu0 0.0
    %793 = vmatpush1.xpose.msra.mxu0 0.0
    %794 = vmatprep.subr.mxu0 0.0
    %795 = vmatpush1.xpose.msra.mxu0 0.0
    %796 = vmatprep.subr.mxu0 0.0
    %797 = vmatpush1.xpose.msra.mxu0 0.0
    %798 = vmatprep.subr.mxu0 0.0
    %799 = vmatpush1.xpose.msra.mxu0 0.0
    %800 = vmatprep.subr.mxu0 0.0
    %801 = vmatpush1.xpose.msra.mxu0 0.0
    %802 = vmatprep.subr.mxu0 0.0
    %803 = vmatpush1.xpose.msra.mxu0 0.0
    %804 = vmatprep.subr.mxu0 0.0
    %805 = vmatpush1.xpose.msra.mxu0 0.0
    %806 = vmatprep.subr.mxu0 0.0
    %807 = vmatpush1.xpose.msra.mxu0 0.0
    %808 = vmatprep.subr.mxu0 0.0
    %809 = vmatpush1.xpose.msra.mxu0 0.0
    %810 = vmatprep.subr.mxu0 0.0
    %811 = vmatpush1.xpose.msra.mxu0 0.0
    %812 = vmatprep.subr.mxu0 0.0
    %813 = vmatpush1.xpose.msra.mxu0 0.0
    %814 = vmatprep.subr.mxu0 0.0
    %815 = vmatpush1.xpose.msra.mxu0 0.0
    %816 = vmatprep.subr.mxu0 0.0
    %817 = vmatpush1.xpose.msra.mxu0 0.0
    %818 = vmatprep.subr.mxu0 0.0
    %819 = vmatpush1.xpose.msra.mxu0 0.0
    %820 = vmatprep.mubr.f32.mxu0 0.0
    %821 = vmatmul.mubr.f32.gmra.mrb[0].mxu0 %v748
    %v822 = vpop.f32.mrb[0].mxu0
    %v823 = vadd.f32 %v20, %v822
    %v824 = vpop.f32.mrb[0].mxu0
    %825 = vmatprep.mubr.f32.mxu0 0.0
    %826 = vmatmul.mubr.f32.gmra.mrb[0].mxu0 %v750
    %v827 = vpop.f32.mrb[0].mxu0
    %v828 = vadd.f32 %v21, %v827
    %v829 = vpop.f32.mrb[0].mxu0
    %830 = vdwg.mxu0
    %v831 = vsel %vm230, %v823, -inf
    %832 = vmax.xlane.f32.xlu0 %v831
    %v833 = vpop.xlane.xlu0 %832
    %v834 = vsel %vm230, %v828, -inf
    %835 = vmax.xlane.f32.xlu0 %v834
    %v836 = vpop.xlane.xlu0 %835
    %v837 = vsub.f32 %v823, %v833
    %v838 = vsub.f32 %v828, %v836
    %v839 = vmul.f32 %v837, 1.442695
    %v840 = vpow.pop %v839
    %v841 = vmul.f32 %v838, 1.442695
    %v842 = vpow.pop %v841
    %v843 = vsel %vm230, %v840, 0.0
    %844 = vadd.xlane.f32.xlu0 %v843
    %v845 = vpop.xlane.xlu0 %844
    %v846 = vsel %vm230, %v842, 0.0
    %847 = vadd.xlane.f32.xlu0 %v846
    %v848 = vpop.xlane.xlu0 %847
    %v849 = vrcp.pop %v845
    %v850 = vmul.f32 %v840, %v849
    %v851 = vrcp.pop %v848
    %v852 = vmul.f32 %v842, %v851
    %853 = vrot.lane.b32.xlu0 %v128, 40
    %v854 = vpop.permute.xlu0 %853
    %855 = vrot.lane.b32.xlu0 %v133, 40
    %v856 = vpop.permute.xlu0 %855
    %v860 = vsel %vm230, %v850, 0
    %v863 = vsel %vm230, %v852, 0
    %865 = vmatprep.subr.mxu0 0.0
    %866 = vmatpush1.msra.mxu0 %v854
    %867 = vmatprep.subr.mxu0 0.0
    %868 = vmatpush1.msra.mxu0 %v856
    %869 = vmatprep.subr.mxu0 0.0
    %870 = vmatpush1.msra.mxu0 0.0
    %871 = vmatprep.subr.mxu0 0.0
    %872 = vmatpush1.msra.mxu0 0.0
    %873 = vmatprep.subr.mxu0 0.0
    %874 = vmatpush1.msra.mxu0 0.0
    %875 = vmatprep.subr.mxu0 0.0
    %876 = vmatpush1.msra.mxu0 0.0
    %877 = vmatprep.subr.mxu0 0.0
    %878 = vmatpush1.msra.mxu0 0.0
    %879 = vmatprep.subr.mxu0 0.0
    %880 = vmatpush1.msra.mxu0 0.0
    %881 = vmatprep.subr.mxu0 0.0
    %882 = vmatpush1.msra.mxu0 0.0
    %883 = vmatprep.subr.mxu0 0.0
    %884 = vmatpush1.msra.mxu0 0.0
    %885 = vmatprep.subr.mxu0 0.0
    %886 = vmatpush1.msra.mxu0 0.0
    %887 = vmatprep.subr.mxu0 0.0
    %888 = vmatpush1.msra.mxu0 0.0
    %889 = vmatprep.subr.mxu0 0.0
    %890 = vmatpush1.msra.mxu0 0.0
    %891 = vmatprep.subr.mxu0 0.0
    %892 = vmatpush1.msra.mxu0 0.0
    %893 = vmatprep.subr.mxu0 0.0
    %894 = vmatpush1.msra.mxu0 0.0
    %895 = vmatprep.subr.mxu0 0.0
    %896 = vmatpush1.msra.mxu0 0.0
    %897 = vmatprep.subr.mxu0 0.0
    %898 = vmatpush1.msra.mxu0 0.0
    %899 = vmatprep.subr.mxu0 0.0
    %900 = vmatpush1.msra.mxu0 0.0
    %901 = vmatprep.subr.mxu0 0.0
    %902 = vmatpush1.msra.mxu0 0.0
    %903 = vmatprep.subr.mxu0 0.0
    %904 = vmatpush1.msra.mxu0 0.0
    %905 = vmatprep.subr.mxu0 0.0
    %906 = vmatpush1.msra.mxu0 0.0
    %907 = vmatprep.subr.mxu0 0.0
    %908 = vmatpush1.msra.mxu0 0.0
    %909 = vmatprep.subr.mxu0 0.0
    %910 = vmatpush1.msra.mxu0 0.0
    %911 = vmatprep.subr.mxu0 0.0
    %912 = vmatpush1.msra.mxu0 0.0
    %913 = vmatprep.subr.mxu0 0.0
    %914 = vmatpush1.msra.mxu0 0.0
    %915 = vmatprep.subr.mxu0 0.0
    %916 = vmatpush1.msra.mxu0 0.0
    %917 = vmatprep.subr.mxu0 0.0
    %918 = vmatpush1.msra.mxu0 0.0
    %919 = vmatprep.subr.mxu0 0.0
    %920 = vmatpush1.msra.mxu0 0.0
    %921 = vmatprep.subr.mxu0 0.0
    %922 = vmatpush1.msra.mxu0 0.0
    %923 = vmatprep.subr.mxu0 0.0
    %924 = vmatpush1.msra.mxu0 0.0
    %925 = vmatprep.subr.mxu0 0.0
    %926 = vmatpush1.msra.mxu0 0.0
    %927 = vmatprep.subr.mxu0 0.0
    %928 = vmatpush1.msra.mxu0 0.0
    %929 = vmatprep.mubr.f32.mxu0 0.0
    %930 = vmatmul.mubr.f32.gmra.mrb[0].mxu0 %v860
    %v931 = vpop.f32.mrb[0].mxu0
    %v932 = vadd.f32 0.0, %v931
    %v933 = vpop.f32.mrb[0].mxu0
    %934 = vmatprep.mubr.f32.mxu0 0.0
    %935 = vmatmul.mubr.f32.gmra.mrb[0].mxu0 %v863
    %v936 = vpop.f32.mrb[0].mxu0
    %v937 = vadd.f32 0.0, %v936
    %v938 = vpop.f32.mrb[0].mxu0
    %939 = vdwg.mxu0
    %942 = vrot.lane.b32.xlu0 %v532, 8
    %v943 = vpop.permute.xlu0 %942
    %944 = vrot.lane.b32.xlu0 %v537, 8
    %v945 = vpop.permute.xlu0 %944
    %950 = vrot.lane.b32.xlu0 %v732, 16
    %v951 = vpop.permute.xlu0 %950
    %952 = vrot.lane.b32.xlu0 %v737, 16
    %v953 = vpop.permute.xlu0 %952
    %958 = vrot.lane.b32.xlu0 %v932, 24
    %v959 = vpop.permute.xlu0 %958
    %960 = vrot.lane.b32.xlu0 %v937, 24
    %v961 = vpop.permute.xlu0 %960
    %v964 = vsel %vm144, %v332, %v943
    %v965 = vsel %vm144, %v337, %v945
    %v966 = vsel %vm230, %v964, %v951
    %v967 = vsel %vm230, %v965, %v953
    %vm968 = vcmask 195584
    %v969 = vsel %vm968, %v966, %v959
    %v970 = vsel %vm968, %v967, %v961
    %v971 = vlaneseq
    %v972 = vshrl.u32 %v971, 7
    %v973 = vsub.s32 0, %v972
    %v974 = vrot.slane %v43, %v973
    %v976 = vsel %vm54, %v969, 0
    %v979 = vsel %vm54, %v970, 0
    %981 = vmatprep.subr.mxu0 0.0
    %982 = vmatpush1.msra.mxu0 %v26
    %983 = vmatprep.subr.mxu0 0.0
    %984 = vmatpush1.msra.mxu0 %v27
    %985 = vmatprep.subr.mxu0 0.0
    %986 = vmatpush1.msra.mxu0 %v28
    %987 = vmatprep.subr.mxu0 0.0
    %988 = vmatpush1.msra.mxu0 %v29
    %989 = vmatprep.subr.mxu0 0.0
    %990 = vmatpush1.msra.mxu0 0.0
    %991 = vmatprep.subr.mxu0 0.0
    %992 = vmatpush1.msra.mxu0 0.0
    %993 = vmatprep.subr.mxu0 0.0
    %994 = vmatpush1.msra.mxu0 0.0
    %995 = vmatprep.subr.mxu0 0.0
    %996 = vmatpush1.msra.mxu0 0.0
    %997 = vmatprep.subr.mxu0 0.0
    %998 = vmatpush1.msra.mxu0 0.0
    %999 = vmatprep.subr.mxu0 0.0
    %1000 = vmatpush1.msra.mxu0 0.0
    %1001 = vmatprep.subr.mxu0 0.0
    %1002 = vmatpush1.msra.mxu0 0.0
    %1003 = vmatprep.subr.mxu0 0.0
    %1004 = vmatpush1.msra.mxu0 0.0
    %1005 = vmatprep.subr.mxu0 0.0
    %1006 = vmatpush1.msra.mxu0 0.0
    %1007 = vmatprep.subr.mxu0 0.0
    %1008 = vmatpush1.msra.mxu0 0.0
    %1009 = vmatprep.subr.mxu0 0.0
    %1010 = vmatpush1.msra.mxu0 0.0
    %1011 = vmatprep.subr.mxu0 0.0
    %1012 = vmatpush1.msra.mxu0 0.0
    %1013 = vmatprep.subr.mxu0 0.0
    %1014 = vmatpush1.msra.mxu0 0.0
    %1015 = vmatprep.subr.mxu0 0.0
    %1016 = vmatpush1.msra.mxu0 0.0
    %1017 = vmatprep.subr.mxu0 0.0
    %1018 = vmatpush1.msra.mxu0 0.0
    %1019 = vmatprep.subr.mxu0 0.0
    %1020 = vmatpush1.msra.mxu0 0.0
    %1021 = vmatprep.subr.mxu0 0.0
    %1022 = vmatpush1.msra.mxu0 0.0
    %1023 = vmatprep.subr.mxu0 0.0
    %1024 = vmatpush1.msra.mxu0 0.0
    %1025 = vmatprep.subr.mxu0 0.0
    %1026 = vmatpush1.msra.mxu0 0.0
    %1027 = vmatprep.subr.mxu0 0.0
    %1028 = vmatpush1.msra.mxu0 0.0
    %1029 = vmatprep.subr.mxu0 0.0
    %1030 = vmatpush1.msra.mxu0 0.0
    %1031 = vmatprep.subr.mxu0 0.0
    %1032 = vmatpush1.msra.mxu0 0.0
    %1033 = vmatprep.subr.mxu0 0.0
    %1034 = vmatpush1.msra.mxu0 0.0
    %1035 = vmatprep.subr.mxu0 0.0
    %1036 = vmatpush1.msra.mxu0 0.0
    %1037 = vmatprep.subr.mxu0 0.0
    %1038 = vmatpush1.msra.mxu0 0.0
    %1039 = vmatprep.subr.mxu0 0.0
    %1040 = vmatpush1.msra.mxu0 0.0
    %1041 = vmatprep.subr.mxu0 0.0
    %1042 = vmatpush1.msra.mxu0 0.0
    %1043 = vmatprep.subr.mxu0 0.0
    %1044 = vmatpush1.msra.mxu0 0.0
    %1045 = vmatprep.mubr.f32.mxu0 0.0
    %1046 = vmatmul.mubr.f32.gmra.mrb[0].mxu0 %v976
    %v1047 = vpop.f32.mrb[0].mxu0
    %v1048 = vadd.f32 %v974, %v1047
    %v1049 = vpop.f32.mrb[0].mxu0
    %1050 = vmatprep.mubr.f32.mxu0 0.0
    %1051 = vmatmul.mubr.f32.gmra.mrb[0].mxu0 %v979
    %v1052 = vpop.f32.mrb[0].mxu0
    %v1053 = vadd.f32 %v974, %v1052
    %v1054 = vpop.f32.mrb[0].mxu0
    %1055 = vdwg.mxu0
    %v1056 = vadd.f32 %v18, %v1048
    %v1057 = vadd.f32 %v19, %v1053
    %v1058 = vsel %vm54, %v1056, 0.0
    %1059 = vadd.xlane.f32.xlu0 %v1058
    %v1060 = vpop.xlane.xlu0 %1059
    %v1061 = vsel %vm54, %v1057, 0.0
    %1062 = vadd.xlane.f32.xlu0 %v1061
    %v1063 = vpop.xlane.xlu0 %1062
    %v1064 = vrcp.pop 32.0
    %v1065 = vmul.f32 %v1060, %v1064
    %v1066 = vmul.f32 %v1063, %v1064
    %v1067 = vsub.f32 %v1056, %v1065
    %v1068 = vsub.f32 %v1057, %v1066
    %v1069 = vmul.f32 %v1067, %v1067
    %v1070 = vmul.f32 %v1068, %v1068
    %v1071 = vsel %vm54, %v1069, 0.0
    %1072 = vadd.xlane.f32.xlu0 %v1071
    %v1073 = vpop.xlane.xlu0 %1072
    %v1074 = vsel %vm54, %v1070, 0.0
    %1075 = vadd.xlane.f32.xlu0 %v1074
    %v1076 = vpop.xlane.xlu0 %1075
    %v1077 = vmul.f32 %v1073, %v1064
    %v1078 = vmul.f32 %v1076, %v1064
    %v1079 = vadd.f32 %v1077, 1e-05
    %v1080 = vadd.f32 %v1078, 1e-05
    %v1081 = vrsqrt.pop %v1079
    %v1082 = vrsqrt.pop %v1080
    %v1083 = vmul.f32 %v1067, %v1081
    %v1084 = vmul.f32 %v1068, %v1082
    %v1085 = vlaneseq
    %v1086 = vshrl.u32 %v1085, 7
    %v1087 = vsub.s32 0, %v1086
    %v1088 = vrot.slane %v46, %v1087
    %v1089 = vmul.f32 %v1083, %v1088
    %v1090 = vmul.f32 %v1084, %v1088
    %v1091 = vlaneseq
    %v1092 = vshrl.u32 %v1091, 7
    %v1093 = vsub.s32 0, %v1092
    %v1094 = vrot.slane %v47, %v1093
    %v1095 = vadd.f32 %v1089, %v1094
    %v1096 = vadd.f32 %v1090, %v1094
    %v1097 = vlaneseq
    %v1098 = vshrl.u32 %v1097, 7
    %v1099 = vsub.s32 0, %v1098
    %v1100 = vrot.slane %v44, %v1099
    %v1102 = vsel %vm54, %v1095, 0
    %v1105 = vsel %vm54, %v1096, 0
    %1107 = vmatprep.subr.mxu0 0.0
    %1108 = vmatpush1.msra.mxu0 %v30
    %1109 = vmatprep.subr.mxu0 0.0
    %1110 = vmatpush1.msra.mxu0 %v31
    %1111 = vmatprep.subr.mxu0 0.0
    %1112 = vmatpush1.msra.mxu0 %v32
    %1113 = vmatprep.subr.mxu0 0.0
    %1114 = vmatpush1.msra.mxu0 %v33
    %1115 = vmatprep.subr.mxu0 0.0
    %1116 = vmatpush1.msra.mxu0 0.0
    %1117 = vmatprep.subr.mxu0 0.0
    %1118 = vmatpush1.msra.mxu0 0.0
    %1119 = vmatprep.subr.mxu0 0.0
    %1120 = vmatpush1.msra.mxu0 0.0
    %1121 = vmatprep.subr.mxu0 0.0
    %1122 = vmatpush1.msra.mxu0 0.0
    %1123 = vmatprep.subr.mxu0 0.0
    %1124 = vmatpush1.msra.mxu0 0.0
    %1125 = vmatprep.subr.mxu0 0.0
    %1126 = vmatpush1.msra.mxu0 0.0
    %1127 = vmatprep.subr.mxu0 0.0
    %1128 = vmatpush1.msra.mxu0 0.0
    %1129 = vmatprep.subr.mxu0 0.0
    %1130 = vmatpush1.msra.mxu0 0.0
    %1131 = vmatprep.subr.mxu0 0.0
    %1132 = vmatpush1.msra.mxu0 0.0
    %1133 = vmatprep.subr.mxu0 0.0
    %1134 = vmatpush1.msra.mxu0 0.0
    %1135 = vmatprep.subr.mxu0 0.0
    %1136 = vmatpush1.msra.mxu0 0.0
    %1137 = vmatprep.subr.mxu0 0.0
    %1138 = vmatpush1.msra.mxu0 0.0
    %1139 = vmatprep.subr.mxu0 0.0
    %1140 = vmatpush1.msra.mxu0 0.0
    %1141 = vmatprep.subr.mxu0 0.0
    %1142 = vmatpush1.msra.mxu0 0.0
    %1143 = vmatprep.subr.mxu0 0.0
    %1144 = vmatpush1.msra.mxu0 0.0
    %1145 = vmatprep.subr.mxu0 0.0
    %1146 = vmatpush1.msra.mxu0 0.0
    %1147 = vmatprep.subr.mxu0 0.0
    %1148 = vmatpush1.msra.mxu0 0.0
    %1149 = vmatprep.subr.mxu0 0.0
    %1150 = vmatpush1.msra.mxu0 0.0
    %1151 = vmatprep.subr.mxu0 0.0
    %1152 = vmatpush1.msra.mxu0 0.0
    %1153 = vmatprep.subr.mxu0 0.0
    %1154 = vmatpush1.msra.mxu0 0.0
    %1155 = vmatprep.subr.mxu0 0.0
    %1156 = vmatpush1.msra.mxu0 0.0
    %1157 = vmatprep.subr.mxu0 0.0
    %1158 = vmatpush1.msra.mxu0 0.0
    %1159 = vmatprep.subr.mxu0 0.0
    %1160 = vmatpush1.msra.mxu0 0.0
    %1161 = vmatprep.subr.mxu0 0.0
    %1162 = vmatpush1.msra.mxu0 0.0
    %1163 = vmatprep.subr.mxu0 0.0
    %1164 = vmatpush1.msra.mxu0 0.0
    %1165 = vmatprep.subr.mxu0 0.0
    %1166 = vmatpush1.msra.mxu0 0.0
    %1167 = vmatprep.subr.mxu0 0.0
    %1168 = vmatpush1.msra.mxu0 0.0
    %1169 = vmatprep.subr.mxu0 0.0
    %1170 = vmatpush1.msra.mxu0 0.0
    %1171 = vmatprep.mubr.f32.mxu0 0.0
    %1172 = vmatmul.mubr.f32.gmra.mrb[0].mxu0 %v1102
    %v1173 = vpop.f32.mrb[0].mxu0
    %v1174 = vadd.f32 %v1100, %v1173
    %v1175 = vpop.f32.mrb[0].mxu0
    %1176 = vmatprep.mubr.f32.mxu0 0.0
    %1177 = vmatmul.mubr.f32.gmra.mrb[0].mxu0 %v1105
    %v1178 = vpop.f32.mrb[0].mxu0
    %v1179 = vadd.f32 %v1100, %v1178
    %v1180 = vpop.f32.mrb[0].mxu0
    %1181 = vdwg.mxu0
    %v1182 = vmax.f32 %v1174, 0.0
    %v1183 = vmax.f32 %v1179, 0.0
    %v1184 = vlaneseq
    %v1185 = vshrl.u32 %v1184, 7
    %v1186 = vsub.s32 0, %v1185
    %v1187 = vrot.slane %v45, %v1186
    %vm1188 = vcmask 523264
    %v1190 = vsel %vm1188, %v1182, 0
    %v1193 = vsel %vm1188, %v1183, 0
    %1195 = vmatprep.subr.mxu0 0.0
    %1196 = vmatpush1.msra.mxu0 %v34
    %1197 = vmatprep.subr.mxu0 0.0
    %1198 = vmatpush1.msra.mxu0 %v35
    %1199 = vmatprep.subr.mxu0 0.0
    %1200 = vmatpush1.msra.mxu0 %v36
    %1201 = vmatprep.subr.mxu0 0.0
    %1202 = vmatpush1.msra.mxu0 %v37
    %1203 = vmatprep.subr.mxu0 0.0
    %1204 = vmatpush1.msra.mxu0 %v38
    %1205 = vmatprep.subr.mxu0 0.0
    %1206 = vmatpush1.msra.mxu0 %v39
    %1207 = vmatprep.subr.mxu0 0.0
    %1208 = vmatpush1.msra.mxu0 %v40
    %1209 = vmatprep.subr.mxu0 0.0
    %1210 = vmatpush1.msra.mxu0 %v41
    %1211 = vmatprep.subr.mxu0 0.0
    %1212 = vmatpush1.msra.mxu0 0.0
    %1213 = vmatprep.subr.mxu0 0.0
    %1214 = vmatpush1.msra.mxu0 0.0
    %1215 = vmatprep.subr.mxu0 0.0
    %1216 = vmatpush1.msra.mxu0 0.0
    %1217 = vmatprep.subr.mxu0 0.0
    %1218 = vmatpush1.msra.mxu0 0.0
    %1219 = vmatprep.subr.mxu0 0.0
    %1220 = vmatpush1.msra.mxu0 0.0
    %1221 = vmatprep.subr.mxu0 0.0
    %1222 = vmatpush1.msra.mxu0 0.0
    %1223 = vmatprep.subr.mxu0 0.0
    %1224 = vmatpush1.msra.mxu0 0.0
    %1225 = vmatprep.subr.mxu0 0.0
    %1226 = vmatpush1.msra.mxu0 0.0
    %1227 = vmatprep.subr.mxu0 0.0
    %1228 = vmatpush1.msra.mxu0 0.0
    %1229 = vmatprep.subr.mxu0 0.0
    %1230 = vmatpush1.msra.mxu0 0.0
    %1231 = vmatprep.subr.mxu0 0.0
    %1232 = vmatpush1.msra.mxu0 0.0
    %1233 = vmatprep.subr.mxu0 0.0
    %1234 = vmatpush1.msra.mxu0 0.0
    %1235 = vmatprep.subr.mxu0 0.0
    %1236 = vmatpush1.msra.mxu0 0.0
    %1237 = vmatprep.subr.mxu0 0.0
    %1238 = vmatpush1.msra.mxu0 0.0
    %1239 = vmatprep.subr.mxu0 0.0
    %1240 = vmatpush1.msra.mxu0 0.0
    %1241 = vmatprep.subr.mxu0 0.0
    %1242 = vmatpush1.msra.mxu0 0.0
    %1243 = vmatprep.subr.mxu0 0.0
    %1244 = vmatpush1.msra.mxu0 0.0
    %1245 = vmatprep.subr.mxu0 0.0
    %1246 = vmatpush1.msra.mxu0 0.0
    %1247 = vmatprep.subr.mxu0 0.0
    %1248 = vmatpush1.msra.mxu0 0.0
    %1249 = vmatprep.subr.mxu0 0.0
    %1250 = vmatpush1.msra.mxu0 0.0
    %1251 = vmatprep.subr.mxu0 0.0
    %1252 = vmatpush1.msra.mxu0 0.0
    %1253 = vmatprep.subr.mxu0 0.0
    %1254 = vmatpush1.msra.mxu0 0.0
    %1255 = vmatprep.subr.mxu0 0.0
    %1256 = vmatpush1.msra.mxu0 0.0
    %1257 = vmatprep.subr.mxu0 0.0
    %1258 = vmatpush1.msra.mxu0 0.0
    %1259 = vmatprep.mubr.f32.mxu0 0.0
    %1260 = vmatmul.mubr.f32.gmra.mrb[0].mxu0 %v1190
    %v1261 = vpop.f32.mrb[0].mxu0
    %v1262 = vadd.f32 %v1187, %v1261
    %v1263 = vpop.f32.mrb[0].mxu0
    %1264 = vmatprep.mubr.f32.mxu0 0.0
    %1265 = vmatmul.mubr.f32.gmra.mrb[0].mxu0 %v1193
    %v1266 = vpop.f32.mrb[0].mxu0
    %v1267 = vadd.f32 %v1187, %v1266
    %v1268 = vpop.f32.mrb[0].mxu0
    %1269 = vdwg.mxu0
    %v1270 = vadd.f32 %v1095, %v1262
    %v1271 = vadd.f32 %v1096, %v1267
    %v1272 = vsel %vm54, %v1270, 0.0
    %1273 = vadd.xlane.f32.xlu0 %v1272
    %v1274 = vpop.xlane.xlu0 %1273
    %v1275 = vsel %vm54, %v1271, 0.0
    %1276 = vadd.xlane.f32.xlu0 %v1275
    %v1277 = vpop.xlane.xlu0 %1276
    %v1278 = vmul.f32 %v1274, %v1064
    %v1279 = vmul.f32 %v1277, %v1064
    %v1280 = vsub.f32 %v1270, %v1278
    %v1281 = vsub.f32 %v1271, %v1279
    %v1282 = vmul.f32 %v1280, %v1280
    %v1283 = vmul.f32 %v1281, %v1281
    %v1284 = vsel %vm54, %v1282, 0.0
    %1285 = vadd.xlane.f32.xlu0 %v1284
    %v1286 = vpop.xlane.xlu0 %1285
    %v1287 = vsel %vm54, %v1283, 0.0
    %1288 = vadd.xlane.f32.xlu0 %v1287
    %v1289 = vpop.xlane.xlu0 %1288
    %v1290 = vmul.f32 %v1286, %v1064
    %v1291 = vmul.f32 %v1289, %v1064
    %v1292 = vadd.f32 %v1290, 1e-05
    %v1293 = vadd.f32 %v1291, 1e-05
    %v1294 = vrsqrt.pop %v1292
    %v1295 = vrsqrt.pop %v1293
    %v1296 = vmul.f32 %v1280, %v1294
    %v1297 = vmul.f32 %v1281, %v1295
    %v1298 = vlaneseq
    %v1299 = vshrl.u32 %v1298, 7
    %v1300 = vsub.s32 0, %v1299
    %v1301 = vrot.slane %v48, %v1300
    %v1302 = vmul.f32 %v1296, %v1301
    %v1303 = vmul.f32 %v1297, %v1301
    %v1304 = vlaneseq
    %v1305 = vshrl.u32 %v1304, 7
    %v1306 = vsub.s32 0, %v1305
    %v1307 = vrot.slane %v49, %v1306
    %v1308 = vadd.f32 %v1302, %v1307
    %v1309 = vadd.f32 %v1303, %v1307
    %s1310 = scalar_lea.vmem %s3, 168
    %v1311 = vld [vmem:[%s1310] sm:$0xff]
    %v1312 = vld [vmem:[%s1310 + $0x8] sm:$0xff]
    %v1313 = vld [vmem:[%s1310 + $0x10] sm:$0xff]
    %v1314 = vld [vmem:[%s1310 + $0x18] sm:$0xff]
    %v1315 = vld [vmem:[%s1310 + $0x20] sm:$0xff]
    %v1316 = vld [vmem:[%s1310 + $0x28] sm:$0xff]
    %v1317 = vld [vmem:[%s1310 + $0x30] sm:$0xff]
    %v1318 = vld [vmem:[%s1310 + $0x38] sm:$0xff]
    %v1319 = vld [vmem:[%s1310 + $0x40] sm:$0xff]
    %v1320 = vld [vmem:[%s1310 + $0x48] sm:$0xff]
    %v1321 = vld [vmem:[%s1310 + $0x50] sm:$0xff]
    %v1322 = vld [vmem:[%s1310 + $0x58] sm:$0xff]
    %v1323 = vld [vmem:[%s1310 + $0x60] sm:$0xff]
    %v1324 = vld [vmem:[%s1310 + $0x68] sm:$0xff]
    %v1325 = vld [vmem:[%s1310 + $0x70] sm:$0xff]
    %v1326 = vld [vmem:[%s1310 + $0x78] sm:$0xff]
    %v1327 = vld [vmem:[%s1310 + $0x80] sm:$0xff]
    %v1328 = vld [vmem:[%s1310 + $0x88] sm:$0xff]
    %v1329 = vld [vmem:[%s1310 + $0x90] sm:$0xff]
    %v1330 = vld [vmem:[%s1310 + $0x98] sm:$0xff]
    %v1331 = vld [vmem:[%s1310 + $0xa0] sm:$0x1]
    %v1332 = vld [vmem:[%s1310 + $0xa1] sm:$0x1]
    %v1333 = vld [vmem:[%s1310 + $0xa2] sm:$0x1]
    %v1334 = vld [vmem:[%s1310 + $0xa3] sm:$0x1]
    %v1335 = vld [vmem:[%s1310 + $0xa4] sm:$0x1]
    %v1336 = vld [vmem:[%s1310 + $0xa5] sm:$0x1]
    %v1337 = vld [vmem:[%s1310 + $0xa6] sm:$0x1]
    %v1338 = vld [vmem:[%s1310 + $0xa7] sm:$0x1]
    %v1339 = vlaneseq
    %v1340 = vshrl.u32 %v1339, 7
    %v1341 = vsub.s32 0, %v1340
    %v1342 = vrot.slane %v1331, %v1341
    %v1344 = vsel %vm54, %v1308, 0
    %v1347 = vsel %vm54, %v1309, 0
    %1349 = vmatprep.subr.mxu0 0.0
    %1350 = vmatpush1.msra.mxu0 %v1311
    %1351 = vmatprep.subr.mxu0 0.0
    %1352 = vmatpush1.msra.mxu0 %v1312
    %1353 = vmatprep.subr.mxu0 0.0
    %1354 = vmatpush1.msra.mxu0 %v1313
    %1355 = vmatprep.subr.mxu0 0.0
    %1356 = vmatpush1.msra.mxu0 %v1314
    %1357 = vmatprep.subr.mxu0 0.0
    %1358 = vmatpush1.msra.mxu0 0.0
    %1359 = vmatprep.subr.mxu0 0.0
    %1360 = vmatpush1.msra.mxu0 0.0
    %1361 = vmatprep.subr.mxu0 0.0
    %1362 = vmatpush1.msra.mxu0 0.0
    %1363 = vmatprep.subr.mxu0 0.0
    %1364 = vmatpush1.msra.mxu0 0.0
    %1365 = vmatprep.subr.mxu0 0.0
    %1366 = vmatpush1.msra.mxu0 0.0
    %1367 = vmatprep.subr.mxu0 0.0
    %1368 = vmatpush1.msra.mxu0 0.0
    %1369 = vmatprep.subr.mxu0 0.0
    %1370 = vmatpush1.msra.mxu0 0.0
    %1371 = vmatprep.subr.mxu0 0.0
    %1372 = vmatpush1.msra.mxu0 0.0
    %1373 = vmatprep.subr.mxu0 0.0
    %1374 = vmatpush1.msra.mxu0 0.0
    %1375 = vmatprep.subr.mxu0 0.0
    %1376 = vmatpush1.msra.mxu0 0.0
    %1377 = vmatprep.subr.mxu0 0.0
    %1378 = vmatpush1.msra.mxu0 0.0
    %1379 = vmatprep.subr.mxu0 0.0
    %1380 = vmatpush1.msra.mxu0 0.0
    %1381 = vmatprep.subr.mxu0 0.0
    %1382 = vmatpush1.msra.mxu0 0.0
    %1383 = vmatprep.subr.mxu0 0.0
    %1384 = vmatpush1.msra.mxu0 0.0
    %1385 = vmatprep.subr.mxu0 0.0
    %1386 = vmatpush1.msra.mxu0 0.0
    %1387 = vmatprep.subr.mxu0 0.0
    %1388 = vmatpush1.msra.mxu0 0.0
    %1389 = vmatprep.subr.mxu0 0.0
    %1390 = vmatpush1.msra.mxu0 0.0
    %1391 = vmatprep.subr.mxu0 0.0
    %1392 = vmatpush1.msra.mxu0 0.0
    %1393 = vmatprep.subr.mxu0 0.0
    %1394 = vmatpush1.msra.mxu0 0.0
    %1395 = vmatprep.subr.mxu0 0.0
    %1396 = vmatpush1.msra.mxu0 0.0
    %1397 = vmatprep.subr.mxu0 0.0
    %1398 = vmatpush1.msra.mxu0 0.0
    %1399 = vmatprep.subr.mxu0 0.0
    %1400 = vmatpush1.msra.mxu0 0.0
    %1401 = vmatprep.subr.mxu0 0.0
    %1402 = vmatpush1.msra.mxu0 0.0
    %1403 = vmatprep.subr.mxu0 0.0
    %1404 = vmatpush1.msra.mxu0 0.0
    %1405 = vmatprep.subr.mxu0 0.0
    %1406 = vmatpush1.msra.mxu0 0.0
    %1407 = vmatprep.subr.mxu0 0.0
    %1408 = vmatpush1.msra.mxu0 0.0
    %1409 = vmatprep.subr.mxu0 0.0
    %1410 = vmatpush1.msra.mxu0 0.0
    %1411 = vmatprep.subr.mxu0 0.0
    %1412 = vmatpush1.msra.mxu0 0.0
    %1413 = vmatprep.mubr.f32.mxu0 0.0
    %1414 = vmatmul.mubr.f32.gmra.mrb[0].mxu0 %v1344
    %v1415 = vpop.f32.mrb[0].mxu0
    %v1416 = vadd.f32 %v1342, %v1415
    %v1417 = vpop.f32.mrb[0].mxu0
    %1418 = vmatprep.mubr.f32.mxu0 0.0
    %1419 = vmatmul.mubr.f32.gmra.mrb[0].mxu0 %v1347
    %v1420 = vpop.f32.mrb[0].mxu0
    %v1421 = vadd.f32 %v1342, %v1420
    %v1422 = vpop.f32.mrb[0].mxu0
    %1423 = vdwg.mxu0
    %v1424 = vmul.f32 %v1416, 0.35355338
    %v1425 = vmul.f32 %v1421, 0.35355338
    %1428 = vrot.lane.b32.xlu0 %v1416, 96
    %v1429 = vpop.permute.xlu0 %1428
    %1430 = vrot.lane.b32.xlu0 %v1421, 96
    %v1431 = vpop.permute.xlu0 %1430
    %v1433 = vsel %vm144, %v1424, 0
    %v1436 = vsel %vm144, %v1425, 0
    %v1438 = vsel %vm144, %v1429, 0
    %v1440 = vsel %vm144, %v1431, 0
    %1442 = vmatprep.subr.mxu0 0.0
    %1443 = vmatpush1.xpose.msra.mxu0 %v1438
    %1444 = vmatprep.subr.mxu0 0.0
    %1445 = vmatpush1.xpose.msra.mxu0 %v1440
    %1446 = vmatprep.subr.mxu0 0.0
    %1447 = vmatpush1.xpose.msra.mxu0 0.0
    %1448 = vmatprep.subr.mxu0 0.0
    %1449 = vmatpush1.xpose.msra.mxu0 0.0
    %1450 = vmatprep.subr.mxu0 0.0
    %1451 = vmatpush1.xpose.msra.mxu0 0.0
    %1452 = vmatprep.subr.mxu0 0.0
    %1453 = vmatpush1.xpose.msra.mxu0 0.0
    %1454 = vmatprep.subr.mxu0 0.0
    %1455 = vmatpush1.xpose.msra.mxu0 0.0
    %1456 = vmatprep.subr.mxu0 0.0
    %1457 = vmatpush1.xpose.msra.mxu0 0.0
    %1458 = vmatprep.subr.mxu0 0.0
    %1459 = vmatpush1.xpose.msra.mxu0 0.0
    %1460 = vmatprep.subr.mxu0 0.0
    %1461 = vmatpush1.xpose.msra.mxu0 0.0
    %1462 = vmatprep.subr.mxu0 0.0
    %1463 = vmatpush1.xpose.msra.mxu0 0.0
    %1464 = vmatprep.subr.mxu0 0.0
    %1465 = vmatpush1.xpose.msra.mxu0 0.0
    %1466 = vmatprep.subr.mxu0 0.0
    %1467 = vmatpush1.xpose.msra.mxu0 0.0
    %1468 = vmatprep.subr.mxu0 0.0
    %1469 = vmatpush1.xpose.msra.mxu0 0.0
    %1470 = vmatprep.subr.mxu0 0.0
    %1471 = vmatpush1.xpose.msra.mxu0 0.0
    %1472 = vmatprep.subr.mxu0 0.0
    %1473 = vmatpush1.xpose.msra.mxu0 0.0
    %1474 = vmatprep.subr.mxu0 0.0
    %1475 = vmatpush1.xpose.msra.mxu0 0.0
    %1476 = vmatprep.subr.mxu0 0.0
    %1477 = vmatpush1.xpose.msra.mxu0 0.0
    %1478 = vmatprep.subr.mxu0 0.0
    %1479 = vmatpush1.xpose.msra.mxu0 0.0
    %1480 = vmatprep.subr.mxu0 0.0
    %1481 = vmatpush1.xpose.msra.mxu0 0.0
    %1482 = vmatprep.subr.mxu0 0.0
    %1483 = vmatpush1.xpose.msra.mxu0 0.0
    %1484 = vmatprep.subr.mxu0 0.0
    %1485 = vmatpush1.xpose.msra.mxu0 0.0
    %1486 = vmatprep.subr.mxu0 0.0
    %1487 = vmatpush1.xpose.msra.mxu0 0.0
    %1488 = vmatprep.subr.mxu0 0.0
    %1489 = vmatpush1.xpose.msra.mxu0 0.0
    %1490 = vmatprep.subr.mxu0 0.0
    %1491 = vmatpush1.xpose.msra.mxu0 0.0
    %1492 = vmatprep.subr.mxu0 0.0
    %1493 = vmatpush1.xpose.msra.mxu0 0.0
    %1494 = vmatprep.subr.mxu0 0.0
    %1495 = vmatpush1.xpose.msra.mxu0 0.0
    %1496 = vmatprep.subr.mxu0 0.0
    %1497 = vmatpush1.xpose.msra.mxu0 0.0
    %1498 = vmatprep.subr.mxu0 0.0
    %1499 = vmatpush1.xpose.msra.mxu0 0.0
    %1500 = vmatprep.subr.mxu0 0.0
    %1501 = vmatpush1.xpose.msra.mxu0 0.0
    %1502 = vmatprep.subr.mxu0 0.0
    %1503 = vmatpush1.xpose.msra.mxu0 0.0
    %1504 = vmatprep.subr.mxu0 0.0
    %1505 = vmatpush1.xpose.msra.mxu0 0.0
    %1506 = vmatprep.mubr.f32.mxu0 0.0
    %1507 = vmatmul.mubr.f32.gmra.mrb[0].mxu0 %v1433
    %v1508 = vpop.f32.mrb[0].mxu0
    %v1509 = vadd.f32 %v20, %v1508
    %v1510 = vpop.f32.mrb[0].mxu0
    %1511 = vmatprep.mubr.f32.mxu0 0.0
    %1512 = vmatmul.mubr.f32.gmra.mrb[0].mxu0 %v1436
    %v1513 = vpop.f32.mrb[0].mxu0
    %v1514 = vadd.f32 %v21, %v1513
    %v1515 = vpop.f32.mrb[0].mxu0
    %1516 = vdwg.mxu0
    %v1517 = vsel %vm230, %v1509, -inf
    %1518 = vmax.xlane.f32.xlu0 %v1517
    %v1519 = vpop.xlane.xlu0 %1518
    %v1520 = vsel %vm230, %v1514, -inf
    %1521 = vmax.xlane.f32.xlu0 %v1520
    %v1522 = vpop.xlane.xlu0 %1521
    %v1523 = vsub.f32 %v1509, %v1519
    %v1524 = vsub.f32 %v1514, %v1522
    %v1525 = vmul.f32 %v1523, 1.442695
    %v1526 = vpow.pop %v1525
    %v1527 = vmul.f32 %v1524, 1.442695
    %v1528 = vpow.pop %v1527
    %v1529 = vsel %vm230, %v1526, 0.0
    %1530 = vadd.xlane.f32.xlu0 %v1529
    %v1531 = vpop.xlane.xlu0 %1530
    %v1532 = vsel %vm230, %v1528, 0.0
    %1533 = vadd.xlane.f32.xlu0 %v1532
    %v1534 = vpop.xlane.xlu0 %1533
    %v1535 = vrcp.pop %v1531
    %v1536 = vmul.f32 %v1526, %v1535
    %v1537 = vrcp.pop %v1534
    %v1538 = vmul.f32 %v1528, %v1537
    %1539 = vrot.lane.b32.xlu0 %v1416, 64
    %v1540 = vpop.permute.xlu0 %1539
    %1541 = vrot.lane.b32.xlu0 %v1421, 64
    %v1542 = vpop.permute.xlu0 %1541
    %v1546 = vsel %vm230, %v1536, 0
    %v1549 = vsel %vm230, %v1538, 0
    %1551 = vmatprep.subr.mxu0 0.0
    %1552 = vmatpush1.msra.mxu0 %v1540
    %1553 = vmatprep.subr.mxu0 0.0
    %1554 = vmatpush1.msra.mxu0 %v1542
    %1555 = vmatprep.subr.mxu0 0.0
    %1556 = vmatpush1.msra.mxu0 0.0
    %1557 = vmatprep.subr.mxu0 0.0
    %1558 = vmatpush1.msra.mxu0 0.0
    %1559 = vmatprep.subr.mxu0 0.0
    %1560 = vmatpush1.msra.mxu0 0.0
    %1561 = vmatprep.subr.mxu0 0.0
    %1562 = vmatpush1.msra.mxu0 0.0
    %1563 = vmatprep.subr.mxu0 0.0
    %1564 = vmatpush1.msra.mxu0 0.0
    %1565 = vmatprep.subr.mxu0 0.0
    %1566 = vmatpush1.msra.mxu0 0.0
    %1567 = vmatprep.subr.mxu0 0.0
    %1568 = vmatpush1.msra.mxu0 0.0
    %1569 = vmatprep.subr.mxu0 0.0
    %1570 = vmatpush1.msra.mxu0 0.0
    %1571 = vmatprep.subr.mxu0 0.0
    %1572 = vmatpush1.msra.mxu0 0.0
    %1573 = vmatprep.subr.mxu0 0.0
    %1574 = vmatpush1.msra.mxu0 0.0
    %1575 = vmatprep.subr.mxu0 0.0
    %1576 = vmatpush1.msra.mxu0 0.0
    %1577 = vmatprep.subr.mxu0 0.0
    %1578 = vmatpush1.msra.mxu0 0.0
    %1579 = vmatprep.subr.mxu0 0.0
    %1580 = vmatpush1.msra.mxu0 0.0
    %1581 = vmatprep.subr.mxu0 0.0
    %1582 = vmatpush1.msra.mxu0 0.0
    %1583 = vmatprep.subr.mxu0 0.0
    %1584 = vmatpush1.msra.mxu0 0.0
    %1585 = vmatprep.subr.mxu0 0.0
    %1586 = vmatpush1.msra.mxu0 0.0
    %1587 = vmatprep.subr.mxu0 0.0
    %1588 = vmatpush1.msra.mxu0 0.0
    %1589 = vmatprep.subr.mxu0 0.0
    %1590 = vmatpush1.msra.mxu0 0.0
    %1591 = vmatprep.subr.mxu0 0.0
    %1592 = vmatpush1.msra.mxu0 0.0
    %1593 = vmatprep.subr.mxu0 0.0
    %1594 = vmatpush1.msra.mxu0 0.0
    %1595 = vmatprep.subr.mxu0 0.0
    %1596 = vmatpush1.msra.mxu0 0.0
    %1597 = vmatprep.subr.mxu0 0.0
    %1598 = vmatpush1.msra.mxu0 0.0
    %1599 = vmatprep.subr.mxu0 0.0
    %1600 = vmatpush1.msra.mxu0 0.0
    %1601 = vmatprep.subr.mxu0 0.0
    %1602 = vmatpush1.msra.mxu0 0.0
    %1603 = vmatprep.subr.mxu0 0.0
    %1604 = vmatpush1.msra.mxu0 0.0
    %1605 = vmatprep.subr.mxu0 0.0
    %1606 = vmatpush1.msra.mxu0 0.0
    %1607 = vmatprep.subr.mxu0 0.0
    %1608 = vmatpush1.msra.mxu0 0.0
    %1609 = vmatprep.subr.mxu0 0.0
    %1610 = vmatpush1.msra.mxu0 0.0
    %1611 = vmatprep.subr.mxu0 0.0
    %1612 = vmatpush1.msra.mxu0 0.0
    %1613 = vmatprep.subr.mxu0 0.0
    %1614 = vmatpush1.msra.mxu0 0.0
    %1615 = vmatprep.mubr.f32.mxu0 0.0
    %1616 = vmatmul.mubr.f32.gmra.mrb[0].mxu0 %v1546
    %v1617 = vpop.f32.mrb[0].mxu0
    %v1618 = vadd.f32 0.0, %v1617
    %v1619 = vpop.f32.mrb[0].mxu0
    %1620 = vmatprep.mubr.f32.mxu0 0.0
    %1621 = vmatmul.mubr.f32.gmra.mrb[0].mxu0 %v1549
    %v1622 = vpop.f32.mrb[0].mxu0
    %v1623 = vadd.f32 0.0, %v1622
    %v1624 = vpop.f32.mrb[0].mxu0
    %1625 = vdwg.mxu0
    %1626 = vrot.lane.b32.xlu0 %v1424, 120
    %v1627 = vpop.permute.xlu0 %1626
    %1628 = vrot.lane.b32.xlu0 %v1425, 120
    %v1629 = vpop.permute.xlu0 %1628
    %1630 = vrot.lane.b32.xlu0 %v1416, 88
    %v1631 = vpop.permute.xlu0 %1630
    %1632 = vrot.lane.b32.xlu0 %v1421, 88
    %v1633 = vpop.permute.xlu0 %1632
    %v1634 = vsel %vm144, %v1627, 0
    %v1636 = vsel %vm144, %v1629, 0
    %v1638 = vsel %vm144, %v1631, 0
    %v1640 = vsel %vm144, %v1633, 0
    %1642 = vmatprep.subr.mxu0 0.0
    %1643 = vmatpush1.xpose.msra.mxu0 %v1638
    %1644 = vmatprep.subr.mxu0 0.0
    %1645 = vmatpush1.xpose.msra.mxu0 %v1640
    %1646 = vmatprep.subr.mxu0 0.0
    %1647 = vmatpush1.xpose.msra.mxu0 0.0
    %1648 = vmatprep.subr.mxu0 0.0
    %1649 = vmatpush1.xpose.msra.mxu0 0.0
    %1650 = vmatprep.subr.mxu0 0.0
    %1651 = vmatpush1.xpose.msra.mxu0 0.0
    %1652 = vmatprep.subr.mxu0 0.0
    %1653 = vmatpush1.xpose.msra.mxu0 0.0
    %1654 = vmatprep.subr.mxu0 0.0
    %1655 = vmatpush1.xpose.msra.mxu0 0.0
    %1656 = vmatprep.subr.mxu0 0.0
    %1657 = vmatpush1.xpose.msra.mxu0 0.0
    %1658 = vmatprep.subr.mxu0 0.0
    %1659 = vmatpush1.xpose.msra.mxu0 0.0
    %1660 = vmatprep.subr.mxu0 0.0
    %1661 = vmatpush1.xpose.msra.mxu0 0.0
    %1662 = vmatprep.subr.mxu0 0.0
    %1663 = vmatpush1.xpose.msra.mxu0 0.0
    %1664 = vmatprep.subr.mxu0 0.0
    %1665 = vmatpush1.xpose.msra.mxu0 0.0
    %1666 = vmatprep.subr.mxu0 0.0
    %1667 = vmatpush1.xpose.msra.mxu0 0.0
    %1668 = vmatprep.subr.mxu0 0.0
    %1669 = vmatpush1.xpose.msra.mxu0 0.0
    %1670 = vmatprep.subr.mxu0 0.0
    %1671 = vmatpush1.xpose.msra.mxu0 0.0
    %1672 = vmatprep.subr.mxu0 0.0
    %1673 = vmatpush1.xpose.msra.mxu0 0.0
    %1674 = vmatprep.subr.mxu0 0.0
    %1675 = vmatpush1.xpose.msra.mxu0 0.0
    %1676 = vmatprep.subr.mxu0 0.0
    %1677 = vmatpush1.xpose.msra.mxu0 0.0
    %1678 = vmatprep.subr.mxu0 0.0
    %1679 = vmatpush1.xpose.msra.mxu0 0.0
    %1680 = vmatprep.subr.mxu0 0.0
    %1681 = vmatpush1.xpose.msra.mxu0 0.0
    %1682 = vmatprep.subr.mxu0 0.0
    %1683 = vmatpush1.xpose.msra.mxu0 0.0
    %1684 = vmatprep.subr.mxu0 0.0
    %1685 = vmatpush1.xpose.msra.mxu0 0.0
    %1686 = vmatprep.subr.mxu0 0.0
    %1687 = vmatpush1.xpose.msra.mxu0 0.0
    %1688 = vmatprep.subr.mxu0 0.0
    %1689 = vmatpush1.xpose.msra.mxu0 0.0
    %1690 = vmatprep.subr.mxu0 0.0
    %1691 = vmatpush1.xpose.msra.mxu0 0.0
    %1692 = vmatprep.subr.mxu0 0.0
    %1693 = vmatpush1.xpose.msra.mxu0 0.0
    %1694 = vmatprep.subr.mxu0 0.0
    %1695 = vmatpush1.xpose.msra.mxu0 0.0
    %1696 = vmatprep.subr.mxu0 0.0
    %1697 = vmatpush1.xpose.msra.mxu0 0.0
    %1698 = vmatprep.subr.mxu0 0.0
    %1699 = vmatpush1.xpose.msra.mxu0 0.0
    %1700 = vmatprep.subr.mxu0 0.0
    %1701 = vmatpush1.xpose.msra.mxu0 0.0
    %1702 = vmatprep.subr.mxu0 0.0
    %1703 = vmatpush1.xpose.msra.mxu0 0.0
    %1704 = vmatprep.subr.mxu0 0.0
    %1705 = vmatpush1.xpose.msra.mxu0 0.0
    %1706 = vmatprep.mubr.f32.mxu0 0.0
    %1707 = vmatmul.mubr.f32.gmra.mrb[0].mxu0 %v1634
    %v1708 = vpop.f32.mrb[0].mxu0
    %v1709 = vadd.f32 %v20, %v1708
    %v1710 = vpop.f32.mrb[0].mxu0
    %1711 = vmatprep.mubr.f32.mxu0 0.0
    %1712 = vmatmul.mubr.f32.gmra.mrb[0].mxu0 %v1636
    %v1713 = vpop.f32.mrb[0].mxu0
    %v1714 = vadd.f32 %v21, %v1713
    %v1715 = vpop.f32.mrb[0].mxu0
    %1716 = vdwg.mxu0
    %v1717 = vsel %vm230, %v1709, -inf
    %1718 = vmax.xlane.f32.xlu0 %v1717
    %v1719 = vpop.xlane.xlu0 %1718
    %v1720 = vsel %vm230, %v1714, -inf
    %1721 = vmax.xlane.f32.xlu0 %v1720
    %v1722 = vpop.xlane.xlu0 %1721
    %v1723 = vsub.f32 %v1709, %v1719
    %v1724 = vsub.f32 %v1714, %v1722
    %v1725 = vmul.f32 %v1723, 1.442695
    %v1726 = vpow.pop %v1725
    %v1727 = vmul.f32 %v1724, 1.442695
    %v1728 = vpow.pop %v1727
    %v1729 = vsel %vm230, %v1726, 0.0
    %1730 = vadd.xlane.f32.xlu0 %v1729
    %v1731 = vpop.xlane.xlu0 %1730
    %v1732 = vsel %vm230, %v1728, 0.0
    %1733 = vadd.xlane.f32.xlu0 %v1732
    %v1734 = vpop.xlane.xlu0 %1733
    %v1735 = vrcp.pop %v1731
    %v1736 = vmul.f32 %v1726, %v1735
    %v1737 = vrcp.pop %v1734
    %v1738 = vmul.f32 %v1728, %v1737
    %1739 = vrot.lane.b32.xlu0 %v1416, 56
    %v1740 = vpop.permute.xlu0 %1739
    %1741 = vrot.lane.b32.xlu0 %v1421, 56
    %v1742 = vpop.permute.xlu0 %1741
    %v1746 = vsel %vm230, %v1736, 0
    %v1749 = vsel %vm230, %v1738, 0
    %1751 = vmatprep.subr.mxu0 0.0
    %1752 = vmatpush1.msra.mxu0 %v1740
    %1753 = vmatprep.subr.mxu0 0.0
    %1754 = vmatpush1.msra.mxu0 %v1742
    %1755 = vmatprep.subr.mxu0 0.0
    %1756 = vmatpush1.msra.mxu0 0.0
    %1757 = vmatprep.subr.mxu0 0.0
    %1758 = vmatpush1.msra.mxu0 0.0
    %1759 = vmatprep.subr.mxu0 0.0
    %1760 = vmatpush1.msra.mxu0 0.0
    %1761 = vmatprep.subr.mxu0 0.0
    %1762 = vmatpush1.msra.mxu0 0.0
    %1763 = vmatprep.subr.mxu0 0.0
    %1764 = vmatpush1.msra.mxu0 0.0
    %1765 = vmatprep.subr.mxu0 0.0
    %1766 = vmatpush1.msra.mxu0 0.0
    %1767 = vmatprep.subr.mxu0 0.0
    %1768 = vmatpush1.msra.mxu0 0.0
    %1769 = vmatprep.subr.mxu0 0.0
    %1770 = vmatpush1.msra.mxu0 0.0
    %1771 = vmatprep.subr.mxu0 0.0
    %1772 = vmatpush1.msra.mxu0 0.0
    %1773 = vmatprep.subr.mxu0 0.0
    %1774 = vmatpush1.msra.mxu0 0.0
    %1775 = vmatprep.subr.mxu0 0.0
    %1776 = vmatpush1.msra.mxu0 0.0
    %1777 = vmatprep.subr.mxu0 0.0
    %1778 = vmatpush1.msra.mxu0 0.0
    %1779 = vmatprep.subr.mxu0 0.0
    %1780 = vmatpush1.msra.mxu0 0.0
    %1781 = vmatprep.subr.mxu0 0.0
    %1782 = vmatpush1.msra.mxu0 0.0
    %1783 = vmatprep.subr.mxu0 0.0
    %1784 = vmatpush1.msra.mxu0 0.0
    %1785 = vmatprep.subr.mxu0 0.0
    %1786 = vmatpush1.msra.mxu0 0.0
    %1787 = vmatprep.subr.mxu0 0.0
    %1788 = vmatpush1.msra.mxu0 0.0
    %1789 = vmatprep.subr.mxu0 0.0
    %1790 = vmatpush1.msra.mxu0 0.0
    %1791 = vmatprep.subr.mxu0 0.0
    %1792 = vmatpush1.msra.mxu0 0.0
    %1793 = vmatprep.subr.mxu0 0.0
    %1794 = vmatpush1.msra.mxu0 0.0
    %1795 = vmatprep.subr.mxu0 0.0
    %1796 = vmatpush1.msra.mxu0 0.0
    %1797 = vmatprep.subr.mxu0 0.0
    %1798 = vmatpush1.msra.mxu0 0.0
    %1799 = vmatprep.subr.mxu0 0.0
    %1800 = vmatpush1.msra.mxu0 0.0
    %1801 = vmatprep.subr.mxu0 0.0
    %1802 = vmatpush1.msra.mxu0 0.0
    %1803 = vmatprep.subr.mxu0 0.0
    %1804 = vmatpush1.msra.mxu0 0.0
    %1805 = vmatprep.subr.mxu0 0.0
    %1806 = vmatpush1.msra.mxu0 0.0
    %1807 = vmatprep.subr.mxu0 0.0
    %1808 = vmatpush1.msra.mxu0 0.0
    %1809 = vmatprep.subr.mxu0 0.0
    %1810 = vmatpush1.msra.mxu0 0.0
    %1811 = vmatprep.subr.mxu0 0.0
    %1812 = vmatpush1.msra.mxu0 0.0
    %1813 = vmatprep.subr.mxu0 0.0
    %1814 = vmatpush1.msra.mxu0 0.0
    %1815 = vmatprep.mubr.f32.mxu0 0.0
    %1816 = vmatmul.mubr.f32.gmra.mrb[0].mxu0 %v1746
    %v1817 = vpop.f32.mrb[0].mxu0
    %v1818 = vadd.f32 0.0, %v1817
    %v1819 = vpop.f32.mrb[0].mxu0
    %1820 = vmatprep.mubr.f32.mxu0 0.0
    %1821 = vmatmul.mubr.f32.gmra.mrb[0].mxu0 %v1749
    %v1822 = vpop.f32.mrb[0].mxu0
    %v1823 = vadd.f32 0.0, %v1822
    %v1824 = vpop.f32.mrb[0].mxu0
    %1825 = vdwg.mxu0
    %1826 = vrot.lane.b32.xlu0 %v1424, 112
    %v1827 = vpop.permute.xlu0 %1826
    %1828 = vrot.lane.b32.xlu0 %v1425, 112
    %v1829 = vpop.permute.xlu0 %1828
    %1830 = vrot.lane.b32.xlu0 %v1416, 80
    %v1831 = vpop.permute.xlu0 %1830
    %1832 = vrot.lane.b32.xlu0 %v1421, 80
    %v1833 = vpop.permute.xlu0 %1832
    %v1834 = vsel %vm144, %v1827, 0
    %v1836 = vsel %vm144, %v1829, 0
    %v1838 = vsel %vm144, %v1831, 0
    %v1840 = vsel %vm144, %v1833, 0
    %1842 = vmatprep.subr.mxu0 0.0
    %1843 = vmatpush1.xpose.msra.mxu0 %v1838
    %1844 = vmatprep.subr.mxu0 0.0
    %1845 = vmatpush1.xpose.msra.mxu0 %v1840
    %1846 = vmatprep.subr.mxu0 0.0
    %1847 = vmatpush1.xpose.msra.mxu0 0.0
    %1848 = vmatprep.subr.mxu0 0.0
    %1849 = vmatpush1.xpose.msra.mxu0 0.0
    %1850 = vmatprep.subr.mxu0 0.0
    %1851 = vmatpush1.xpose.msra.mxu0 0.0
    %1852 = vmatprep.subr.mxu0 0.0
    %1853 = vmatpush1.xpose.msra.mxu0 0.0
    %1854 = vmatprep.subr.mxu0 0.0
    %1855 = vmatpush1.xpose.msra.mxu0 0.0
    %1856 = vmatprep.subr.mxu0 0.0
    %1857 = vmatpush1.xpose.msra.mxu0 0.0
    %1858 = vmatprep.subr.mxu0 0.0
    %1859 = vmatpush1.xpose.msra.mxu0 0.0
    %1860 = vmatprep.subr.mxu0 0.0
    %1861 = vmatpush1.xpose.msra.mxu0 0.0
    %1862 = vmatprep.subr.mxu0 0.0
    %1863 = vmatpush1.xpose.msra.mxu0 0.0
    %1864 = vmatprep.subr.mxu0 0.0
    %1865 = vmatpush1.xpose.msra.mxu0 0.0
    %1866 = vmatprep.subr.mxu0 0.0
    %1867 = vmatpush1.xpose.msra.mxu0 0.0
    %1868 = vmatprep.subr.mxu0 0.0
    %1869 = vmatpush1.xpose.msra.mxu0 0.0
    %1870 = vmatprep.subr.mxu0 0.0
    %1871 = vmatpush1.xpose.msra.mxu0 0.0
    %1872 = vmatprep.subr.mxu0 0.0
    %1873 = vmatpush1.xpose.msra.mxu0 0.0
    %1874 = vmatprep.subr.mxu0 0.0
    %1875 = vmatpush1.xpose.msra.mxu0 0.0
    %1876 = vmatprep.subr.mxu0 0.0
    %1877 = vmatpush1.xpose.msra.mxu0 0.0
    %1878 = vmatprep.subr.mxu0 0.0
    %1879 = vmatpush1.xpose.msra.mxu0 0.0
    %1880 = vmatprep.subr.mxu0 0.0
    %1881 = vmatpush1.xpose.msra.mxu0 0.0
    %1882 = vmatprep.subr.mxu0 0.0
    %1883 = vmatpush1.xpose.msra.mxu0 0.0
    %1884 = vmatprep.subr.mxu0 0.0
    %1885 = vmatpush1.xpose.msra.mxu0 0.0
    %1886 = vmatprep.subr.mxu0 0.0
    %1887 = vmatpush1.xpose.msra.mxu0 0.0
    %1888 = vmatprep.subr.mxu0 0.0
    %1889 = vmatpush1.xpose.msra.mxu0 0.0
    %1890 = vmatprep.subr.mxu0 0.0
    %1891 = vmatpush1.xpose.msra.mxu0 0.0
    %1892 = vmatprep.subr.mxu0 0.0
    %1893 = vmatpush1.xpose.msra.mxu0 0.0
    %1894 = vmatprep.subr.mxu0 0.0
    %1895 = vmatpush1.xpose.msra.mxu0 0.0
    %1896 = vmatprep.subr.mxu0 0.0
    %1897 = vmatpush1.xpose.msra.mxu0 0.0
    %1898 = vmatprep.subr.mxu0 0.0
    %1899 = vmatpush1.xpose.msra.mxu0 0.0
    %1900 = vmatprep.subr.mxu0 0.0
    %1901 = vmatpush1.xpose.msra.mxu0 0.0
    %1902 = vmatprep.subr.mxu0 0.0
    %1903 = vmatpush1.xpose.msra.mxu0 0.0
    %1904 = vmatprep.subr.mxu0 0.0
    %1905 = vmatpush1.xpose.msra.mxu0 0.0
    %1906 = vmatprep.mubr.f32.mxu0 0.0
    %1907 = vmatmul.mubr.f32.gmra.mrb[0].mxu0 %v1834
    %v1908 = vpop.f32.mrb[0].mxu0
    %v1909 = vadd.f32 %v20, %v1908
    %v1910 = vpop.f32.mrb[0].mxu0
    %1911 = vmatprep.mubr.f32.mxu0 0.0
    %1912 = vmatmul.mubr.f32.gmra.mrb[0].mxu0 %v1836
    %v1913 = vpop.f32.mrb[0].mxu0
    %v1914 = vadd.f32 %v21, %v1913
    %v1915 = vpop.f32.mrb[0].mxu0
    %1916 = vdwg.mxu0
    %v1917 = vsel %vm230, %v1909, -inf
    %1918 = vmax.xlane.f32.xlu0 %v1917
    %v1919 = vpop.xlane.xlu0 %1918
    %v1920 = vsel %vm230, %v1914, -inf
    %1921 = vmax.xlane.f32.xlu0 %v1920
    %v1922 = vpop.xlane.xlu0 %1921
    %v1923 = vsub.f32 %v1909, %v1919
    %v1924 = vsub.f32 %v1914, %v1922
    %v1925 = vmul.f32 %v1923, 1.442695
    %v1926 = vpow.pop %v1925
    %v1927 = vmul.f32 %v1924, 1.442695
    %v1928 = vpow.pop %v1927
    %v1929 = vsel %vm230, %v1926, 0.0
    %1930 = vadd.xlane.f32.xlu0 %v1929
    %v1931 = vpop.xlane.xlu0 %1930
    %v1932 = vsel %vm230, %v1928, 0.0
    %1933 = vadd.xlane.f32.xlu0 %v1932
    %v1934 = vpop.xlane.xlu0 %1933
    %v1935 = vrcp.pop %v1931
    %v1936 = vmul.f32 %v1926, %v1935
    %v1937 = vrcp.pop %v1934
    %v1938 = vmul.f32 %v1928, %v1937
    %1939 = vrot.lane.b32.xlu0 %v1416, 48
    %v1940 = vpop.permute.xlu0 %1939
    %1941 = vrot.lane.b32.xlu0 %v1421, 48
    %v1942 = vpop.permute.xlu0 %1941
    %v1946 = vsel %vm230, %v1936, 0
    %v1949 = vsel %vm230, %v1938, 0
    %1951 = vmatprep.subr.mxu0 0.0
    %1952 = vmatpush1.msra.mxu0 %v1940
    %1953 = vmatprep.subr.mxu0 0.0
    %1954 = vmatpush1.msra.mxu0 %v1942
    %1955 = vmatprep.subr.mxu0 0.0
    %1956 = vmatpush1.msra.mxu0 0.0
    %1957 = vmatprep.subr.mxu0 0.0
    %1958 = vmatpush1.msra.mxu0 0.0
    %1959 = vmatprep.subr.mxu0 0.0
    %1960 = vmatpush1.msra.mxu0 0.0
    %1961 = vmatprep.subr.mxu0 0.0
    %1962 = vmatpush1.msra.mxu0 0.0
    %1963 = vmatprep.subr.mxu0 0.0
    %1964 = vmatpush1.msra.mxu0 0.0
    %1965 = vmatprep.subr.mxu0 0.0
    %1966 = vmatpush1.msra.mxu0 0.0
    %1967 = vmatprep.subr.mxu0 0.0
    %1968 = vmatpush1.msra.mxu0 0.0
    %1969 = vmatprep.subr.mxu0 0.0
    %1970 = vmatpush1.msra.mxu0 0.0
    %1971 = vmatprep.subr.mxu0 0.0
    %1972 = vmatpush1.msra.mxu0 0.0
    %1973 = vmatprep.subr.mxu0 0.0
    %1974 = vmatpush1.msra.mxu0 0.0
    %1975 = vmatprep.subr.mxu0 0.0
    %1976 = vmatpush1.msra.mxu0 0.0
    %1977 = vmatprep.subr.mxu0 0.0
    %1978 = vmatpush1.msra.mxu0 0.0
    %1979 = vmatprep.subr.mxu0 0.0
    %1980 = vmatpush1.msra.mxu0 0.0
    %1981 = vmatprep.subr.mxu0 0.0
    %1982 = vmatpush1.msra.mxu0 0.0
    %1983 = vmatprep.subr.mxu0 0.0
    %1984 = vmatpush1.msra.mxu0 0.0
    %1985 = vmatprep.subr.mxu0 0.0
    %1986 = vmatpush1.msra.mxu0 0.0
    %1987 = vmatprep.subr.mxu0 0.0
    %1988 = vmatpush1.msra.mxu0 0.0
    %1989 = vmatprep.subr.mxu0 0.0
    %1990 = vmatpush1.msra.mxu0 0.0
    %1991 = vmatprep.subr.mxu0 0.0
    %1992 = vmatpush1.msra.mxu0 0.0
    %1993 = vmatprep.subr.mxu0 0.0
    %1994 = vmatpush1.msra.mxu0 0.0
    %1995 = vmatprep.subr.mxu0 0.0
    %1996 = vmatpush1.msra.mxu0 0.0
    %1997 = vmatprep.subr.mxu0 0.0
    %1998 = vmatpush1.msra.mxu0 0.0
    %1999 = vmatprep.subr.mxu0 0.0
    %2000 = vmatpush1.msra.mxu0 0.0
    %2001 = vmatprep.subr.mxu0 0.0
    %2002 = vmatpush1.msra.mxu0 0.0
    %2003 = vmatprep.subr.mxu0 0.0
    %2004 = vmatpush1.msra.mxu0 0.0
    %2005 = vmatprep.subr.mxu0 0.0
    %2006 = vmatpush1.msra.mxu0 0.0
    %2007 = vmatprep.subr.mxu0 0.0
    %2008 = vmatpush1.msra.mxu0 0.0
    %2009 = vmatprep.subr.mxu0 0.0
    %2010 = vmatpush1.msra.mxu0 0.0
    %2011 = vmatprep.subr.mxu0 0.0
    %2012 = vmatpush1.msra.mxu0 0.0
    %2013 = vmatprep.subr.mxu0 0.0
    %2014 = vmatpush1.msra.mxu0 0.0
    %2015 = vmatprep.mubr.f32.mxu0 0.0
    %2016 = vmatmul.mubr.f32.gmra.mrb[0].mxu0 %v1946
    %v2017 = vpop.f32.mrb[0].mxu0
    %v2018 = vadd.f32 0.0, %v2017
    %v2019 = vpop.f32.mrb[0].mxu0
    %2020 = vmatprep.mubr.f32.mxu0 0.0
    %2021 = vmatmul.mubr.f32.gmra.mrb[0].mxu0 %v1949
    %v2022 = vpop.f32.mrb[0].mxu0
    %v2023 = vadd.f32 0.0, %v2022
    %v2024 = vpop.f32.mrb[0].mxu0
    %2025 = vdwg.mxu0
    %2026 = vrot.lane.b32.xlu0 %v1424, 104
    %v2027 = vpop.permute.xlu0 %2026
    %2028 = vrot.lane.b32.xlu0 %v1425, 104
    %v2029 = vpop.permute.xlu0 %2028
    %2030 = vrot.lane.b32.xlu0 %v1416, 72
    %v2031 = vpop.permute.xlu0 %2030
    %2032 = vrot.lane.b32.xlu0 %v1421, 72
    %v2033 = vpop.permute.xlu0 %2032
    %v2034 = vsel %vm144, %v2027, 0
    %v2036 = vsel %vm144, %v2029, 0
    %v2038 = vsel %vm144, %v2031, 0
    %v2040 = vsel %vm144, %v2033, 0
    %2042 = vmatprep.subr.mxu0 0.0
    %2043 = vmatpush1.xpose.msra.mxu0 %v2038
    %2044 = vmatprep.subr.mxu0 0.0
    %2045 = vmatpush1.xpose.msra.mxu0 %v2040
    %2046 = vmatprep.subr.mxu0 0.0
    %2047 = vmatpush1.xpose.msra.mxu0 0.0
    %2048 = vmatprep.subr.mxu0 0.0
    %2049 = vmatpush1.xpose.msra.mxu0 0.0
    %2050 = vmatprep.subr.mxu0 0.0
    %2051 = vmatpush1.xpose.msra.mxu0 0.0
    %2052 = vmatprep.subr.mxu0 0.0
    %2053 = vmatpush1.xpose.msra.mxu0 0.0
    %2054 = vmatprep.subr.mxu0 0.0
    %2055 = vmatpush1.xpose.msra.mxu0 0.0
    %2056 = vmatprep.subr.mxu0 0.0
    %2057 = vmatpush1.xpose.msra.mxu0 0.0
    %2058 = vmatprep.subr.mxu0 0.0
    %2059 = vmatpush1.xpose.msra.mxu0 0.0
    %2060 = vmatprep.subr.mxu0 0.0
    %2061 = vmatpush1.xpose.msra.mxu0 0.0
    %2062 = vmatprep.subr.mxu0 0.0
    %2063 = vmatpush1.xpose.msra.mxu0 0.0
    %2064 = vmatprep.subr.mxu0 0.0
    %2065 = vmatpush1.xpose.msra.mxu0 0.0
    %2066 = vmatprep.subr.mxu0 0.0
    %2067 = vmatpush1.xpose.msra.mxu0 0.0
    %2068 = vmatprep.subr.mxu0 0.0
    %2069 = vmatpush1.xpose.msra.mxu0 0.0
    %2070 = vmatprep.subr.mxu0 0.0
    %2071 = vmatpush1.xpose.msra.mxu0 0.0
    %2072 = vmatprep.subr.mxu0 0.0
    %2073 = vmatpush1.xpose.msra.mxu0 0.0
    %2074 = vmatprep.subr.mxu0 0.0
    %2075 = vmatpush1.xpose.msra.mxu0 0.0
    %2076 = vmatprep.subr.mxu0 0.0
    %2077 = vmatpush1.xpose.msra.mxu0 0.0
    %2078 = vmatprep.subr.mxu0 0.0
    %2079 = vmatpush1.xpose.msra.mxu0 0.0
    %2080 = vmatprep.subr.mxu0 0.0
    %2081 = vmatpush1.xpose.msra.mxu0 0.0
    %2082 = vmatprep.subr.mxu0 0.0
    %2083 = vmatpush1.xpose.msra.mxu0 0.0
    %2084 = vmatprep.subr.mxu0 0.0
    %2085 = vmatpush1.xpose.msra.mxu0 0.0
    %2086 = vmatprep.subr.mxu0 0.0
    %2087 = vmatpush1.xpose.msra.mxu0 0.0
    %2088 = vmatprep.subr.mxu0 0.0
    %2089 = vmatpush1.xpose.msra.mxu0 0.0
    %2090 = vmatprep.subr.mxu0 0.0
    %2091 = vmatpush1.xpose.msra.mxu0 0.0
    %2092 = vmatprep.subr.mxu0 0.0
    %2093 = vmatpush1.xpose.msra.mxu0 0.0
    %2094 = vmatprep.subr.mxu0 0.0
    %2095 = vmatpush1.xpose.msra.mxu0 0.0
    %2096 = vmatprep.subr.mxu0 0.0
    %2097 = vmatpush1.xpose.msra.mxu0 0.0
    %2098 = vmatprep.subr.mxu0 0.0
    %2099 = vmatpush1.xpose.msra.mxu0 0.0
    %2100 = vmatprep.subr.mxu0 0.0
    %2101 = vmatpush1.xpose.msra.mxu0 0.0
    %2102 = vmatprep.subr.mxu0 0.0
    %2103 = vmatpush1.xpose.msra.mxu0 0.0
    %2104 = vmatprep.subr.mxu0 0.0
    %2105 = vmatpush1.xpose.msra.mxu0 0.0
    %2106 = vmatprep.mubr.f32.mxu0 0.0
    %2107 = vmatmul.mubr.f32.gmra.mrb[0].mxu0 %v2034
    %v2108 = vpop.f32.mrb[0].mxu0
    %v2109 = vadd.f32 %v20, %v2108
    %v2110 = vpop.f32.mrb[0].mxu0
    %2111 = vmatprep.mubr.f32.mxu0 0.0
    %2112 = vmatmul.mubr.f32.gmra.mrb[0].mxu0 %v2036
    %v2113 = vpop.f32.mrb[0].mxu0
    %v2114 = vadd.f32 %v21, %v2113
    %v2115 = vpop.f32.mrb[0].mxu0
    %2116 = vdwg.mxu0
    %v2117 = vsel %vm230, %v2109, -inf
    %2118 = vmax.xlane.f32.xlu0 %v2117
    %v2119 = vpop.xlane.xlu0 %2118
    %v2120 = vsel %vm230, %v2114, -inf
    %2121 = vmax.xlane.f32.xlu0 %v2120
    %v2122 = vpop.xlane.xlu0 %2121
    %v2123 = vsub.f32 %v2109, %v2119
    %v2124 = vsub.f32 %v2114, %v2122
    %v2125 = vmul.f32 %v2123, 1.442695
    %v2126 = vpow.pop %v2125
    %v2127 = vmul.f32 %v2124, 1.442695
    %v2128 = vpow.pop %v2127
    %v2129 = vsel %vm230, %v2126, 0.0
    %2130 = vadd.xlane.f32.xlu0 %v2129
    %v2131 = vpop.xlane.xlu0 %2130
    %v2132 = vsel %vm230, %v2128, 0.0
    %2133 = vadd.xlane.f32.xlu0 %v2132
    %v2134 = vpop.xlane.xlu0 %2133
    %v2135 = vrcp.pop %v2131
    %v2136 = vmul.f32 %v2126, %v2135
    %v2137 = vrcp.pop %v2134
    %v2138 = vmul.f32 %v2128, %v2137
    %2139 = vrot.lane.b32.xlu0 %v1416, 40
    %v2140 = vpop.permute.xlu0 %2139
    %2141 = vrot.lane.b32.xlu0 %v1421, 40
    %v2142 = vpop.permute.xlu0 %2141
    %v2146 = vsel %vm230, %v2136, 0
    %v2149 = vsel %vm230, %v2138, 0
    %2151 = vmatprep.subr.mxu0 0.0
    %2152 = vmatpush1.msra.mxu0 %v2140
    %2153 = vmatprep.subr.mxu0 0.0
    %2154 = vmatpush1.msra.mxu0 %v2142
    %2155 = vmatprep.subr.mxu0 0.0
    %2156 = vmatpush1.msra.mxu0 0.0
    %2157 = vmatprep.subr.mxu0 0.0
    %2158 = vmatpush1.msra.mxu0 0.0
    %2159 = vmatprep.subr.mxu0 0.0
    %2160 = vmatpush1.msra.mxu0 0.0
    %2161 = vmatprep.subr.mxu0 0.0
    %2162 = vmatpush1.msra.mxu0 0.0
    %2163 = vmatprep.subr.mxu0 0.0
    %2164 = vmatpush1.msra.mxu0 0.0
    %2165 = vmatprep.subr.mxu0 0.0
    %2166 = vmatpush1.msra.mxu0 0.0
    %2167 = vmatprep.subr.mxu0 0.0
    %2168 = vmatpush1.msra.mxu0 0.0
    %2169 = vmatprep.subr.mxu0 0.0
    %2170 = vmatpush1.msra.mxu0 0.0
    %2171 = vmatprep.subr.mxu0 0.0
    %2172 = vmatpush1.msra.mxu0 0.0
    %2173 = vmatprep.subr.mxu0 0.0
    %2174 = vmatpush1.msra.mxu0 0.0
    %2175 = vmatprep.subr.mxu0 0.0
    %2176 = vmatpush1.msra.mxu0 0.0
    %2177 = vmatprep.subr.mxu0 0.0
    %2178 = vmatpush1.msra.mxu0 0.0
    %2179 = vmatprep.subr.mxu0 0.0
    %2180 = vmatpush1.msra.mxu0 0.0
    %2181 = vmatprep.subr.mxu0 0.0
    %2182 = vmatpush1.msra.mxu0 0.0
    %2183 = vmatprep.subr.mxu0 0.0
    %2184 = vmatpush1.msra.mxu0 0.0
    %2185 = vmatprep.subr.mxu0 0.0
    %2186 = vmatpush1.msra.mxu0 0.0
    %2187 = vmatprep.subr.mxu0 0.0
    %2188 = vmatpush1.msra.mxu0 0.0
    %2189 = vmatprep.subr.mxu0 0.0
    %2190 = vmatpush1.msra.mxu0 0.0
    %2191 = vmatprep.subr.mxu0 0.0
    %2192 = vmatpush1.msra.mxu0 0.0
    %2193 = vmatprep.subr.mxu0 0.0
    %2194 = vmatpush1.msra.mxu0 0.0
    %2195 = vmatprep.subr.mxu0 0.0
    %2196 = vmatpush1.msra.mxu0 0.0
    %2197 = vmatprep.subr.mxu0 0.0
    %2198 = vmatpush1.msra.mxu0 0.0
    %2199 = vmatprep.subr.mxu0 0.0
    %2200 = vmatpush1.msra.mxu0 0.0
    %2201 = vmatprep.subr.mxu0 0.0
    %2202 = vmatpush1.msra.mxu0 0.0
    %2203 = vmatprep.subr.mxu0 0.0
    %2204 = vmatpush1.msra.mxu0 0.0
    %2205 = vmatprep.subr.mxu0 0.0
    %2206 = vmatpush1.msra.mxu0 0.0
    %2207 = vmatprep.subr.mxu0 0.0
    %2208 = vmatpush1.msra.mxu0 0.0
    %2209 = vmatprep.subr.mxu0 0.0
    %2210 = vmatpush1.msra.mxu0 0.0
    %2211 = vmatprep.subr.mxu0 0.0
    %2212 = vmatpush1.msra.mxu0 0.0
    %2213 = vmatprep.subr.mxu0 0.0
    %2214 = vmatpush1.msra.mxu0 0.0
    %2215 = vmatprep.mubr.f32.mxu0 0.0
    %2216 = vmatmul.mubr.f32.gmra.mrb[0].mxu0 %v2146
    %v2217 = vpop.f32.mrb[0].mxu0
    %v2218 = vadd.f32 0.0, %v2217
    %v2219 = vpop.f32.mrb[0].mxu0
    %2220 = vmatprep.mubr.f32.mxu0 0.0
    %2221 = vmatmul.mubr.f32.gmra.mrb[0].mxu0 %v2149
    %v2222 = vpop.f32.mrb[0].mxu0
    %v2223 = vadd.f32 0.0, %v2222
    %v2224 = vpop.f32.mrb[0].mxu0
    %2225 = vdwg.mxu0
    %2228 = vrot.lane.b32.xlu0 %v1818, 8
    %v2229 = vpop.permute.xlu0 %2228
    %2230 = vrot.lane.b32.xlu0 %v1823, 8
    %v2231 = vpop.permute.xlu0 %2230
    %2236 = vrot.lane.b32.xlu0 %v2018, 16
    %v2237 = vpop.permute.xlu0 %2236
    %2238 = vrot.lane.b32.xlu0 %v2023, 16
    %v2239 = vpop.permute.xlu0 %2238
    %2244 = vrot.lane.b32.xlu0 %v2218, 24
    %v2245 = vpop.permute.xlu0 %2244
    %2246 = vrot.lane.b32.xlu0 %v2223, 24
    %v2247 = vpop.permute.xlu0 %2246
    %v2250 = vsel %vm144, %v1618, %v2229
    %v2251 = vsel %vm144, %v1623, %v2231
    %v2252 = vsel %vm230, %v2250, %v2237
    %v2253 = vsel %vm230, %v2251, %v2239
    %v2254 = vsel %vm968, %v2252, %v2245
    %v2255 = vsel %vm968, %v2253, %v2247
    %v2256 = vlaneseq
    %v2257 = vshrl.u32 %v2256, 7
    %v2258 = vsub.s32 0, %v2257
    %v2259 = vrot.slane %v1332, %v2258
    %v2261 = vsel %vm54, %v2254, 0
    %v2264 = vsel %vm54, %v2255, 0
    %2266 = vmatprep.subr.mxu0 0.0
    %2267 = vmatpush1.msra.mxu0 %v1315
    %2268 = vmatprep.subr.mxu0 0.0
    %2269 = vmatpush1.msra.mxu0 %v1316
    %2270 = vmatprep.subr.mxu0 0.0
    %2271 = vmatpush1.msra.mxu0 %v1317
    %2272 = vmatprep.subr.mxu0 0.0
    %2273 = vmatpush1.msra.mxu0 %v1318
    %2274 = vmatprep.subr.mxu0 0.0
    %2275 = vmatpush1.msra.mxu0 0.0
    %2276 = vmatprep.subr.mxu0 0.0
    %2277 = vmatpush1.msra.mxu0 0.0
    %2278 = vmatprep.subr.mxu0 0.0
    %2279 = vmatpush1.msra.mxu0 0.0
    %2280 = vmatprep.subr.mxu0 0.0
    %2281 = vmatpush1.msra.mxu0 0.0
    %2282 = vmatprep.subr.mxu0 0.0
    %2283 = vmatpush1.msra.mxu0 0.0
    %2284 = vmatprep.subr.mxu0 0.0
    %2285 = vmatpush1.msra.mxu0 0.0
    %2286 = vmatprep.subr.mxu0 0.0
    %2287 = vmatpush1.msra.mxu0 0.0
    %2288 = vmatprep.subr.mxu0 0.0
    %2289 = vmatpush1.msra.mxu0 0.0
    %2290 = vmatprep.subr.mxu0 0.0
    %2291 = vmatpush1.msra.mxu0 0.0
    %2292 = vmatprep.subr.mxu0 0.0
    %2293 = vmatpush1.msra.mxu0 0.0
    %2294 = vmatprep.subr.mxu0 0.0
    %2295 = vmatpush1.msra.mxu0 0.0
    %2296 = vmatprep.subr.mxu0 0.0
    %2297 = vmatpush1.msra.mxu0 0.0
    %2298 = vmatprep.subr.mxu0 0.0
    %2299 = vmatpush1.msra.mxu0 0.0
    %2300 = vmatprep.subr.mxu0 0.0
    %2301 = vmatpush1.msra.mxu0 0.0
    %2302 = vmatprep.subr.mxu0 0.0
    %2303 = vmatpush1.msra.mxu0 0.0
    %2304 = vmatprep.subr.mxu0 0.0
    %2305 = vmatpush1.msra.mxu0 0.0
    %2306 = vmatprep.subr.mxu0 0.0
    %2307 = vmatpush1.msra.mxu0 0.0
    %2308 = vmatprep.subr.mxu0 0.0
    %2309 = vmatpush1.msra.mxu0 0.0
    %2310 = vmatprep.subr.mxu0 0.0
    %2311 = vmatpush1.msra.mxu0 0.0
    %2312 = vmatprep.subr.mxu0 0.0
    %2313 = vmatpush1.msra.mxu0 0.0
    %2314 = vmatprep.subr.mxu0 0.0
    %2315 = vmatpush1.msra.mxu0 0.0
    %2316 = vmatprep.subr.mxu0 0.0
    %2317 = vmatpush1.msra.mxu0 0.0
    %2318 = vmatprep.subr.mxu0 0.0
    %2319 = vmatpush1.msra.mxu0 0.0
    %2320 = vmatprep.subr.mxu0 0.0
    %2321 = vmatpush1.msra.mxu0 0.0
    %2322 = vmatprep.subr.mxu0 0.0
    %2323 = vmatpush1.msra.mxu0 0.0
    %2324 = vmatprep.subr.mxu0 0.0
    %2325 = vmatpush1.msra.mxu0 0.0
    %2326 = vmatprep.subr.mxu0 0.0
    %2327 = vmatpush1.msra.mxu0 0.0
    %2328 = vmatprep.subr.mxu0 0.0
    %2329 = vmatpush1.msra.mxu0 0.0
    %2330 = vmatprep.mubr.f32.mxu0 0.0
    %2331 = vmatmul.mubr.f32.gmra.mrb[0].mxu0 %v2261
    %v2332 = vpop.f32.mrb[0].mxu0
    %v2333 = vadd.f32 %v2259, %v2332
    %v2334 = vpop.f32.mrb[0].mxu0
    %2335 = vmatprep.mubr.f32.mxu0 0.0
    %2336 = vmatmul.mubr.f32.gmra.mrb[0].mxu0 %v2264
    %v2337 = vpop.f32.mrb[0].mxu0
    %v2338 = vadd.f32 %v2259, %v2337
    %v2339 = vpop.f32.mrb[0].mxu0
    %2340 = vdwg.mxu0
    %v2341 = vadd.f32 %v1308, %v2333
    %v2342 = vadd.f32 %v1309, %v2338
    %v2343 = vsel %vm54, %v2341, 0.0
    %2344 = vadd.xlane.f32.xlu0 %v2343
    %v2345 = vpop.xlane.xlu0 %2344
    %v2346 = vsel %vm54, %v2342, 0.0
    %2347 = vadd.xlane.f32.xlu0 %v2346
    %v2348 = vpop.xlane.xlu0 %2347
    %v2349 = vmul.f32 %v2345, %v1064
    %v2350 = vmul.f32 %v2348, %v1064
    %v2351 = vsub.f32 %v2341, %v2349
    %v2352 = vsub.f32 %v2342, %v2350
    %v2353 = vmul.f32 %v2351, %v2351
    %v2354 = vmul.f32 %v2352, %v2352
    %v2355 = vsel %vm54, %v2353, 0.0
    %2356 = vadd.xlane.f32.xlu0 %v2355
    %v2357 = vpop.xlane.xlu0 %2356
    %v2358 = vsel %vm54, %v2354, 0.0
    %2359 = vadd.xlane.f32.xlu0 %v2358
    %v2360 = vpop.xlane.xlu0 %2359
    %v2361 = vmul.f32 %v2357, %v1064
    %v2362 = vmul.f32 %v2360, %v1064
    %v2363 = vadd.f32 %v2361, 1e-05
    %v2364 = vadd.f32 %v2362, 1e-05
    %v2365 = vrsqrt.pop %v2363
    %v2366 = vrsqrt.pop %v2364
    %v2367 = vmul.f32 %v2351, %v2365
    %v2368 = vmul.f32 %v2352, %v2366
    %v2369 = vlaneseq
    %v2370 = vshrl.u32 %v2369, 7
    %v2371 = vsub.s32 0, %v2370
    %v2372 = vrot.slane %v1335, %v2371
    %v2373 = vmul.f32 %v2367, %v2372
    %v2374 = vmul.f32 %v2368, %v2372
    %v2375 = vlaneseq
    %v2376 = vshrl.u32 %v2375, 7
    %v2377 = vsub.s32 0, %v2376
    %v2378 = vrot.slane %v1336, %v2377
    %v2379 = vadd.f32 %v2373, %v2378
    %v2380 = vadd.f32 %v2374, %v2378
    %v2381 = vlaneseq
    %v2382 = vshrl.u32 %v2381, 7
    %v2383 = vsub.s32 0, %v2382
    %v2384 = vrot.slane %v1333, %v2383
    %v2386 = vsel %vm54, %v2379, 0
    %v2389 = vsel %vm54, %v2380, 0
    %2391 = vmatprep.subr.mxu0 0.0
    %2392 = vmatpush1.msra.mxu0 %v1319
    %2393 = vmatprep.subr.mxu0 0.0
    %2394 = vmatpush1.msra.mxu0 %v1320
    %2395 = vmatprep.subr.mxu0 0.0
    %2396 = vmatpush1.msra.mxu0 %v1321
    %2397 = vmatprep.subr.mxu0 0.0
    %2398 = vmatpush1.msra.mxu0 %v1322
    %2399 = vmatprep.subr.mxu0 0.0
    %2400 = vmatpush1.msra.mxu0 0.0
    %2401 = vmatprep.subr.mxu0 0.0
    %2402 = vmatpush1.msra.mxu0 0.0
    %2403 = vmatprep.subr.mxu0 0.0
    %2404 = vmatpush1.msra.mxu0 0.0
    %2405 = vmatprep.subr.mxu0 0.0
    %2406 = vmatpush1.msra.mxu0 0.0
    %2407 = vmatprep.subr.mxu0 0.0
    %2408 = vmatpush1.msra.mxu0 0.0
    %2409 = vmatprep.subr.mxu0 0.0
    %2410 = vmatpush1.msra.mxu0 0.0
    %2411 = vmatprep.subr.mxu0 0.0
    %2412 = vmatpush1.msra.mxu0 0.0
    %2413 = vmatprep.subr.mxu0 0.0
    %2414 = vmatpush1.msra.mxu0 0.0
    %2415 = vmatprep.subr.mxu0 0.0
    %2416 = vmatpush1.msra.mxu0 0.0
    %2417 = vmatprep.subr.mxu0 0.0
    %2418 = vmatpush1.msra.mxu0 0.0
    %2419 = vmatprep.subr.mxu0 0.0
    %2420 = vmatpush1.msra.mxu0 0.0
    %2421 = vmatprep.subr.mxu0 0.0
    %2422 = vmatpush1.msra.mxu0 0.0
    %2423 = vmatprep.subr.mxu0 0.0
    %2424 = vmatpush1.msra.mxu0 0.0
    %2425 = vmatprep.subr.mxu0 0.0
    %2426 = vmatpush1.msra.mxu0 0.0
    %2427 = vmatprep.subr.mxu0 0.0
    %2428 = vmatpush1.msra.mxu0 0.0
    %2429 = vmatprep.subr.mxu0 0.0
    %2430 = vmatpush1.msra.mxu0 0.0
    %2431 = vmatprep.subr.mxu0 0.0
    %2432 = vmatpush1.msra.mxu0 0.0
    %2433 = vmatprep.subr.mxu0 0.0
    %2434 = vmatpush1.msra.mxu0 0.0
    %2435 = vmatprep.subr.mxu0 0.0
    %2436 = vmatpush1.msra.mxu0 0.0
    %2437 = vmatprep.subr.mxu0 0.0
    %2438 = vmatpush1.msra.mxu0 0.0
    %2439 = vmatprep.subr.mxu0 0.0
    %2440 = vmatpush1.msra.mxu0 0.0
    %2441 = vmatprep.subr.mxu0 0.0
    %2442 = vmatpush1.msra.mxu0 0.0
    %2443 = vmatprep.subr.mxu0 0.0
    %2444 = vmatpush1.msra.mxu0 0.0
    %2445 = vmatprep.subr.mxu0 0.0
    %2446 = vmatpush1.msra.mxu0 0.0
    %2447 = vmatprep.subr.mxu0 0.0
    %2448 = vmatpush1.msra.mxu0 0.0
    %2449 = vmatprep.subr.mxu0 0.0
    %2450 = vmatpush1.msra.mxu0 0.0
    %2451 = vmatprep.subr.mxu0 0.0
    %2452 = vmatpush1.msra.mxu0 0.0
    %2453 = vmatprep.subr.mxu0 0.0
    %2454 = vmatpush1.msra.mxu0 0.0
    %2455 = vmatprep.mubr.f32.mxu0 0.0
    %2456 = vmatmul.mubr.f32.gmra.mrb[0].mxu0 %v2386
    %v2457 = vpop.f32.mrb[0].mxu0
    %v2458 = vadd.f32 %v2384, %v2457
    %v2459 = vpop.f32.mrb[0].mxu0
    %2460 = vmatprep.mubr.f32.mxu0 0.0
    %2461 = vmatmul.mubr.f32.gmra.mrb[0].mxu0 %v2389
    %v2462 = vpop.f32.mrb[0].mxu0
    %v2463 = vadd.f32 %v2384, %v2462
    %v2464 = vpop.f32.mrb[0].mxu0
    %2465 = vdwg.mxu0
    %v2466 = vmax.f32 %v2458, 0.0
    %v2467 = vmax.f32 %v2463, 0.0
    %v2468 = vlaneseq
    %v2469 = vshrl.u32 %v2468, 7
    %v2470 = vsub.s32 0, %v2469
    %v2471 = vrot.slane %v1334, %v2470
    %v2473 = vsel %vm1188, %v2466, 0
    %v2476 = vsel %vm1188, %v2467, 0
    %2478 = vmatprep.subr.mxu0 0.0
    %2479 = vmatpush1.msra.mxu0 %v1323
    %2480 = vmatprep.subr.mxu0 0.0
    %2481 = vmatpush1.msra.mxu0 %v1324
    %2482 = vmatprep.subr.mxu0 0.0
    %2483 = vmatpush1.msra.mxu0 %v1325
    %2484 = vmatprep.subr.mxu0 0.0
    %2485 = vmatpush1.msra.mxu0 %v1326
    %2486 = vmatprep.subr.mxu0 0.0
    %2487 = vmatpush1.msra.mxu0 %v1327
    %2488 = vmatprep.subr.mxu0 0.0
    %2489 = vmatpush1.msra.mxu0 %v1328
    %2490 = vmatprep.subr.mxu0 0.0
    %2491 = vmatpush1.msra.mxu0 %v1329
    %2492 = vmatprep.subr.mxu0 0.0
    %2493 = vmatpush1.msra.mxu0 %v1330
    %2494 = vmatprep.subr.mxu0 0.0
    %2495 = vmatpush1.msra.mxu0 0.0
    %2496 = vmatprep.subr.mxu0 0.0
    %2497 = vmatpush1.msra.mxu0 0.0
    %2498 = vmatprep.subr.mxu0 0.0
    %2499 = vmatpush1.msra.mxu0 0.0
    %2500 = vmatprep.subr.mxu0 0.0
    %2501 = vmatpush1.msra.mxu0 0.0
    %2502 = vmatprep.subr.mxu0 0.0
    %2503 = vmatpush1.msra.mxu0 0.0
    %2504 = vmatprep.subr.mxu0 0.0
    %2505 = vmatpush1.msra.mxu0 0.0
    %2506 = vmatprep.subr.mxu0 0.0
    %2507 = vmatpush1.msra.mxu0 0.0
    %2508 = vmatprep.subr.mxu0 0.0
    %2509 = vmatpush1.msra.mxu0 0.0
    %2510 = vmatprep.subr.mxu0 0.0
    %2511 = vmatpush1.msra.mxu0 0.0
    %2512 = vmatprep.subr.mxu0 0.0
    %2513 = vmatpush1.msra.mxu0 0.0
    %2514 = vmatprep.subr.mxu0 0.0
    %2515 = vmatpush1.msra.mxu0 0.0
    %2516 = vmatprep.subr.mxu0 0.0
    %2517 = vmatpush1.msra.mxu0 0.0
    %2518 = vmatprep.subr.mxu0 0.0
    %2519 = vmatpush1.msra.mxu0 0.0
    %2520 = vmatprep.subr.mxu0 0.0
    %2521 = vmatpush1.msra.mxu0 0.0
    %2522 = vmatprep.subr.mxu0 0.0
    %2523 = vmatpush1.msra.mxu0 0.0
    %2524 = vmatprep.subr.mxu0 0.0
    %2525 = vmatpush1.msra.mxu0 0.0
    %2526 = vmatprep.subr.mxu0 0.0
    %2527 = vmatpush1.msra.mxu0 0.0
    %2528 = vmatprep.subr.mxu0 0.0
    %2529 = vmatpush1.msra.mxu0 0.0
    %2530 = vmatprep.subr.mxu0 0.0
    %2531 = vmatpush1.msra.mxu0 0.0
    %2532 = vmatprep.subr.mxu0 0.0
    %2533 = vmatpush1.msra.mxu0 0.0
    %2534 = vmatprep.subr.mxu0 0.0
    %2535 = vmatpush1.msra.mxu0 0.0
    %2536 = vmatprep.subr.mxu0 0.0
    %2537 = vmatpush1.msra.mxu0 0.0
    %2538 = vmatprep.subr.mxu0 0.0
    %2539 = vmatpush1.msra.mxu0 0.0
    %2540 = vmatprep.subr.mxu0 0.0
    %2541 = vmatpush1.msra.mxu0 0.0
    %2542 = vmatprep.mubr.f32.mxu0 0.0
    %2543 = vmatmul.mubr.f32.gmra.mrb[0].mxu0 %v2473
    %v2544 = vpop.f32.mrb[0].mxu0
    %v2545 = vadd.f32 %v2471, %v2544
    %v2546 = vpop.f32.mrb[0].mxu0
    %2547 = vmatprep.mubr.f32.mxu0 0.0
    %2548 = vmatmul.mubr.f32.gmra.mrb[0].mxu0 %v2476
    %v2549 = vpop.f32.mrb[0].mxu0
    %v2550 = vadd.f32 %v2471, %v2549
    %v2551 = vpop.f32.mrb[0].mxu0
    %2552 = vdwg.mxu0
    %v2553 = vadd.f32 %v2379, %v2545
    %v2554 = vadd.f32 %v2380, %v2550
    %v2555 = vsel %vm54, %v2553, 0.0
    %2556 = vadd.xlane.f32.xlu0 %v2555
    %v2557 = vpop.xlane.xlu0 %2556
    %v2558 = vsel %vm54, %v2554, 0.0
    %2559 = vadd.xlane.f32.xlu0 %v2558
    %v2560 = vpop.xlane.xlu0 %2559
    %v2561 = vmul.f32 %v2557, %v1064
    %v2562 = vmul.f32 %v2560, %v1064
    %v2563 = vsub.f32 %v2553, %v2561
    %v2564 = vsub.f32 %v2554, %v2562
    %v2565 = vmul.f32 %v2563, %v2563
    %v2566 = vmul.f32 %v2564, %v2564
    %v2567 = vsel %vm54, %v2565, 0.0
    %2568 = vadd.xlane.f32.xlu0 %v2567
    %v2569 = vpop.xlane.xlu0 %2568
    %v2570 = vsel %vm54, %v2566, 0.0
    %2571 = vadd.xlane.f32.xlu0 %v2570
    %v2572 = vpop.xlane.xlu0 %2571
    %v2573 = vmul.f32 %v2569, %v1064
    %v2574 = vmul.f32 %v2572, %v1064
    %v2575 = vadd.f32 %v2573, 1e-05
    %v2576 = vadd.f32 %v2574, 1e-05
    %v2577 = vrsqrt.pop %v2575
    %v2578 = vrsqrt.pop %v2576
    %v2579 = vmul.f32 %v2563, %v2577
    %v2580 = vmul.f32 %v2564, %v2578
    %v2581 = vlaneseq
    %v2582 = vshrl.u32 %v2581, 7
    %v2583 = vsub.s32 0, %v2582
    %v2584 = vrot.slane %v1337, %v2583
    %v2585 = vmul.f32 %v2579, %v2584
    %v2586 = vmul.f32 %v2580, %v2584
    %v2587 = vlaneseq
    %v2588 = vshrl.u32 %v2587, 7
    %v2589 = vsub.s32 0, %v2588
    %v2590 = vrot.slane %v1338, %v2589
    %v2591 = vadd.f32 %v2585, %v2590
    %v2592 = vadd.f32 %v2586, %v2590
    %v2593 = vld [vmem:[%s2] sm:$0x3]
    %v2595 = vsel %vm230, %v2593, 0
    %2597 = vmatprep.subr.mxu0 0.0
    %2598 = vmatpush1.msra.mxu0 %v2591
    %2599 = vmatprep.subr.mxu0 0.0
    %2600 = vmatpush1.msra.mxu0 %v2592
    %2601 = vmatprep.subr.mxu0 0.0
    %2602 = vmatpush1.msra.mxu0 0.0
    %2603 = vmatprep.subr.mxu0 0.0
    %2604 = vmatpush1.msra.mxu0 0.0
    %2605 = vmatprep.subr.mxu0 0.0
    %2606 = vmatpush1.msra.mxu0 0.0
    %2607 = vmatprep.subr.mxu0 0.0
    %2608 = vmatpush1.msra.mxu0 0.0
    %2609 = vmatprep.subr.mxu0 0.0
    %2610 = vmatpush1.msra.mxu0 0.0
    %2611 = vmatprep.subr.mxu0 0.0
    %2612 = vmatpush1.msra.mxu0 0.0
    %2613 = vmatprep.subr.mxu0 0.0
    %2614 = vmatpush1.msra.mxu0 0.0
    %2615 = vmatprep.subr.mxu0 0.0
    %2616 = vmatpush1.msra.mxu0 0.0
    %2617 = vmatprep.subr.mxu0 0.0
    %2618 = vmatpush1.msra.mxu0 0.0
    %2619 = vmatprep.subr.mxu0 0.0
    %2620 = vmatpush1.msra.mxu0 0.0
    %2621 = vmatprep.subr.mxu0 0.0
    %2622 = vmatpush1.msra.mxu0 0.0
    %2623 = vmatprep.subr.mxu0 0.0
    %2624 = vmatpush1.msra.mxu0 0.0
    %2625 = vmatprep.subr.mxu0 0.0
    %2626 = vmatpush1.msra.mxu0 0.0
    %2627 = vmatprep.subr.mxu0 0.0
    %2628 = vmatpush1.msra.mxu0 0.0
    %2629 = vmatprep.subr.mxu0 0.0
    %2630 = vmatpush1.msra.mxu0 0.0
    %2631 = vmatprep.subr.mxu0 0.0
    %2632 = vmatpush1.msra.mxu0 0.0
    %2633 = vmatprep.subr.mxu0 0.0
    %2634 = vmatpush1.msra.mxu0 0.0
    %2635 = vmatprep.subr.mxu0 0.0
    %2636 = vmatpush1.msra.mxu0 0.0
    %2637 = vmatprep.subr.mxu0 0.0
    %2638 = vmatpush1.msra.mxu0 0.0
    %2639 = vmatprep.subr.mxu0 0.0
    %2640 = vmatpush1.msra.mxu0 0.0
    %2641 = vmatprep.subr.mxu0 0.0
    %2642 = vmatpush1.msra.mxu0 0.0
    %2643 = vmatprep.subr.mxu0 0.0
    %2644 = vmatpush1.msra.mxu0 0.0
    %2645 = vmatprep.subr.mxu0 0.0
    %2646 = vmatpush1.msra.mxu0 0.0
    %2647 = vmatprep.subr.mxu0 0.0
    %2648 = vmatpush1.msra.mxu0 0.0
    %2649 = vmatprep.subr.mxu0 0.0
    %2650 = vmatpush1.msra.mxu0 0.0
    %2651 = vmatprep.subr.mxu0 0.0
    %2652 = vmatpush1.msra.mxu0 0.0
    %2653 = vmatprep.subr.mxu0 0.0
    %2654 = vmatpush1.msra.mxu0 0.0
    %2655 = vmatprep.subr.mxu0 0.0
    %2656 = vmatpush1.msra.mxu0 0.0
    %2657 = vmatprep.subr.mxu0 0.0
    %2658 = vmatpush1.msra.mxu0 0.0
    %2659 = vmatprep.subr.mxu0 0.0
    %2660 = vmatpush1.msra.mxu0 0.0
    %2661 = vmatprep.mubr.f32.mxu0 0.0
    %2662 = vmatmul.mubr.f32.gmra.mrb[0].mxu0 %v2595
    %v2663 = vpop.f32.mrb[0].mxu0
    %v2664 = vadd.f32 0.0, %v2663
    %v2665 = vpop.f32.mrb[0].mxu0
    %2666 = vdwg.mxu0
    %vm2667 = vcmask 254976
    %2668 = vst.msk [vmem:[#allocation2] sm:$0x3] %vm2667, %v2664
    // Predicated region
    $region18: #{encoder_pallas.1} parent=1 // pred_check
      _
    $region19: #{encoder_pallas.1} parent=1 // pred_check_branch
      %2670 = sbr.rel (0) target = $region21
    $region20: #{encoder_pallas.1} parent=1 // pred_region
      %s2672 = ssub.s32 32, 32
      %2673 = vsyncadd [#allocation3], %s2672
      %s2675 = sshll.u32 [#allocation2], 4
      %s2676 = int_to_ptr.vmem [resolvable:$true] %s2675
      %2678 = dma.vmem_to_hbm [thread:$0]  %s2676, 32, %s4, [#allocation3]
    $region21: #{encoder_pallas.1} parent=1 // pred_fallthru
      _
    // Predicated region
    $region22: #{encoder_pallas.1} parent=1 // pred_check
      _
    $region23: #{encoder_pallas.1} parent=1 // pred_check_branch
      %2680 = sbr.rel (0) target = $region25
    $region24: #{encoder_pallas.1} parent=1 // pred_region
      %2681 = dma.done [#allocation3], 32
    $region25: #{encoder_pallas.1} parent=1 // pred_fallthru
      _
    %2682 = vsyncpa [#allocation3], 1

</llo_original>
